<compile_context>
chip_gen: v5e
topology: v5e:2x2
jax: 0.10.0
libtpu: 0.0.40
codegen_flags: <defaults>
</compile_context>

<pallas_src>
import functools

import jax
import jax.numpy as jnp
from jax.experimental import pallas as pl
from jax.experimental.pallas import tpu as pltpu

LN_EPS = 1e-5                       # nn.LayerNorm default eps
VMEM_LIMIT = 32 * 1024 * 1024       # explicit scoped-VMEM budget (safe on v5e/v6e/v7x)


# --------------------------------------------------------------------------
# small helpers
# --------------------------------------------------------------------------
def _round_up(x, m):
    return (x + m - 1) // m * m


def _choose_row_tile(m):
    """Largest sensible row tile while keeping >=2 grid steps when possible
    (so both v7x TensorCores get work). Production sizes get 256-row tiles."""
    m8 = _round_up(max(m, 8), 8)
    for cand in (256, 128, 64, 32, 16, 8):
        if m8 >= 2 * cand:
            return cand
    return m8


def _layernorm(x, g, b):
    mean = jnp.mean(x, axis=-1, keepdims=True)
    var = jnp.mean(jnp.square(x - mean), axis=-1, keepdims=True)
    return (x - mean) * jax.lax.rsqrt(var + LN_EPS) * g + b


def _gelu_exact(x):
    # PyTorch nn.GELU() default = exact erf formulation.
    return 0.5 * x * (1.0 + jax.lax.erf(x * 0.7071067811865476))


# --------------------------------------------------------------------------
# Kernel 1: level_proj -> level_norm -> attn_norm -> fused QKV projection
#           grid = (levels, row_tiles); weights stacked along the level axis
# --------------------------------------------------------------------------
def _level_qkv_kernel(x_ref, wp_ref, bp_ref, gl_ref, bl_ref, ga_ref, ba_ref,
                      wqkv_ref, bqkv_ref, o_ref):
    x = x_ref[...]                                                    # (TM, D)
    y = jnp.dot(x, wp_ref[0], preferred_element_type=jnp.float32) + bp_ref[0]
    y = _layernorm(y, gl_ref[0], bl_ref[0])                           # level norm
    y = _layernorm(y, ga_ref[...], ba_ref[...])                       # attn norm
    qkv = jnp.dot(y.astype(x.dtype), wqkv_ref[...],
                  preferred_element_type=jnp.float32) + bqkv_ref[...]
    o_ref[0] = qkv.astype(o_ref.dtype)


def level_qkv(x_pad, wp, bp, gl, bl, ga, ba, wqkv, bqkv, *, row_tile):
    m_pad, d = x_pad.shape
    d3 = wqkv.shape[1]
    n_levels = wp.shape[0]
    return pl.pallas_call(
        _level_qkv_kernel,
        out_shape=jax.ShapeDtypeStruct((n_levels, m_pad, d3), x_pad.dtype),
        grid=(n_levels, m_pad // row_tile),
        in_specs=[
            pl.BlockSpec((row_tile, d), lambda l, m: (m, 0)),
            pl.BlockSpec((1, d, d), lambda l, m: (l, 0, 0)),
            pl.BlockSpec((1, 1, d), lambda l, m: (l, 0, 0)),
            pl.BlockSpec((1, 1, d), lambda l, m: (l, 0, 0)),
            pl.BlockSpec((1, 1, d), lambda l, m: (l, 0, 0)),
            pl.BlockSpec((1, d), lambda l, m: (0, 0)),
            pl.BlockSpec((1, d), lambda l, m: (0, 0)),
            pl.BlockSpec((d, d3), lambda l, m: (0, 0)),
            pl.BlockSpec((1, d3), lambda l, m: (0, 0)),
        ],
        out_specs=pl.BlockSpec((1, row_tile, d3), lambda l, m: (l, m, 0)),
        compiler_params=pltpu.CompilerParams(
            dimension_semantics=("parallel", "parallel"),
            vmem_limit_bytes=VMEM_LIMIT),
    )(x_pad, wp, bp, gl, bl, ga, ba, wqkv, bqkv)


# --------------------------------------------------------------------------
# Kernel 2: cross attention for all heads of one (batch, level) slice per grid
#           step, accumulating the softmax(level_weights)-weighted sum across
#           the level axis into a resident VMEM scratch (output written once).
# --------------------------------------------------------------------------
def _attn_kernel(lw_ref, q_ref, k_ref, v_ref, o_ref, acc_ref,
                 *, num_heads, head_dim, scale):
    l = pl.program_id(1)

    @pl.when(l == 0)
    def _():
        acc_ref[...] = jnp.zeros_like(acc_ref)

    q = q_ref[0]                      # (Nq, D)
    k = k_ref[0]                      # (Nk, D)
    v = v_ref[0]                      # (Nk, D)
    outs = []
    for h in range(num_heads):        # static unroll; head_dim slices are static
        s0 = h * head_dim
        qh = q[:, s0:s0 + head_dim] * scale
        kh = k[:, s0:s0 + head_dim]
        vh = v[:, s0:s0 + head_dim]
        # contract last axes directly (no k.T transpose feeding the MXU)
        s = jax.lax.dot_general(qh, kh, (((1,), (1,)), ((), ())),
                                preferred_element_type=jnp.float32)
        s = s - jnp.max(s, axis=-1, keepdims=True)
        p = jnp.exp(s)
        denom = jnp.sum(p, axis=-1, keepdims=True)
        p = p * pl.reciprocal(denom, approx=True)   # EUP divide (~1e-3 rel err)
        outs.append(jnp.dot(p, vh, preferred_element_type=jnp.float32))
    res = jnp.concatenate(outs, axis=-1)            # (Nq, D) f32

    acc_ref[...] += lw_ref[l] * res                 # level-weighted accumulation

    @pl.when(l == pl.num_programs(1) - 1)
    def _():
        o_ref[...] = acc_ref[...].astype(o_ref.dtype)


def attention(lw, q, k, v, *, num_heads, scale, n_q, n_k):
    # lw: (L,) softmaxed level weights; q: (L, B*Nq, D), k/v: (L, B*Nk, D)
    L, mq, d = q.shape
    b = mq // n_q
    head_dim = d // num_heads
    kern = functools.partial(_attn_kernel, num_heads=num_heads,
                             head_dim=head_dim, scale=scale)
    return pl.pallas_call(
        kern,
        out_shape=jax.ShapeDtypeStruct((mq, d), q.dtype),
        grid=(b, L),                                # level axis last (reduction)
        in_specs=[
            pl.BlockSpec(memory_space=pltpu.MemorySpace.SMEM),
            pl.BlockSpec((1, n_q, d), lambda bb, l: (l, bb, 0)),
            pl.BlockSpec((1, n_k, d), lambda bb, l: (l, bb, 0)),
            pl.BlockSpec((1, n_k, d), lambda bb, l: (l, bb, 0)),
        ],
        out_specs=pl.BlockSpec((n_q, d), lambda bb, l: (bb, 0)),
        scratch_shapes=[pltpu.VMEM((n_q, d), jnp.float32)],
        compiler_params=pltpu.CompilerParams(
            dimension_semantics=("parallel", "arbitrary"),
            vmem_limit_bytes=VMEM_LIMIT),
    )(lw, q, k, v)
    # TODO(synk): for long sequences, tile Nq/Nk with an online-softmax (flash)
    # accumulator instead of holding the full score matrix in VMEM.


# --------------------------------------------------------------------------
# Kernel 3: to_out -> ff_norm -> gated FFN (GELU*GELU) -> ff_out + residual
# --------------------------------------------------------------------------
def _out_ff_kernel(s_ref, wo_ref, bo_ref, gf_ref, bf_ref,
                   wg_ref, bg_ref, wv_ref, bv_ref, wf_ref, bf2_ref, o_ref):
    s = s_ref[...]                                                    # (TM, D)
    att = jnp.dot(s, wo_ref[...], preferred_element_type=jnp.float32) + bo_ref[...]
    x = _layernorm(att, gf_ref[...], bf_ref[...]).astype(s.dtype)
    gate = _gelu_exact(
        jnp.dot(x, wg_ref[...], preferred_element_type=jnp.float32) + bg_ref[...])
    value = _gelu_exact(
        jnp.dot(x, wv_ref[...], preferred_element_type=jnp.float32) + bv_ref[...])
    h = (gate * value).astype(s.dtype)
    out = jnp.dot(h, wf_ref[...], preferred_element_type=jnp.float32) + bf2_ref[...] + att
    o_ref[...] = out.astype(o_ref.dtype)


def out_ff(s_pad, w_out, b_out, g_ff, b_ff, wg, bg, wv, bv, wf, bf, *, row_tile):
    m_pad, d = s_pad.shape
    f = wg.shape[1]
    return pl.pallas_call(
        _out_ff_kernel,
        out_shape=jax.ShapeDtypeStruct((m_pad, d), s_pad.dtype),
        grid=(m_pad // row_tile,),
        in_specs=[
            pl.BlockSpec((row_tile, d), lambda i: (i, 0)),
            pl.BlockSpec((d, d), lambda i: (0, 0)),
            pl.BlockSpec((1, d), lambda i: (0, 0)),
            pl.BlockSpec((1, d), lambda i: (0, 0)),
            pl.BlockSpec((1, d), lambda i: (0, 0)),
            pl.BlockSpec((d, f), lambda i: (0, 0)),
            pl.BlockSpec((1, f), lambda i: (0, 0)),
            pl.BlockSpec((d, f), lambda i: (0, 0)),
            pl.BlockSpec((1, f), lambda i: (0, 0)),
            pl.BlockSpec((f, d), lambda i: (0, 0)),
            pl.BlockSpec((1, d), lambda i: (0, 0)),
        ],
        out_specs=pl.BlockSpec((row_tile, d), lambda i: (i, 0)),
        compiler_params=pltpu.CompilerParams(
            dimension_semantics=("parallel",),
            vmem_limit_bytes=VMEM_LIMIT),
    )(s_pad, w_out, b_out.reshape(1, d), g_ff.reshape(1, d), b_ff.reshape(1, d),
      wg, bg.reshape(1, f), wv, bv.reshape(1, f), wf, bf.reshape(1, d))
    # TODO(synk): at production dims on v7x (64 MiB VMEM), cast wg/wv/wf to bf16
    # or add a grid axis tiling ff_dim with a K-reduction accumulator.


# --------------------------------------------------------------------------
# Forward pass (thin JAX glue between the 3 fused Pallas kernels)
# --------------------------------------------------------------------------
def cross_attention_forward(params, image_features, text_features, *, num_heads):
    B, N_i, dim = image_features.shape
    _, N_t, _ = text_features.shape
    H = num_heads
    hd = dim // H
    scale = float(hd) ** -0.5

    m_img = B * N_i
    m_txt = B * N_t
    m_tot = m_img + m_txt
    row_tile = _choose_row_tile(m_tot)
    m_pad = _round_up(m_tot, row_tile)

    # one combined token stream (image rows then text rows; identical weights)
    x = jnp.concatenate([image_features.reshape(m_img, dim),
                         text_features.reshape(m_txt, dim)], axis=0)
    x_pad = jnp.pad(x, ((0, m_pad - m_tot), (0, 0)))

    # stacked per-level weights; fused QKV weight (D, 3D)
    wp = jnp.stack([w for w, _ in params["level_proj"]])              # (3, D, D)
    bp = jnp.stack([b for _, b in params["level_proj"]])[:, None, :]  # (3, 1, D)
    gl = jnp.stack([g for g, _ in params["level_norm"]])[:, None, :]
    bl = jnp.stack([b for _, b in params["level_norm"]])[:, None, :]
    ga = params["attn_norm"][0].reshape(1, dim)
    ba = params["attn_norm"][1].reshape(1, dim)
    wqkv = jnp.concatenate(
        [params["to_q"][0], params["to_k"][0], params["to_v"][0]], axis=1)
    bqkv = jnp.concatenate(
        [params["to_q"][1], params["to_k"][1], params["to_v"][1]]).reshape(1, 3 * dim)

    qkv = level_qkv(x_pad, wp, bp, gl, bl, ga, ba, wqkv, bqkv,
                    row_tile=row_tile)                                # (3, M_pad, 3D)

    q_img = qkv[:, :m_img, 0:dim]
    k_img = qkv[:, :m_img, dim:2 * dim]
    v_img = qkv[:, :m_img, 2 * dim:3 * dim]
    q_txt = qkv[:, m_img:m_tot, 0:dim]
    k_txt = qkv[:, m_img:m_tot, dim:2 * dim]
    v_txt = qkv[:, m_img:m_tot, 2 * dim:3 * dim]

    # softmaxed level weights consumed from SMEM inside the attention kernel
    lw = jax.nn.softmax(params["level_weights"]).astype(jnp.float32)

    img_sum = attention(lw, q_img, k_txt, v_txt, num_heads=H, scale=scale,
                        n_q=N_i, n_k=N_t)                             # (B*N_i, D)
    txt_sum = attention(lw, q_txt, k_img, v_img, num_heads=H, scale=scale,
                        n_q=N_t, n_k=N_i)                             # (B*N_t, D)

    s = jnp.concatenate([img_sum, txt_sum], axis=0)
    s_pad = jnp.pad(s, ((0, m_pad - m_tot), (0, 0)))

    ff = params["ff"]
    out = out_ff(s_pad, params["to_out"][0], params["to_out"][1],
                 params["ff_norm"][0], params["ff_norm"][1],
                 ff["wg"], ff["bg"], ff["wv"], ff["bv"], ff["wo"], ff["bo"],
                 row_tile=row_tile)

    img_out = out[:m_img].reshape(B, N_i, dim)
    txt_out = out[m_img:m_tot].reshape(B, N_t, dim)
    return img_out, txt_out


# --------------------------------------------------------------------------
# Deterministic parameter construction (shapes follow the module __init__)
# --------------------------------------------------------------------------
def make_params(key, dim, ff_dim):
    def lin(k, din, dout):
        kw, kb = jax.random.split(k)
        w = jax.random.normal(kw, (din, dout), jnp.float32) * 0.02
        b = jax.random.normal(kb, (dout,), jnp.float32) * 0.02
        return w, b

    def ln(_):
        return jnp.ones((dim,), jnp.float32), jnp.zeros((dim,), jnp.float32)

    keys = jax.random.split(key, 16)
    params = {
        "attn_norm": ln(None),
        "ff_norm": ln(None),
        "level_proj": [lin(keys[i], dim, dim) for i in range(3)],
        "level_norm": [ln(None) for _ in range(3)],
        "level_weights": jnp.ones((3,), jnp.float32) / 3.0,
        "to_q": lin(keys[3], dim, dim),
        "to_k": lin(keys[4], dim, dim),
        "to_v": lin(keys[5], dim, dim),
        "to_out": lin(keys[6], dim, dim),
    }
    wg, bg = lin(keys[7], dim, ff_dim)
    wv, bv = lin(keys[8], dim, ff_dim)
    wo, bo = lin(keys[9], ff_dim, dim)
    params["ff"] = {"wg": wg, "bg": bg, "wv": wv, "bv": bv, "wo": wo, "bo": bo}
    return params


if __name__ == "__main__":
    B, N_i, N_t, dim, H = 2, 16, 8, 32, 8
    ff_dim = dim * 4

    key = jax.random.PRNGKey(0)
    k_img, k_txt, k_par = jax.random.split(key, 3)
    image_features = jax.random.normal(k_img, (B, N_i, dim), jnp.float32)
    text_features = jax.random.normal(k_txt, (B, N_t, dim), jnp.float32)
    params = make_params(k_par, dim, ff_dim)

    fwd = jax.jit(functools.partial(cross_attention_forward, num_heads=H))
    img_out, txt_out = fwd(params, image_features, text_features)
    jax.block_until_ready((img_out, txt_out))

    assert img_out.shape == (B, N_i, dim) and txt_out.shape == (B, N_t, dim)
    assert bool(jnp.all(jnp.isfinite(img_out))) and bool(jnp.all(jnp.isfinite(txt_out)))
    print("KERNEL_OK")
</pallas_src>

<mosaic_0001>
module attributes {stable_mosaic.version = 11 : i64} {
  func.func @_level_qkv_kernel(%arg0: i32, %arg1: i32, %arg2: memref<16x32xf32, #tpu.memory_space<vmem>>, %arg3: memref<1x32x32xf32, #tpu.memory_space<vmem>>, %arg4: memref<1x1x32xf32, #tpu.memory_space<vmem>>, %arg5: memref<1x1x32xf32, #tpu.memory_space<vmem>>, %arg6: memref<1x1x32xf32, #tpu.memory_space<vmem>>, %arg7: memref<1x32xf32, #tpu.memory_space<vmem>>, %arg8: memref<1x32xf32, #tpu.memory_space<vmem>>, %arg9: memref<32x96xf32, #tpu.memory_space<vmem>>, %arg10: memref<1x96xf32, #tpu.memory_space<vmem>>, %arg11: memref<1x16x96xf32, #tpu.memory_space<vmem>>) attributes {dimension_semantics = [#tpu.dimension_semantics<parallel>, #tpu.dimension_semantics<parallel>], iteration_bounds = array<i64: 3, 3>, scalar_prefetch = 0 : i64, scratch_operands = 0 : i64, tpu.core_type = #tpu.core_type<tc>, window_params = [{transform_indices = @transform_0, window_bounds = array<i64: 16, 32>}, {transform_indices = @transform_1, window_bounds = array<i64: 1, 32, 32>}, {transform_indices = @transform_2, window_bounds = array<i64: 1, 1, 32>}, {transform_indices = @transform_3, window_bounds = array<i64: 1, 1, 32>}, {transform_indices = @transform_4, window_bounds = array<i64: 1, 1, 32>}, {pipeline_mode = #tpu.pipeline_mode<synchronous>, transform_indices = @transform_5, window_bounds = array<i64: 1, 32>}, {pipeline_mode = #tpu.pipeline_mode<synchronous>, transform_indices = @transform_6, window_bounds = array<i64: 1, 32>}, {pipeline_mode = #tpu.pipeline_mode<synchronous>, transform_indices = @transform_7, window_bounds = array<i64: 32, 96>}, {pipeline_mode = #tpu.pipeline_mode<synchronous>, transform_indices = @transform_8, window_bounds = array<i64: 1, 96>}, {transform_indices = @transform_9, window_bounds = array<i64: 1, 16, 96>}]} {
    %c0 = arith.constant 0 : index
    %c0_0 = arith.constant 0 : index
    %0 = vector.load %arg2[%c0, %c0_0] : memref<16x32xf32, #tpu.memory_space<vmem>>, vector<16x32xf32>
    %c0_1 = arith.constant 0 : index
    %c0_2 = arith.constant 0 : index
    %c0_3 = arith.constant 0 : index
    %1 = vector.load %arg3[%c0_1, %c0_2, %c0_3] : memref<1x32x32xf32, #tpu.memory_space<vmem>>, vector<1x32x32xf32>
    %2 = vector.shape_cast %1 : vector<1x32x32xf32> to vector<32x32xf32>
    %cst = arith.constant dense<0.000000e+00> : vector<16x32xf32>
    %3 = tpu.matmul %0, %2, %cst {dimension_numbers = #tpu.dot_dimension_numbers<[1], [0], [0], [1], [0, 0, 1, 1], [], []>} : vector<16x32xf32>, vector<32x32xf32>, vector<16x32xf32> -> vector<16x32xf32>
    %c0_4 = arith.constant 0 : index
    %c0_5 = arith.constant 0 : index
    %c0_6 = arith.constant 0 : index
    %4 = vector.load %arg4[%c0_4, %c0_5, %c0_6] : memref<1x1x32xf32, #tpu.memory_space<vmem>>, vector<1x1x32xf32>
    %5 = vector.shape_cast %4 : vector<1x1x32xf32> to vector<1x32xf32>
    %6 = vector.broadcast %5 : vector<1x32xf32> to vector<16x32xf32>
    %7 = arith.addf %3, %6 : vector<16x32xf32>
    %c0_7 = arith.constant 0 : index
    %c0_8 = arith.constant 0 : index
    %c0_9 = arith.constant 0 : index
    %8 = vector.load %arg5[%c0_7, %c0_8, %c0_9] : memref<1x1x32xf32, #tpu.memory_space<vmem>>, vector<1x1x32xf32>
    %9 = vector.shape_cast %8 : vector<1x1x32xf32> to vector<1x32xf32>
    %c0_10 = arith.constant 0 : index
    %c0_11 = arith.constant 0 : index
    %c0_12 = arith.constant 0 : index
    %10 = vector.load %arg6[%c0_10, %c0_11, %c0_12] : memref<1x1x32xf32, #tpu.memory_space<vmem>>, vector<1x1x32xf32>
    %11 = vector.shape_cast %10 : vector<1x1x32xf32> to vector<1x32xf32>
    %cst_13 = arith.constant dense<0.000000e+00> : vector<16xf32>
    %12 = vector.multi_reduction <add>, %7, %cst_13 [1] : vector<16x32xf32> to vector<16xf32>
    %13 = vector.shape_cast %12 : vector<16xf32> to vector<16x1xf32>
    %cst_14 = arith.constant 3.200000e+01 : f32
    %14 = vector.broadcast %cst_14 : f32 to vector<16x1xf32>
    %15 = arith.divf %13, %14 : vector<16x1xf32>
    %16 = vector.broadcast %15 : vector<16x1xf32> to vector<16x32xf32>
    %17 = arith.subf %7, %16 : vector<16x32xf32>
    %18 = arith.mulf %17, %17 : vector<16x32xf32>
    %cst_15 = arith.constant dense<0.000000e+00> : vector<16xf32>
    %19 = vector.multi_reduction <add>, %18, %cst_15 [1] : vector<16x32xf32> to vector<16xf32>
    %20 = vector.shape_cast %19 : vector<16xf32> to vector<16x1xf32>
    %cst_16 = arith.constant 3.200000e+01 : f32
    %21 = vector.broadcast %cst_16 : f32 to vector<16x1xf32>
    %22 = arith.divf %20, %21 : vector<16x1xf32>
    %23 = vector.broadcast %15 : vector<16x1xf32> to vector<16x32xf32>
    %24 = arith.subf %7, %23 : vector<16x32xf32>
    %cst_17 = arith.constant 9.99999974E-6 : f32
    %25 = vector.broadcast %cst_17 : f32 to vector<16x1xf32>
    %26 = arith.addf %22, %25 : vector<16x1xf32>
    %27 = math.rsqrt %26 : vector<16x1xf32>
    %28 = vector.broadcast %27 : vector<16x1xf32> to vector<16x32xf32>
    %29 = arith.mulf %24, %28 : vector<16x32xf32>
    %30 = vector.broadcast %9 : vector<1x32xf32> to vector<16x32xf32>
    %31 = arith.mulf %29, %30 : vector<16x32xf32>
    %32 = vector.broadcast %11 : vector<1x32xf32> to vector<16x32xf32>
    %33 = arith.addf %31, %32 : vector<16x32xf32>
    %c0_18 = arith.constant 0 : index
    %c0_19 = arith.constant 0 : index
    %34 = vector.load %arg7[%c0_18, %c0_19] : memref<1x32xf32, #tpu.memory_space<vmem>>, vector<1x32xf32>
    %c0_20 = arith.constant 0 : index
    %c0_21 = arith.constant 0 : index
    %35 = vector.load %arg8[%c0_20, %c0_21] : memref<1x32xf32, #tpu.memory_space<vmem>>, vector<1x32xf32>
    %cst_22 = arith.constant dense<0.000000e+00> : vector<16xf32>
    %36 = vector.multi_reduction <add>, %33, %cst_22 [1] : vector<16x32xf32> to vector<16xf32>
    %37 = vector.shape_cast %36 : vector<16xf32> to vector<16x1xf32>
    %cst_23 = arith.constant 3.200000e+01 : f32
    %38 = vector.broadcast %cst_23 : f32 to vector<16x1xf32>
    %39 = arith.divf %37, %38 : vector<16x1xf32>
    %40 = vector.broadcast %39 : vector<16x1xf32> to vector<16x32xf32>
    %41 = arith.subf %33, %40 : vector<16x32xf32>
    %42 = arith.mulf %41, %41 : vector<16x32xf32>
    %cst_24 = arith.constant dense<0.000000e+00> : vector<16xf32>
    %43 = vector.multi_reduction <add>, %42, %cst_24 [1] : vector<16x32xf32> to vector<16xf32>
    %44 = vector.shape_cast %43 : vector<16xf32> to vector<16x1xf32>
    %cst_25 = arith.constant 3.200000e+01 : f32
    %45 = vector.broadcast %cst_25 : f32 to vector<16x1xf32>
    %46 = arith.divf %44, %45 : vector<16x1xf32>
    %47 = vector.broadcast %39 : vector<16x1xf32> to vector<16x32xf32>
    %48 = arith.subf %33, %47 : vector<16x32xf32>
    %cst_26 = arith.constant 9.99999974E-6 : f32
    %49 = vector.broadcast %cst_26 : f32 to vector<16x1xf32>
    %50 = arith.addf %46, %49 : vector<16x1xf32>
    %51 = math.rsqrt %50 : vector<16x1xf32>
    %52 = vector.broadcast %51 : vector<16x1xf32> to vector<16x32xf32>
    %53 = arith.mulf %48, %52 : vector<16x32xf32>
    %54 = vector.broadcast %34 : vector<1x32xf32> to vector<16x32xf32>
    %55 = arith.mulf %53, %54 : vector<16x32xf32>
    %56 = vector.broadcast %35 : vector<1x32xf32> to vector<16x32xf32>
    %57 = arith.addf %55, %56 : vector<16x32xf32>
    %c0_27 = arith.constant 0 : index
    %c0_28 = arith.constant 0 : index
    %58 = vector.load %arg9[%c0_27, %c0_28] : memref<32x96xf32, #tpu.memory_space<vmem>>, vector<32x96xf32>
    %cst_29 = arith.constant dense<0.000000e+00> : vector<16x96xf32>
    %59 = tpu.matmul %57, %58, %cst_29 {dimension_numbers = #tpu.dot_dimension_numbers<[1], [0], [0], [1], [0, 0, 1, 1], [], []>} : vector<16x32xf32>, vector<32x96xf32>, vector<16x96xf32> -> vector<16x96xf32>
    %c0_30 = arith.constant 0 : index
    %c0_31 = arith.constant 0 : index
    %60 = vector.load %arg10[%c0_30, %c0_31] : memref<1x96xf32, #tpu.memory_space<vmem>>, vector<1x96xf32>
    %61 = vector.broadcast %60 : vector<1x96xf32> to vector<16x96xf32>
    %62 = arith.addf %59, %61 : vector<16x96xf32>
    %c0_32 = arith.constant 0 : index
    %c0_33 = arith.constant 0 : index
    %c0_34 = arith.constant 0 : index
    %63 = vector.load %arg11[%c0_32, %c0_33, %c0_34] : memref<1x16x96xf32, #tpu.memory_space<vmem>>, vector<1x16x96xf32>
    %64 = vector.shape_cast %63 : vector<1x16x96xf32> to vector<16x96xf32>
    %65 = vector.shape_cast %62 : vector<16x96xf32> to vector<1x16x96xf32>
    tpu.vector_store %arg11[%c0_32, %c0_33, %c0_34], %65 {strides = array<i32>} : memref<1x16x96xf32, #tpu.memory_space<vmem>>, vector<1x16x96xf32>,
    return
  }
  func.func @transform_0(%arg0: i32, %arg1: i32) -> (i32, i32) {
    %c0_i32 = arith.constant 0 : i32
    %c0_i32_0 = arith.constant 0 : i32
    return %arg1, %c0_i32 : i32, i32
  }
  func.func @transform_1(%arg0: i32, %arg1: i32) -> (i32, i32, i32) {
    %c0_i32 = arith.constant 0 : i32
    %c0_i32_0 = arith.constant 0 : i32
    %c0_i32_1 = arith.constant 0 : i32
    return %arg0, %c0_i32, %c0_i32_0 : i32, i32, i32
  }
  func.func @transform_2(%arg0: i32, %arg1: i32) -> (i32, i32, i32) {
    %c0_i32 = arith.constant 0 : i32
    %c0_i32_0 = arith.constant 0 : i32
    %c0_i32_1 = arith.constant 0 : i32
    return %arg0, %c0_i32, %c0_i32_0 : i32, i32, i32
  }
  func.func @transform_3(%arg0: i32, %arg1: i32) -> (i32, i32, i32) {
    %c0_i32 = arith.constant 0 : i32
    %c0_i32_0 = arith.constant 0 : i32
    %c0_i32_1 = arith.constant 0 : i32
    return %arg0, %c0_i32, %c0_i32_0 : i32, i32, i32
  }
  func.func @transform_4(%arg0: i32, %arg1: i32) -> (i32, i32, i32) {
    %c0_i32 = arith.constant 0 : i32
    %c0_i32_0 = arith.constant 0 : i32
    %c0_i32_1 = arith.constant 0 : i32
    return %arg0, %c0_i32, %c0_i32_0 : i32, i32, i32
  }
  func.func @transform_5(%arg0: i32, %arg1: i32) -> (i32, i32) {
    %c0_i32 = arith.constant 0 : i32
    %c0_i32_0 = arith.constant 0 : i32
    %c0_i32_1 = arith.constant 0 : i32
    return %c0_i32, %c0_i32_0 : i32, i32
  }
  func.func @transform_6(%arg0: i32, %arg1: i32) -> (i32, i32) {
    %c0_i32 = arith.constant 0 : i32
    %c0_i32_0 = arith.constant 0 : i32
    %c0_i32_1 = arith.constant 0 : i32
    return %c0_i32, %c0_i32_0 : i32, i32
  }
  func.func @transform_7(%arg0: i32, %arg1: i32) -> (i32, i32) {
    %c0_i32 = arith.constant 0 : i32
    %c0_i32_0 = arith.constant 0 : i32
    %c0_i32_1 = arith.constant 0 : i32
    return %c0_i32, %c0_i32_0 : i32, i32
  }
  func.func @transform_8(%arg0: i32, %arg1: i32) -> (i32, i32) {
    %c0_i32 = arith.constant 0 : i32
    %c0_i32_0 = arith.constant 0 : i32
    %c0_i32_1 = arith.constant 0 : i32
    return %c0_i32, %c0_i32_0 : i32, i32
  }
  func.func @transform_9(%arg0: i32, %arg1: i32) -> (i32, i32, i32) {
    %c0_i32 = arith.constant 0 : i32
    %c0_i32_0 = arith.constant 0 : i32
    return %arg0, %arg1, %c0_i32 : i32, i32, i32
  }
}

module attributes {stable_mosaic.version = 11 : i64} {
  func.func @_attn_kernel(%arg0: i32, %arg1: i32, %arg2: memref<3xf32, #tpu.memory_space<smem>>, %arg3: memref<1x8x32xf32, #tpu.memory_space<vmem>>, %arg4: memref<1x16x32xf32, #tpu.memory_space<vmem>>, %arg5: memref<1x16x32xf32, #tpu.memory_space<vmem>>, %arg6: memref<8x32xf32, #tpu.memory_space<vmem>>, %arg7: memref<8x32xf32, #tpu.memory_space<vmem>>) attributes {dimension_semantics = [#tpu.dimension_semantics<parallel>, #tpu.dimension_semantics<arbitrary>], iteration_bounds = array<i64: 2, 3>, scalar_prefetch = 0 : i64, scratch_operands = 1 : i64, tpu.core_type = #tpu.core_type<tc>, window_params = [{transform_indices = @transform_0, window_bounds = array<i64: 3>}, {transform_indices = @transform_1, window_bounds = array<i64: 1, 8, 32>}, {transform_indices = @transform_2, window_bounds = array<i64: 1, 16, 32>}, {transform_indices = @transform_3, window_bounds = array<i64: 1, 16, 32>}, {transform_indices = @transform_4, window_bounds = array<i64: 8, 32>}]} {
    %c0_i32 = arith.constant 0 : i32
    %0 = arith.cmpi eq, %arg1, %c0_i32 : i32
    %1 = arith.extui %0 : i1 to i32
    %c0_i32_0 = arith.constant 0 : i32
    %2 = arith.cmpi ne, %1, %c0_i32_0 : i32
    scf.if %2 {
      %cst_53 = arith.constant 0.000000e+00 : f32
      %156 = vector.broadcast %cst_53 : f32 to vector<8x32xf32>
      %c0_54 = arith.constant 0 : index
      %c0_55 = arith.constant 0 : index
      %157 = vector.load %arg7[%c0_54, %c0_55] : memref<8x32xf32, #tpu.memory_space<vmem>>, vector<8x32xf32>
      tpu.vector_store %arg7[%c0_54, %c0_55], %156 {strides = array<i32>} : memref<8x32xf32, #tpu.memory_space<vmem>>, vector<8x32xf32>,
    } else {
    }
    %c0 = arith.constant 0 : index
    %c0_1 = arith.constant 0 : index
    %c0_2 = arith.constant 0 : index
    %3 = vector.load %arg3[%c0, %c0_1, %c0_2] : memref<1x8x32xf32, #tpu.memory_space<vmem>>, vector<1x8x32xf32>
    %4 = vector.shape_cast %3 : vector<1x8x32xf32> to vector<8x32xf32>
    %c0_3 = arith.constant 0 : index
    %c0_4 = arith.constant 0 : index
    %c0_5 = arith.constant 0 : index
    %5 = vector.load %arg4[%c0_3, %c0_4, %c0_5] : memref<1x16x32xf32, #tpu.memory_space<vmem>>, vector<1x16x32xf32>
    %6 = vector.shape_cast %5 : vector<1x16x32xf32> to vector<16x32xf32>
    %c0_6 = arith.constant 0 : index
    %c0_7 = arith.constant 0 : index
    %c0_8 = arith.constant 0 : index
    %7 = vector.load %arg5[%c0_6, %c0_7, %c0_8] : memref<1x16x32xf32, #tpu.memory_space<vmem>>, vector<1x16x32xf32>
    %8 = vector.shape_cast %7 : vector<1x16x32xf32> to vector<16x32xf32>
    %9 = vector.extract_strided_slice %4 {offsets = [0, 0], sizes = [8, 4], strides = [1, 1]} : vector<8x32xf32> to vector<8x4xf32>
    %cst = arith.constant 5.000000e-01 : f32
    %10 = vector.broadcast %cst : f32 to vector<8x4xf32>
    %11 = arith.mulf %9, %10 : vector<8x4xf32>
    %12 = vector.extract_strided_slice %6 {offsets = [0, 0], sizes = [16, 4], strides = [1, 1]} : vector<16x32xf32> to vector<16x4xf32>
    %13 = vector.extract_strided_slice %8 {offsets = [0, 0], sizes = [16, 4], strides = [1, 1]} : vector<16x32xf32> to vector<16x4xf32>
    %cst_9 = arith.constant dense<0.000000e+00> : vector<8x16xf32>
    %14 = tpu.matmul %11, %12, %cst_9 {dimension_numbers = #tpu.dot_dimension_numbers<[1], [1], [0], [0], [0, 0, 1, 0], [], []>} : vector<8x4xf32>, vector<16x4xf32>, vector<8x16xf32> -> vector<8x16xf32>
    %cst_10 = arith.constant dense<0xFF800000> : vector<8xf32>
    %15 = vector.multi_reduction <maximumf>, %14, %cst_10 [1] : vector<8x16xf32> to vector<8xf32>
    %16 = vector.shape_cast %15 : vector<8xf32> to vector<8x1xf32>
    %17 = vector.broadcast %16 : vector<8x1xf32> to vector<8x16xf32>
    %18 = arith.subf %14, %17 : vector<8x16xf32>
    %19 = math.exp %18 : vector<8x16xf32>
    %cst_11 = arith.constant dense<0.000000e+00> : vector<8xf32>
    %20 = vector.multi_reduction <add>, %19, %cst_11 [1] : vector<8x16xf32> to vector<8xf32>
    %21 = vector.shape_cast %20 : vector<8xf32> to vector<8x1xf32>
    %22 = tpu.reciprocal %21 {approx = true} : vector<8x1xf32> -> vector<8x1xf32>
    %23 = vector.broadcast %22 : vector<8x1xf32> to vector<8x16xf32>
    %24 = arith.mulf %19, %23 : vector<8x16xf32>
    %cst_12 = arith.constant dense<0.000000e+00> : vector<8x4xf32>
    %25 = tpu.matmul %24, %13, %cst_12 {dimension_numbers = #tpu.dot_dimension_numbers<[1], [0], [0], [1], [0, 0, 1, 1], [], []>} : vector<8x16xf32>, vector<16x4xf32>, vector<8x4xf32> -> vector<8x4xf32>
    %26 = vector.extract_strided_slice %4 {offsets = [0, 4], sizes = [8, 4], strides = [1, 1]} : vector<8x32xf32> to vector<8x4xf32>
    %cst_13 = arith.constant 5.000000e-01 : f32
    %27 = vector.broadcast %cst_13 : f32 to vector<8x4xf32>
    %28 = arith.mulf %26, %27 : vector<8x4xf32>
    %29 = vector.extract_strided_slice %6 {offsets = [0, 4], sizes = [16, 4], strides = [1, 1]} : vector<16x32xf32> to vector<16x4xf32>
    %30 = vector.extract_strided_slice %8 {offsets = [0, 4], sizes = [16, 4], strides = [1, 1]} : vector<16x32xf32> to vector<16x4xf32>
    %cst_14 = arith.constant dense<0.000000e+00> : vector<8x16xf32>
    %31 = tpu.matmul %28, %29, %cst_14 {dimension_numbers = #tpu.dot_dimension_numbers<[1], [1], [0], [0], [0, 0, 1, 0], [], []>} : vector<8x4xf32>, vector<16x4xf32>, vector<8x16xf32> -> vector<8x16xf32>
    %cst_15 = arith.constant dense<0xFF800000> : vector<8xf32>
    %32 = vector.multi_reduction <maximumf>, %31, %cst_15 [1] : vector<8x16xf32> to vector<8xf32>
    %33 = vector.shape_cast %32 : vector<8xf32> to vector<8x1xf32>
    %34 = vector.broadcast %33 : vector<8x1xf32> to vector<8x16xf32>
    %35 = arith.subf %31, %34 : vector<8x16xf32>
    %36 = math.exp %35 : vector<8x16xf32>
    %cst_16 = arith.constant dense<0.000000e+00> : vector<8xf32>
    %37 = vector.multi_reduction <add>, %36, %cst_16 [1] : vector<8x16xf32> to vector<8xf32>
    %38 = vector.shape_cast %37 : vector<8xf32> to vector<8x1xf32>
    %39 = tpu.reciprocal %38 {approx = true} : vector<8x1xf32> -> vector<8x1xf32>
    %40 = vector.broadcast %39 : vector<8x1xf32> to vector<8x16xf32>
    %41 = arith.mulf %36, %40 : vector<8x16xf32>
    %cst_17 = arith.constant dense<0.000000e+00> : vector<8x4xf32>
    %42 = tpu.matmul %41, %30, %cst_17 {dimension_numbers = #tpu.dot_dimension_numbers<[1], [0], [0], [1], [0, 0, 1, 1], [], []>} : vector<8x16xf32>, vector<16x4xf32>, vector<8x4xf32> -> vector<8x4xf32>
    %43 = vector.extract_strided_slice %4 {offsets = [0, 8], sizes = [8, 4], strides = [1, 1]} : vector<8x32xf32> to vector<8x4xf32>
    %cst_18 = arith.constant 5.000000e-01 : f32
    %44 = vector.broadcast %cst_18 : f32 to vector<8x4xf32>
    %45 = arith.mulf %43, %44 : vector<8x4xf32>
    %46 = vector.extract_strided_slice %6 {offsets = [0, 8], sizes = [16, 4], strides = [1, 1]} : vector<16x32xf32> to vector<16x4xf32>
    %47 = vector.extract_strided_slice %8 {offsets = [0, 8], sizes = [16, 4], strides = [1, 1]} : vector<16x32xf32> to vector<16x4xf32>
    %cst_19 = arith.constant dense<0.000000e+00> : vector<8x16xf32>
    %48 = tpu.matmul %45, %46, %cst_19 {dimension_numbers = #tpu.dot_dimension_numbers<[1], [1], [0], [0], [0, 0, 1, 0], [], []>} : vector<8x4xf32>, vector<16x4xf32>, vector<8x16xf32> -> vector<8x16xf32>
    %cst_20 = arith.constant dense<0xFF800000> : vector<8xf32>
    %49 = vector.multi_reduction <maximumf>, %48, %cst_20 [1] : vector<8x16xf32> to vector<8xf32>
    %50 = vector.shape_cast %49 : vector<8xf32> to vector<8x1xf32>
    %51 = vector.broadcast %50 : vector<8x1xf32> to vector<8x16xf32>
    %52 = arith.subf %48, %51 : vector<8x16xf32>
    %53 = math.exp %52 : vector<8x16xf32>
    %cst_21 = arith.constant dense<0.000000e+00> : vector<8xf32>
    %54 = vector.multi_reduction <add>, %53, %cst_21 [1] : vector<8x16xf32> to vector<8xf32>
    %55 = vector.shape_cast %54 : vector<8xf32> to vector<8x1xf32>
    %56 = tpu.reciprocal %55 {approx = true} : vector<8x1xf32> -> vector<8x1xf32>
    %57 = vector.broadcast %56 : vector<8x1xf32> to vector<8x16xf32>
    %58 = arith.mulf %53, %57 : vector<8x16xf32>
    %cst_22 = arith.constant dense<0.000000e+00> : vector<8x4xf32>
    %59 = tpu.matmul %58, %47, %cst_22 {dimension_numbers = #tpu.dot_dimension_numbers<[1], [0], [0], [1], [0, 0, 1, 1], [], []>} : vector<8x16xf32>, vector<16x4xf32>, vector<8x4xf32> -> vector<8x4xf32>
    %60 = vector.extract_strided_slice %4 {offsets = [0, 12], sizes = [8, 4], strides = [1, 1]} : vector<8x32xf32> to vector<8x4xf32>
    %cst_23 = arith.constant 5.000000e-01 : f32
    %61 = vector.broadcast %cst_23 : f32 to vector<8x4xf32>
    %62 = arith.mulf %60, %61 : vector<8x4xf32>
    %63 = vector.extract_strided_slice %6 {offsets = [0, 12], sizes = [16, 4], strides = [1, 1]} : vector<16x32xf32> to vector<16x4xf32>
    %64 = vector.extract_strided_slice %8 {offsets = [0, 12], sizes = [16, 4], strides = [1, 1]} : vector<16x32xf32> to vector<16x4xf32>
    %cst_24 = arith.constant dense<0.000000e+00> : vector<8x16xf32>
    %65 = tpu.matmul %62, %63, %cst_24 {dimension_numbers = #tpu.dot_dimension_numbers<[1], [1], [0], [0], [0, 0, 1, 0], [], []>} : vector<8x4xf32>, vector<16x4xf32>, vector<8x16xf32> -> vector<8x16xf32>
    %cst_25 = arith.constant dense<0xFF800000> : vector<8xf32>
    %66 = vector.multi_reduction <maximumf>, %65, %cst_25 [1] : vector<8x16xf32> to vector<8xf32>
    %67 = vector.shape_cast %66 : vector<8xf32> to vector<8x1xf32>
    %68 = vector.broadcast %67 : vector<8x1xf32> to vector<8x16xf32>
    %69 = arith.subf %65, %68 : vector<8x16xf32>
    %70 = math.exp %69 : vector<8x16xf32>
    %cst_26 = arith.constant dense<0.000000e+00> : vector<8xf32>
    %71 = vector.multi_reduction <add>, %70, %cst_26 [1] : vector<8x16xf32> to vector<8xf32>
    %72 = vector.shape_cast %71 : vector<8xf32> to vector<8x1xf32>
    %73 = tpu.reciprocal %72 {approx = true} : vector<8x1xf32> -> vector<8x1xf32>
    %74 = vector.broadcast %73 : vector<8x1xf32> to vector<8x16xf32>
    %75 = arith.mulf %70, %74 : vector<8x16xf32>
    %cst_27 = arith.constant dense<0.000000e+00> : vector<8x4xf32>
    %76 = tpu.matmul %75, %64, %cst_27 {dimension_numbers = #tpu.dot_dimension_numbers<[1], [0], [0], [1], [0, 0, 1, 1], [], []>} : vector<8x16xf32>, vector<16x4xf32>, vector<8x4xf32> -> vector<8x4xf32>
    %77 = vector.extract_strided_slice %4 {offsets = [0, 16], sizes = [8, 4], strides = [1, 1]} : vector<8x32xf32> to vector<8x4xf32>
    %cst_28 = arith.constant 5.000000e-01 : f32
    %78 = vector.broadcast %cst_28 : f32 to vector<8x4xf32>
    %79 = arith.mulf %77, %78 : vector<8x4xf32>
    %80 = vector.extract_strided_slice %6 {offsets = [0, 16], sizes = [16, 4], strides = [1, 1]} : vector<16x32xf32> to vector<16x4xf32>
    %81 = vector.extract_strided_slice %8 {offsets = [0, 16], sizes = [16, 4], strides = [1, 1]} : vector<16x32xf32> to vector<16x4xf32>
    %cst_29 = arith.constant dense<0.000000e+00> : vector<8x16xf32>
    %82 = tpu.matmul %79, %80, %cst_29 {dimension_numbers = #tpu.dot_dimension_numbers<[1], [1], [0], [0], [0, 0, 1, 0], [], []>} : vector<8x4xf32>, vector<16x4xf32>, vector<8x16xf32> -> vector<8x16xf32>
    %cst_30 = arith.constant dense<0xFF800000> : vector<8xf32>
    %83 = vector.multi_reduction <maximumf>, %82, %cst_30 [1] : vector<8x16xf32> to vector<8xf32>
    %84 = vector.shape_cast %83 : vector<8xf32> to vector<8x1xf32>
    %85 = vector.broadcast %84 : vector<8x1xf32> to vector<8x16xf32>
    %86 = arith.subf %82, %85 : vector<8x16xf32>
    %87 = math.exp %86 : vector<8x16xf32>
    %cst_31 = arith.constant dense<0.000000e+00> : vector<8xf32>
    %88 = vector.multi_reduction <add>, %87, %cst_31 [1] : vector<8x16xf32> to vector<8xf32>
    %89 = vector.shape_cast %88 : vector<8xf32> to vector<8x1xf32>
    %90 = tpu.reciprocal %89 {approx = true} : vector<8x1xf32> -> vector<8x1xf32>
    %91 = vector.broadcast %90 : vector<8x1xf32> to vector<8x16xf32>
    %92 = arith.mulf %87, %91 : vector<8x16xf32>
    %cst_32 = arith.constant dense<0.000000e+00> : vector<8x4xf32>
    %93 = tpu.matmul %92, %81, %cst_32 {dimension_numbers = #tpu.dot_dimension_numbers<[1], [0], [0], [1], [0, 0, 1, 1], [], []>} : vector<8x16xf32>, vector<16x4xf32>, vector<8x4xf32> -> vector<8x4xf32>
    %94 = vector.extract_strided_slice %4 {offsets = [0, 20], sizes = [8, 4], strides = [1, 1]} : vector<8x32xf32> to vector<8x4xf32>
    %cst_33 = arith.constant 5.000000e-01 : f32
    %95 = vector.broadcast %cst_33 : f32 to vector<8x4xf32>
    %96 = arith.mulf %94, %95 : vector<8x4xf32>
    %97 = vector.extract_strided_slice %6 {offsets = [0, 20], sizes = [16, 4], strides = [1, 1]} : vector<16x32xf32> to vector<16x4xf32>
    %98 = vector.extract_strided_slice %8 {offsets = [0, 20], sizes = [16, 4], strides = [1, 1]} : vector<16x32xf32> to vector<16x4xf32>
    %cst_34 = arith.constant dense<0.000000e+00> : vector<8x16xf32>
    %99 = tpu.matmul %96, %97, %cst_34 {dimension_numbers = #tpu.dot_dimension_numbers<[1], [1], [0], [0], [0, 0, 1, 0], [], []>} : vector<8x4xf32>, vector<16x4xf32>, vector<8x16xf32> -> vector<8x16xf32>
    %cst_35 = arith.constant dense<0xFF800000> : vector<8xf32>
    %100 = vector.multi_reduction <maximumf>, %99, %cst_35 [1] : vector<8x16xf32> to vector<8xf32>
    %101 = vector.shape_cast %100 : vector<8xf32> to vector<8x1xf32>
    %102 = vector.broadcast %101 : vector<8x1xf32> to vector<8x16xf32>
    %103 = arith.subf %99, %102 : vector<8x16xf32>
    %104 = math.exp %103 : vector<8x16xf32>
    %cst_36 = arith.constant dense<0.000000e+00> : vector<8xf32>
    %105 = vector.multi_reduction <add>, %104, %cst_36 [1] : vector<8x16xf32> to vector<8xf32>
    %106 = vector.shape_cast %105 : vector<8xf32> to vector<8x1xf32>
    %107 = tpu.reciprocal %106 {approx = true} : vector<8x1xf32> -> vector<8x1xf32>
    %108 = vector.broadcast %107 : vector<8x1xf32> to vector<8x16xf32>
    %109 = arith.mulf %104, %108 : vector<8x16xf32>
    %cst_37 = arith.constant dense<0.000000e+00> : vector<8x4xf32>
    %110 = tpu.matmul %109, %98, %cst_37 {dimension_numbers = #tpu.dot_dimension_numbers<[1], [0], [0], [1], [0, 0, 1, 1], [], []>} : vector<8x16xf32>, vector<16x4xf32>, vector<8x4xf32> -> vector<8x4xf32>
    %111 = vector.extract_strided_slice %4 {offsets = [0, 24], sizes = [8, 4], strides = [1, 1]} : vector<8x32xf32> to vector<8x4xf32>
    %cst_38 = arith.constant 5.000000e-01 : f32
    %112 = vector.broadcast %cst_38 : f32 to vector<8x4xf32>
    %113 = arith.mulf %111, %112 : vector<8x4xf32>
    %114 = vector.extract_strided_slice %6 {offsets = [0, 24], sizes = [16, 4], strides = [1, 1]} : vector<16x32xf32> to vector<16x4xf32>
    %115 = vector.extract_strided_slice %8 {offsets = [0, 24], sizes = [16, 4], strides = [1, 1]} : vector<16x32xf32> to vector<16x4xf32>
    %cst_39 = arith.constant dense<0.000000e+00> : vector<8x16xf32>
    %116 = tpu.matmul %113, %114, %cst_39 {dimension_numbers = #tpu.dot_dimension_numbers<[1], [1], [0], [0], [0, 0, 1, 0], [], []>} : vector<8x4xf32>, vector<16x4xf32>, vector<8x16xf32> -> vector<8x16xf32>
    %cst_40 = arith.constant dense<0xFF800000> : vector<8xf32>
    %117 = vector.multi_reduction <maximumf>, %116, %cst_40 [1] : vector<8x16xf32> to vector<8xf32>
    %118 = vector.shape_cast %117 : vector<8xf32> to vector<8x1xf32>
    %119 = vector.broadcast %118 : vector<8x1xf32> to vector<8x16xf32>
    %120 = arith.subf %116, %119 : vector<8x16xf32>
    %121 = math.exp %120 : vector<8x16xf32>
    %cst_41 = arith.constant dense<0.000000e+00> : vector<8xf32>
    %122 = vector.multi_reduction <add>, %121, %cst_41 [1] : vector<8x16xf32> to vector<8xf32>
    %123 = vector.shape_cast %122 : vector<8xf32> to vector<8x1xf32>
    %124 = tpu.reciprocal %123 {approx = true} : vector<8x1xf32> -> vector<8x1xf32>
    %125 = vector.broadcast %124 : vector<8x1xf32> to vector<8x16xf32>
    %126 = arith.mulf %121, %125 : vector<8x16xf32>
    %cst_42 = arith.constant dense<0.000000e+00> : vector<8x4xf32>
    %127 = tpu.matmul %126, %115, %cst_42 {dimension_numbers = #tpu.dot_dimension_numbers<[1], [0], [0], [1], [0, 0, 1, 1], [], []>} : vector<8x16xf32>, vector<16x4xf32>, vector<8x4xf32> -> vector<8x4xf32>
    %128 = vector.extract_strided_slice %4 {offsets = [0, 28], sizes = [8, 4], strides = [1, 1]} : vector<8x32xf32> to vector<8x4xf32>
    %cst_43 = arith.constant 5.000000e-01 : f32
    %129 = vector.broadcast %cst_43 : f32 to vector<8x4xf32>
    %130 = arith.mulf %128, %129 : vector<8x4xf32>
    %131 = vector.extract_strided_slice %6 {offsets = [0, 28], sizes = [16, 4], strides = [1, 1]} : vector<16x32xf32> to vector<16x4xf32>
    %132 = vector.extract_strided_slice %8 {offsets = [0, 28], sizes = [16, 4], strides = [1, 1]} : vector<16x32xf32> to vector<16x4xf32>
    %cst_44 = arith.constant dense<0.000000e+00> : vector<8x16xf32>
    %133 = tpu.matmul %130, %131, %cst_44 {dimension_numbers = #tpu.dot_dimension_numbers<[1], [1], [0], [0], [0, 0, 1, 0], [], []>} : vector<8x4xf32>, vector<16x4xf32>, vector<8x16xf32> -> vector<8x16xf32>
    %cst_45 = arith.constant dense<0xFF800000> : vector<8xf32>
    %134 = vector.multi_reduction <maximumf>, %133, %cst_45 [1] : vector<8x16xf32> to vector<8xf32>
    %135 = vector.shape_cast %134 : vector<8xf32> to vector<8x1xf32>
    %136 = vector.broadcast %135 : vector<8x1xf32> to vector<8x16xf32>
    %137 = arith.subf %133, %136 : vector<8x16xf32>
    %138 = math.exp %137 : vector<8x16xf32>
    %cst_46 = arith.constant dense<0.000000e+00> : vector<8xf32>
    %139 = vector.multi_reduction <add>, %138, %cst_46 [1] : vector<8x16xf32> to vector<8xf32>
    %140 = vector.shape_cast %139 : vector<8xf32> to vector<8x1xf32>
    %141 = tpu.reciprocal %140 {approx = true} : vector<8x1xf32> -> vector<8x1xf32>
    %142 = vector.broadcast %141 : vector<8x1xf32> to vector<8x16xf32>
    %143 = arith.mulf %138, %142 : vector<8x16xf32>
    %cst_47 = arith.constant dense<0.000000e+00> : vector<8x4xf32>
    %144 = tpu.matmul %143, %132, %cst_47 {dimension_numbers = #tpu.dot_dimension_numbers<[1], [0], [0], [1], [0, 0, 1, 1], [], []>} : vector<8x16xf32>, vector<16x4xf32>, vector<8x4xf32> -> vector<8x4xf32>
    %145 = tpu.concatenate %25, %42, %59, %76, %93, %110, %127, %144 in 1 : vector<8x4xf32>, vector<8x4xf32>, vector<8x4xf32>, vector<8x4xf32>, vector<8x4xf32>, vector<8x4xf32>, vector<8x4xf32>, vector<8x4xf32> -> vector<8x32xf32>
    %c0_48 = arith.constant 0 : index
    %c0_49 = arith.constant 0 : index
    %146 = vector.load %arg7[%c0_48, %c0_49] : memref<8x32xf32, #tpu.memory_space<vmem>>, vector<8x32xf32>
    %147 = arith.index_cast %arg1 : i32 to index
    %148 = memref.load %arg2[%147] : memref<3xf32, #tpu.memory_space<smem>>
    %149 = vector.broadcast %148 : f32 to vector<8x32xf32>
    %150 = arith.mulf %149, %145 : vector<8x32xf32>
    %151 = arith.addf %146, %150 : vector<8x32xf32>
    %c0_50 = arith.constant 0 : index
    %c0_51 = arith.constant 0 : index
    %152 = vector.load %arg7[%c0_50, %c0_51] : memref<8x32xf32, #tpu.memory_space<vmem>>, vector<8x32xf32>
    tpu.vector_store %arg7[%c0_50, %c0_51], %151 {strides = array<i32>} : memref<8x32xf32, #tpu.memory_space<vmem>>, vector<8x32xf32>,
    %c2_i32 = arith.constant 2 : i32
    %153 = arith.cmpi eq, %arg1, %c2_i32 : i32
    %154 = arith.extui %153 : i1 to i32
    %c0_i32_52 = arith.constant 0 : i32
    %155 = arith.cmpi ne, %154, %c0_i32_52 : i32
    scf.if %155 {
      %c0_53 = arith.constant 0 : index
      %c0_54 = arith.constant 0 : index
      %156 = vector.load %arg7[%c0_53, %c0_54] : memref<8x32xf32, #tpu.memory_space<vmem>>, vector<8x32xf32>
      %c0_55 = arith.constant 0 : index
      %c0_56 = arith.constant 0 : index
      %157 = vector.load %arg6[%c0_55, %c0_56] : memref<8x32xf32, #tpu.memory_space<vmem>>, vector<8x32xf32>
      tpu.vector_store %arg6[%c0_55, %c0_56], %156 {strides = array<i32>} : memref<8x32xf32, #tpu.memory_space<vmem>>, vector<8x32xf32>,
    } else {
    }
    return
  }
  func.func @transform_0(%arg0: i32, %arg1: i32) -> i32 {
    %c0_i32 = arith.constant 0 : i32
    %c0_i32_0 = arith.constant 0 : i32
    return %c0_i32 : i32
  }
  func.func @transform_1(%arg0: i32, %arg1: i32) -> (i32, i32, i32) {
    %c0_i32 = arith.constant 0 : i32
    %c0_i32_0 = arith.constant 0 : i32
    return %arg1, %arg0, %c0_i32 : i32, i32, i32
  }
  func.func @transform_2(%arg0: i32, %arg1: i32) -> (i32, i32, i32) {
    %c0_i32 = arith.constant 0 : i32
    %c0_i32_0 = arith.constant 0 : i32
    return %arg1, %arg0, %c0_i32 : i32, i32, i32
  }
  func.func @transform_3(%arg0: i32, %arg1: i32) -> (i32, i32, i32) {
    %c0_i32 = arith.constant 0 : i32
    %c0_i32_0 = arith.constant 0 : i32
    return %arg1, %arg0, %c0_i32 : i32, i32, i32
  }
  func.func @transform_4(%arg0: i32, %arg1: i32) -> (i32, i32) {
    %c0_i32 = arith.constant 0 : i32
    %c0_i32_0 = arith.constant 0 : i32
    return %arg0, %c0_i32 : i32, i32
  }
}

module attributes {stable_mosaic.version = 11 : i64} {
  func.func @_out_ff_kernel(%arg0: i32, %arg1: memref<16x32xf32, #tpu.memory_space<vmem>>, %arg2: memref<32x32xf32, #tpu.memory_space<vmem>>, %arg3: memref<1x32xf32, #tpu.memory_space<vmem>>, %arg4: memref<1x32xf32, #tpu.memory_space<vmem>>, %arg5: memref<1x32xf32, #tpu.memory_space<vmem>>, %arg6: memref<32x128xf32, #tpu.memory_space<vmem>>, %arg7: memref<1x128xf32, #tpu.memory_space<vmem>>, %arg8: memref<32x128xf32, #tpu.memory_space<vmem>>, %arg9: memref<1x128xf32, #tpu.memory_space<vmem>>, %arg10: memref<128x32xf32, #tpu.memory_space<vmem>>, %arg11: memref<1x32xf32, #tpu.memory_space<vmem>>, %arg12: memref<16x32xf32, #tpu.memory_space<vmem>>) attributes {dimension_semantics = [#tpu.dimension_semantics<parallel>], iteration_bounds = array<i64: 3>, scalar_prefetch = 0 : i64, scratch_operands = 0 : i64, tpu.core_type = #tpu.core_type<tc>, window_params = [{transform_indices = @transform_0, window_bounds = array<i64: 16, 32>}, {pipeline_mode = #tpu.pipeline_mode<synchronous>, transform_indices = @transform_1, window_bounds = array<i64: 32, 32>}, {pipeline_mode = #tpu.pipeline_mode<synchronous>, transform_indices = @transform_2, window_bounds = array<i64: 1, 32>}, {pipeline_mode = #tpu.pipeline_mode<synchronous>, transform_indices = @transform_3, window_bounds = array<i64: 1, 32>}, {pipeline_mode = #tpu.pipeline_mode<synchronous>, transform_indices = @transform_4, window_bounds = array<i64: 1, 32>}, {pipeline_mode = #tpu.pipeline_mode<synchronous>, transform_indices = @transform_5, window_bounds = array<i64: 32, 128>}, {pipeline_mode = #tpu.pipeline_mode<synchronous>, transform_indices = @transform_6, window_bounds = array<i64: 1, 128>}, {pipeline_mode = #tpu.pipeline_mode<synchronous>, transform_indices = @transform_7, window_bounds = array<i64: 32, 128>}, {pipeline_mode = #tpu.pipeline_mode<synchronous>, transform_indices = @transform_8, window_bounds = array<i64: 1, 128>}, {pipeline_mode = #tpu.pipeline_mode<synchronous>, transform_indices = @transform_9, window_bounds = array<i64: 128, 32>}, {pipeline_mode = #tpu.pipeline_mode<synchronous>, transform_indices = @transform_10, window_bounds = array<i64: 1, 32>}, {transform_indices = @transform_11, window_bounds = array<i64: 16, 32>}]} {
    %c0 = arith.constant 0 : index
    %c0_0 = arith.constant 0 : index
    %0 = vector.load %arg1[%c0, %c0_0] : memref<16x32xf32, #tpu.memory_space<vmem>>, vector<16x32xf32>
    %c0_1 = arith.constant 0 : index
    %c0_2 = arith.constant 0 : index
    %1 = vector.load %arg2[%c0_1, %c0_2] : memref<32x32xf32, #tpu.memory_space<vmem>>, vector<32x32xf32>
    %cst = arith.constant dense<0.000000e+00> : vector<16x32xf32>
    %2 = tpu.matmul %0, %1, %cst {dimension_numbers = #tpu.dot_dimension_numbers<[1], [0], [0], [1], [0, 0, 1, 1], [], []>} : vector<16x32xf32>, vector<32x32xf32>, vector<16x32xf32> -> vector<16x32xf32>
    %c0_3 = arith.constant 0 : index
    %c0_4 = arith.constant 0 : index
    %3 = vector.load %arg3[%c0_3, %c0_4] : memref<1x32xf32, #tpu.memory_space<vmem>>, vector<1x32xf32>
    %4 = vector.broadcast %3 : vector<1x32xf32> to vector<16x32xf32>
    %5 = arith.addf %2, %4 : vector<16x32xf32>
    %c0_5 = arith.constant 0 : index
    %c0_6 = arith.constant 0 : index
    %6 = vector.load %arg4[%c0_5, %c0_6] : memref<1x32xf32, #tpu.memory_space<vmem>>, vector<1x32xf32>
    %c0_7 = arith.constant 0 : index
    %c0_8 = arith.constant 0 : index
    %7 = vector.load %arg5[%c0_7, %c0_8] : memref<1x32xf32, #tpu.memory_space<vmem>>, vector<1x32xf32>
    %cst_9 = arith.constant dense<0.000000e+00> : vector<16xf32>
    %8 = vector.multi_reduction <add>, %5, %cst_9 [1] : vector<16x32xf32> to vector<16xf32>
    %9 = vector.shape_cast %8 : vector<16xf32> to vector<16x1xf32>
    %cst_10 = arith.constant 3.200000e+01 : f32
    %10 = vector.broadcast %cst_10 : f32 to vector<16x1xf32>
    %11 = arith.divf %9, %10 : vector<16x1xf32>
    %12 = vector.broadcast %11 : vector<16x1xf32> to vector<16x32xf32>
    %13 = arith.subf %5, %12 : vector<16x32xf32>
    %14 = arith.mulf %13, %13 : vector<16x32xf32>
    %cst_11 = arith.constant dense<0.000000e+00> : vector<16xf32>
    %15 = vector.multi_reduction <add>, %14, %cst_11 [1] : vector<16x32xf32> to vector<16xf32>
    %16 = vector.shape_cast %15 : vector<16xf32> to vector<16x1xf32>
    %cst_12 = arith.constant 3.200000e+01 : f32
    %17 = vector.broadcast %cst_12 : f32 to vector<16x1xf32>
    %18 = arith.divf %16, %17 : vector<16x1xf32>
    %19 = vector.broadcast %11 : vector<16x1xf32> to vector<16x32xf32>
    %20 = arith.subf %5, %19 : vector<16x32xf32>
    %cst_13 = arith.constant 9.99999974E-6 : f32
    %21 = vector.broadcast %cst_13 : f32 to vector<16x1xf32>
    %22 = arith.addf %18, %21 : vector<16x1xf32>
    %23 = math.rsqrt %22 : vector<16x1xf32>
    %24 = vector.broadcast %23 : vector<16x1xf32> to vector<16x32xf32>
    %25 = arith.mulf %20, %24 : vector<16x32xf32>
    %26 = vector.broadcast %6 : vector<1x32xf32> to vector<16x32xf32>
    %27 = arith.mulf %25, %26 : vector<16x32xf32>
    %28 = vector.broadcast %7 : vector<1x32xf32> to vector<16x32xf32>
    %29 = arith.addf %27, %28 : vector<16x32xf32>
    %c0_14 = arith.constant 0 : index
    %c0_15 = arith.constant 0 : index
    %30 = vector.load %arg6[%c0_14, %c0_15] : memref<32x128xf32, #tpu.memory_space<vmem>>, vector<32x128xf32>
    %cst_16 = arith.constant dense<0.000000e+00> : vector<16x128xf32>
    %31 = tpu.matmul %29, %30, %cst_16 {dimension_numbers = #tpu.dot_dimension_numbers<[1], [0], [0], [1], [0, 0, 1, 1], [], []>} : vector<16x32xf32>, vector<32x128xf32>, vector<16x128xf32> -> vector<16x128xf32>
    %c0_17 = arith.constant 0 : index
    %c0_18 = arith.constant 0 : index
    %32 = vector.load %arg7[%c0_17, %c0_18] : memref<1x128xf32, #tpu.memory_space<vmem>>, vector<1x128xf32>
    %33 = vector.broadcast %32 : vector<1x128xf32> to vector<16x128xf32>
    %34 = arith.addf %31, %33 : vector<16x128xf32>
    %cst_19 = arith.constant 5.000000e-01 : f32
    %35 = vector.broadcast %cst_19 : f32 to vector<16x128xf32>
    %36 = arith.mulf %35, %34 : vector<16x128xf32>
    %cst_20 = arith.constant 0.707106769 : f32
    %37 = vector.broadcast %cst_20 : f32 to vector<16x128xf32>
    %38 = arith.mulf %34, %37 : vector<16x128xf32>
    %39 = math.erf %38 : vector<16x128xf32>
    %cst_21 = arith.constant 1.000000e+00 : f32
    %40 = vector.broadcast %cst_21 : f32 to vector<16x128xf32>
    %41 = arith.addf %40, %39 : vector<16x128xf32>
    %42 = arith.mulf %36, %41 : vector<16x128xf32>
    %c0_22 = arith.constant 0 : index
    %c0_23 = arith.constant 0 : index
    %43 = vector.load %arg8[%c0_22, %c0_23] : memref<32x128xf32, #tpu.memory_space<vmem>>, vector<32x128xf32>
    %cst_24 = arith.constant dense<0.000000e+00> : vector<16x128xf32>
    %44 = tpu.matmul %29, %43, %cst_24 {dimension_numbers = #tpu.dot_dimension_numbers<[1], [0], [0], [1], [0, 0, 1, 1], [], []>} : vector<16x32xf32>, vector<32x128xf32>, vector<16x128xf32> -> vector<16x128xf32>
    %c0_25 = arith.constant 0 : index
    %c0_26 = arith.constant 0 : index
    %45 = vector.load %arg9[%c0_25, %c0_26] : memref<1x128xf32, #tpu.memory_space<vmem>>, vector<1x128xf32>
    %46 = vector.broadcast %45 : vector<1x128xf32> to vector<16x128xf32>
    %47 = arith.addf %44, %46 : vector<16x128xf32>
    %cst_27 = arith.constant 5.000000e-01 : f32
    %48 = vector.broadcast %cst_27 : f32 to vector<16x128xf32>
    %49 = arith.mulf %48, %47 : vector<16x128xf32>
    %cst_28 = arith.constant 0.707106769 : f32
    %50 = vector.broadcast %cst_28 : f32 to vector<16x128xf32>
    %51 = arith.mulf %47, %50 : vector<16x128xf32>
    %52 = math.erf %51 : vector<16x128xf32>
    %cst_29 = arith.constant 1.000000e+00 : f32
    %53 = vector.broadcast %cst_29 : f32 to vector<16x128xf32>
    %54 = arith.addf %53, %52 : vector<16x128xf32>
    %55 = arith.mulf %49, %54 : vector<16x128xf32>
    %56 = arith.mulf %42, %55 : vector<16x128xf32>
    %c0_30 = arith.constant 0 : index
    %c0_31 = arith.constant 0 : index
    %57 = vector.load %arg10[%c0_30, %c0_31] : memref<128x32xf32, #tpu.memory_space<vmem>>, vector<128x32xf32>
    %cst_32 = arith.constant dense<0.000000e+00> : vector<16x32xf32>
    %58 = tpu.matmul %56, %57, %cst_32 {dimension_numbers = #tpu.dot_dimension_numbers<[1], [0], [0], [1], [0, 0, 1, 1], [], []>} : vector<16x128xf32>, vector<128x32xf32>, vector<16x32xf32> -> vector<16x32xf32>
    %c0_33 = arith.constant 0 : index
    %c0_34 = arith.constant 0 : index
    %59 = vector.load %arg11[%c0_33, %c0_34] : memref<1x32xf32, #tpu.memory_space<vmem>>, vector<1x32xf32>
    %60 = vector.broadcast %59 : vector<1x32xf32> to vector<16x32xf32>
    %61 = arith.addf %58, %60 : vector<16x32xf32>
    %62 = arith.addf %61, %5 : vector<16x32xf32>
    %c0_35 = arith.constant 0 : index
    %c0_36 = arith.constant 0 : index
    %63 = vector.load %arg12[%c0_35, %c0_36] : memref<16x32xf32, #tpu.memory_space<vmem>>, vector<16x32xf32>
    tpu.vector_store %arg12[%c0_35, %c0_36], %62 {strides = array<i32>} : memref<16x32xf32, #tpu.memory_space<vmem>>, vector<16x32xf32>,
    return
  }
  func.func @transform_0(%arg0: i32) -> (i32, i32) {
    %c0_i32 = arith.constant 0 : i32
    %c0_i32_0 = arith.constant 0 : i32
    return %arg0, %c0_i32 : i32, i32
  }
  func.func @transform_1(%arg0: i32) -> (i32, i32) {
    %c0_i32 = arith.constant 0 : i32
    %c0_i32_0 = arith.constant 0 : i32
    %c0_i32_1 = arith.constant 0 : i32
    return %c0_i32, %c0_i32_0 : i32, i32
  }
  func.func @transform_2(%arg0: i32) -> (i32, i32) {
    %c0_i32 = arith.constant 0 : i32
    %c0_i32_0 = arith.constant 0 : i32
    %c0_i32_1 = arith.constant 0 : i32
    return %c0_i32, %c0_i32_0 : i32, i32
  }
  func.func @transform_3(%arg0: i32) -> (i32, i32) {
    %c0_i32 = arith.constant 0 : i32
    %c0_i32_0 = arith.constant 0 : i32
    %c0_i32_1 = arith.constant 0 : i32
    return %c0_i32, %c0_i32_0 : i32, i32
  }
  func.func @transform_4(%arg0: i32) -> (i32, i32) {
    %c0_i32 = arith.constant 0 : i32
    %c0_i32_0 = arith.constant 0 : i32
    %c0_i32_1 = arith.constant 0 : i32
    return %c0_i32, %c0_i32_0 : i32, i32
  }
  func.func @transform_5(%arg0: i32) -> (i32, i32) {
    %c0_i32 = arith.constant 0 : i32
    %c0_i32_0 = arith.constant 0 : i32
    %c0_i32_1 = arith.constant 0 : i32
    return %c0_i32, %c0_i32_0 : i32, i32
  }
  func.func @transform_6(%arg0: i32) -> (i32, i32) {
    %c0_i32 = arith.constant 0 : i32
    %c0_i32_0 = arith.constant 0 : i32
    %c0_i32_1 = arith.constant 0 : i32
    return %c0_i32, %c0_i32_0 : i32, i32
  }
  func.func @transform_7(%arg0: i32) -> (i32, i32) {
    %c0_i32 = arith.constant 0 : i32
    %c0_i32_0 = arith.constant 0 : i32
    %c0_i32_1 = arith.constant 0 : i32
    return %c0_i32, %c0_i32_0 : i32, i32
  }
  func.func @transform_8(%arg0: i32) -> (i32, i32) {
    %c0_i32 = arith.constant 0 : i32
    %c0_i32_0 = arith.constant 0 : i32
    %c0_i32_1 = arith.constant 0 : i32
    return %c0_i32, %c0_i32_0 : i32, i32
  }
  func.func @transform_9(%arg0: i32) -> (i32, i32) {
    %c0_i32 = arith.constant 0 : i32
    %c0_i32_0 = arith.constant 0 : i32
    %c0_i32_1 = arith.constant 0 : i32
    return %c0_i32, %c0_i32_0 : i32, i32
  }
  func.func @transform_10(%arg0: i32) -> (i32, i32) {
    %c0_i32 = arith.constant 0 : i32
    %c0_i32_0 = arith.constant 0 : i32
    %c0_i32_1 = arith.constant 0 : i32
    return %c0_i32, %c0_i32_0 : i32, i32
  }
  func.func @transform_11(%arg0: i32) -> (i32, i32) {
    %c0_i32 = arith.constant 0 : i32
    %c0_i32_0 = arith.constant 0 : i32
    return %arg0, %c0_i32 : i32, i32
  }
}

module attributes {stable_mosaic.version = 11 : i64} {
  func.func @_attn_kernel(%arg0: i32, %arg1: i32, %arg2: memref<3xf32, #tpu.memory_space<smem>>, %arg3: memref<1x16x32xf32, #tpu.memory_space<vmem>>, %arg4: memref<1x8x32xf32, #tpu.memory_space<vmem>>, %arg5: memref<1x8x32xf32, #tpu.memory_space<vmem>>, %arg6: memref<16x32xf32, #tpu.memory_space<vmem>>, %arg7: memref<16x32xf32, #tpu.memory_space<vmem>>) attributes {dimension_semantics = [#tpu.dimension_semantics<parallel>, #tpu.dimension_semantics<arbitrary>], iteration_bounds = array<i64: 2, 3>, scalar_prefetch = 0 : i64, scratch_operands = 1 : i64, tpu.core_type = #tpu.core_type<tc>, window_params = [{transform_indices = @transform_0, window_bounds = array<i64: 3>}, {transform_indices = @transform_1, window_bounds = array<i64: 1, 16, 32>}, {transform_indices = @transform_2, window_bounds = array<i64: 1, 8, 32>}, {transform_indices = @transform_3, window_bounds = array<i64: 1, 8, 32>}, {transform_indices = @transform_4, window_bounds = array<i64: 16, 32>}]} {
    %c0_i32 = arith.constant 0 : i32
    %0 = arith.cmpi eq, %arg1, %c0_i32 : i32
    %1 = arith.extui %0 : i1 to i32
    %c0_i32_0 = arith.constant 0 : i32
    %2 = arith.cmpi ne, %1, %c0_i32_0 : i32
    scf.if %2 {
      %cst_53 = arith.constant 0.000000e+00 : f32
      %156 = vector.broadcast %cst_53 : f32 to vector<16x32xf32>
      %c0_54 = arith.constant 0 : index
      %c0_55 = arith.constant 0 : index
      %157 = vector.load %arg7[%c0_54, %c0_55] : memref<16x32xf32, #tpu.memory_space<vmem>>, vector<16x32xf32>
      tpu.vector_store %arg7[%c0_54, %c0_55], %156 {strides = array<i32>} : memref<16x32xf32, #tpu.memory_space<vmem>>, vector<16x32xf32>,
    } else {
    }
    %c0 = arith.constant 0 : index
    %c0_1 = arith.constant 0 : index
    %c0_2 = arith.constant 0 : index
    %3 = vector.load %arg3[%c0, %c0_1, %c0_2] : memref<1x16x32xf32, #tpu.memory_space<vmem>>, vector<1x16x32xf32>
    %4 = vector.shape_cast %3 : vector<1x16x32xf32> to vector<16x32xf32>
    %c0_3 = arith.constant 0 : index
    %c0_4 = arith.constant 0 : index
    %c0_5 = arith.constant 0 : index
    %5 = vector.load %arg4[%c0_3, %c0_4, %c0_5] : memref<1x8x32xf32, #tpu.memory_space<vmem>>, vector<1x8x32xf32>
    %6 = vector.shape_cast %5 : vector<1x8x32xf32> to vector<8x32xf32>
    %c0_6 = arith.constant 0 : index
    %c0_7 = arith.constant 0 : index
    %c0_8 = arith.constant 0 : index
    %7 = vector.load %arg5[%c0_6, %c0_7, %c0_8] : memref<1x8x32xf32, #tpu.memory_space<vmem>>, vector<1x8x32xf32>
    %8 = vector.shape_cast %7 : vector<1x8x32xf32> to vector<8x32xf32>
    %9 = vector.extract_strided_slice %4 {offsets = [0, 0], sizes = [16, 4], strides = [1, 1]} : vector<16x32xf32> to vector<16x4xf32>
    %cst = arith.constant 5.000000e-01 : f32
    %10 = vector.broadcast %cst : f32 to vector<16x4xf32>
    %11 = arith.mulf %9, %10 : vector<16x4xf32>
    %12 = vector.extract_strided_slice %6 {offsets = [0, 0], sizes = [8, 4], strides = [1, 1]} : vector<8x32xf32> to vector<8x4xf32>
    %13 = vector.extract_strided_slice %8 {offsets = [0, 0], sizes = [8, 4], strides = [1, 1]} : vector<8x32xf32> to vector<8x4xf32>
    %cst_9 = arith.constant dense<0.000000e+00> : vector<16x8xf32>
    %14 = tpu.matmul %11, %12, %cst_9 {dimension_numbers = #tpu.dot_dimension_numbers<[1], [1], [0], [0], [0, 0, 1, 0], [], []>} : vector<16x4xf32>, vector<8x4xf32>, vector<16x8xf32> -> vector<16x8xf32>
    %cst_10 = arith.constant dense<0xFF800000> : vector<16xf32>
    %15 = vector.multi_reduction <maximumf>, %14, %cst_10 [1] : vector<16x8xf32> to vector<16xf32>
    %16 = vector.shape_cast %15 : vector<16xf32> to vector<16x1xf32>
    %17 = vector.broadcast %16 : vector<16x1xf32> to vector<16x8xf32>
    %18 = arith.subf %14, %17 : vector<16x8xf32>
    %19 = math.exp %18 : vector<16x8xf32>
    %cst_11 = arith.constant dense<0.000000e+00> : vector<16xf32>
    %20 = vector.multi_reduction <add>, %19, %cst_11 [1] : vector<16x8xf32> to vector<16xf32>
    %21 = vector.shape_cast %20 : vector<16xf32> to vector<16x1xf32>
    %22 = tpu.reciprocal %21 {approx = true} : vector<16x1xf32> -> vector<16x1xf32>
    %23 = vector.broadcast %22 : vector<16x1xf32> to vector<16x8xf32>
    %24 = arith.mulf %19, %23 : vector<16x8xf32>
    %cst_12 = arith.constant dense<0.000000e+00> : vector<16x4xf32>
    %25 = tpu.matmul %24, %13, %cst_12 {dimension_numbers = #tpu.dot_dimension_numbers<[1], [0], [0], [1], [0, 0, 1, 1], [], []>} : vector<16x8xf32>, vector<8x4xf32>, vector<16x4xf32> -> vector<16x4xf32>
    %26 = vector.extract_strided_slice %4 {offsets = [0, 4], sizes = [16, 4], strides = [1, 1]} : vector<16x32xf32> to vector<16x4xf32>
    %cst_13 = arith.constant 5.000000e-01 : f32
    %27 = vector.broadcast %cst_13 : f32 to vector<16x4xf32>
    %28 = arith.mulf %26, %27 : vector<16x4xf32>
    %29 = vector.extract_strided_slice %6 {offsets = [0, 4], sizes = [8, 4], strides = [1, 1]} : vector<8x32xf32> to vector<8x4xf32>
    %30 = vector.extract_strided_slice %8 {offsets = [0, 4], sizes = [8, 4], strides = [1, 1]} : vector<8x32xf32> to vector<8x4xf32>
    %cst_14 = arith.constant dense<0.000000e+00> : vector<16x8xf32>
    %31 = tpu.matmul %28, %29, %cst_14 {dimension_numbers = #tpu.dot_dimension_numbers<[1], [1], [0], [0], [0, 0, 1, 0], [], []>} : vector<16x4xf32>, vector<8x4xf32>, vector<16x8xf32> -> vector<16x8xf32>
    %cst_15 = arith.constant dense<0xFF800000> : vector<16xf32>
    %32 = vector.multi_reduction <maximumf>, %31, %cst_15 [1] : vector<16x8xf32> to vector<16xf32>
    %33 = vector.shape_cast %32 : vector<16xf32> to vector<16x1xf32>
    %34 = vector.broadcast %33 : vector<16x1xf32> to vector<16x8xf32>
    %35 = arith.subf %31, %34 : vector<16x8xf32>
    %36 = math.exp %35 : vector<16x8xf32>
    %cst_16 = arith.constant dense<0.000000e+00> : vector<16xf32>
    %37 = vector.multi_reduction <add>, %36, %cst_16 [1] : vector<16x8xf32> to vector<16xf32>
    %38 = vector.shape_cast %37 : vector<16xf32> to vector<16x1xf32>
    %39 = tpu.reciprocal %38 {approx = true} : vector<16x1xf32> -> vector<16x1xf32>
    %40 = vector.broadcast %39 : vector<16x1xf32> to vector<16x8xf32>
    %41 = arith.mulf %36, %40 : vector<16x8xf32>
    %cst_17 = arith.constant dense<0.000000e+00> : vector<16x4xf32>
    %42 = tpu.matmul %41, %30, %cst_17 {dimension_numbers = #tpu.dot_dimension_numbers<[1], [0], [0], [1], [0, 0, 1, 1], [], []>} : vector<16x8xf32>, vector<8x4xf32>, vector<16x4xf32> -> vector<16x4xf32>
    %43 = vector.extract_strided_slice %4 {offsets = [0, 8], sizes = [16, 4], strides = [1, 1]} : vector<16x32xf32> to vector<16x4xf32>
    %cst_18 = arith.constant 5.000000e-01 : f32
    %44 = vector.broadcast %cst_18 : f32 to vector<16x4xf32>
    %45 = arith.mulf %43, %44 : vector<16x4xf32>
    %46 = vector.extract_strided_slice %6 {offsets = [0, 8], sizes = [8, 4], strides = [1, 1]} : vector<8x32xf32> to vector<8x4xf32>
    %47 = vector.extract_strided_slice %8 {offsets = [0, 8], sizes = [8, 4], strides = [1, 1]} : vector<8x32xf32> to vector<8x4xf32>
    %cst_19 = arith.constant dense<0.000000e+00> : vector<16x8xf32>
    %48 = tpu.matmul %45, %46, %cst_19 {dimension_numbers = #tpu.dot_dimension_numbers<[1], [1], [0], [0], [0, 0, 1, 0], [], []>} : vector<16x4xf32>, vector<8x4xf32>, vector<16x8xf32> -> vector<16x8xf32>
    %cst_20 = arith.constant dense<0xFF800000> : vector<16xf32>
    %49 = vector.multi_reduction <maximumf>, %48, %cst_20 [1] : vector<16x8xf32> to vector<16xf32>
    %50 = vector.shape_cast %49 : vector<16xf32> to vector<16x1xf32>
    %51 = vector.broadcast %50 : vector<16x1xf32> to vector<16x8xf32>
    %52 = arith.subf %48, %51 : vector<16x8xf32>
    %53 = math.exp %52 : vector<16x8xf32>
    %cst_21 = arith.constant dense<0.000000e+00> : vector<16xf32>
    %54 = vector.multi_reduction <add>, %53, %cst_21 [1] : vector<16x8xf32> to vector<16xf32>
    %55 = vector.shape_cast %54 : vector<16xf32> to vector<16x1xf32>
    %56 = tpu.reciprocal %55 {approx = true} : vector<16x1xf32> -> vector<16x1xf32>
    %57 = vector.broadcast %56 : vector<16x1xf32> to vector<16x8xf32>
    %58 = arith.mulf %53, %57 : vector<16x8xf32>
    %cst_22 = arith.constant dense<0.000000e+00> : vector<16x4xf32>
    %59 = tpu.matmul %58, %47, %cst_22 {dimension_numbers = #tpu.dot_dimension_numbers<[1], [0], [0], [1], [0, 0, 1, 1], [], []>} : vector<16x8xf32>, vector<8x4xf32>, vector<16x4xf32> -> vector<16x4xf32>
    %60 = vector.extract_strided_slice %4 {offsets = [0, 12], sizes = [16, 4], strides = [1, 1]} : vector<16x32xf32> to vector<16x4xf32>
    %cst_23 = arith.constant 5.000000e-01 : f32
    %61 = vector.broadcast %cst_23 : f32 to vector<16x4xf32>
    %62 = arith.mulf %60, %61 : vector<16x4xf32>
    %63 = vector.extract_strided_slice %6 {offsets = [0, 12], sizes = [8, 4], strides = [1, 1]} : vector<8x32xf32> to vector<8x4xf32>
    %64 = vector.extract_strided_slice %8 {offsets = [0, 12], sizes = [8, 4], strides = [1, 1]} : vector<8x32xf32> to vector<8x4xf32>
    %cst_24 = arith.constant dense<0.000000e+00> : vector<16x8xf32>
    %65 = tpu.matmul %62, %63, %cst_24 {dimension_numbers = #tpu.dot_dimension_numbers<[1], [1], [0], [0], [0, 0, 1, 0], [], []>} : vector<16x4xf32>, vector<8x4xf32>, vector<16x8xf32> -> vector<16x8xf32>
    %cst_25 = arith.constant dense<0xFF800000> : vector<16xf32>
    %66 = vector.multi_reduction <maximumf>, %65, %cst_25 [1] : vector<16x8xf32> to vector<16xf32>
    %67 = vector.shape_cast %66 : vector<16xf32> to vector<16x1xf32>
    %68 = vector.broadcast %67 : vector<16x1xf32> to vector<16x8xf32>
    %69 = arith.subf %65, %68 : vector<16x8xf32>
    %70 = math.exp %69 : vector<16x8xf32>
    %cst_26 = arith.constant dense<0.000000e+00> : vector<16xf32>
    %71 = vector.multi_reduction <add>, %70, %cst_26 [1] : vector<16x8xf32> to vector<16xf32>
    %72 = vector.shape_cast %71 : vector<16xf32> to vector<16x1xf32>
    %73 = tpu.reciprocal %72 {approx = true} : vector<16x1xf32> -> vector<16x1xf32>
    %74 = vector.broadcast %73 : vector<16x1xf32> to vector<16x8xf32>
    %75 = arith.mulf %70, %74 : vector<16x8xf32>
    %cst_27 = arith.constant dense<0.000000e+00> : vector<16x4xf32>
    %76 = tpu.matmul %75, %64, %cst_27 {dimension_numbers = #tpu.dot_dimension_numbers<[1], [0], [0], [1], [0, 0, 1, 1], [], []>} : vector<16x8xf32>, vector<8x4xf32>, vector<16x4xf32> -> vector<16x4xf32>
    %77 = vector.extract_strided_slice %4 {offsets = [0, 16], sizes = [16, 4], strides = [1, 1]} : vector<16x32xf32> to vector<16x4xf32>
    %cst_28 = arith.constant 5.000000e-01 : f32
    %78 = vector.broadcast %cst_28 : f32 to vector<16x4xf32>
    %79 = arith.mulf %77, %78 : vector<16x4xf32>
    %80 = vector.extract_strided_slice %6 {offsets = [0, 16], sizes = [8, 4], strides = [1, 1]} : vector<8x32xf32> to vector<8x4xf32>
    %81 = vector.extract_strided_slice %8 {offsets = [0, 16], sizes = [8, 4], strides = [1, 1]} : vector<8x32xf32> to vector<8x4xf32>
    %cst_29 = arith.constant dense<0.000000e+00> : vector<16x8xf32>
    %82 = tpu.matmul %79, %80, %cst_29 {dimension_numbers = #tpu.dot_dimension_numbers<[1], [1], [0], [0], [0, 0, 1, 0], [], []>} : vector<16x4xf32>, vector<8x4xf32>, vector<16x8xf32> -> vector<16x8xf32>
    %cst_30 = arith.constant dense<0xFF800000> : vector<16xf32>
    %83 = vector.multi_reduction <maximumf>, %82, %cst_30 [1] : vector<16x8xf32> to vector<16xf32>
    %84 = vector.shape_cast %83 : vector<16xf32> to vector<16x1xf32>
    %85 = vector.broadcast %84 : vector<16x1xf32> to vector<16x8xf32>
    %86 = arith.subf %82, %85 : vector<16x8xf32>
    %87 = math.exp %86 : vector<16x8xf32>
    %cst_31 = arith.constant dense<0.000000e+00> : vector<16xf32>
    %88 = vector.multi_reduction <add>, %87, %cst_31 [1] : vector<16x8xf32> to vector<16xf32>
    %89 = vector.shape_cast %88 : vector<16xf32> to vector<16x1xf32>
    %90 = tpu.reciprocal %89 {approx = true} : vector<16x1xf32> -> vector<16x1xf32>
    %91 = vector.broadcast %90 : vector<16x1xf32> to vector<16x8xf32>
    %92 = arith.mulf %87, %91 : vector<16x8xf32>
    %cst_32 = arith.constant dense<0.000000e+00> : vector<16x4xf32>
    %93 = tpu.matmul %92, %81, %cst_32 {dimension_numbers = #tpu.dot_dimension_numbers<[1], [0], [0], [1], [0, 0, 1, 1], [], []>} : vector<16x8xf32>, vector<8x4xf32>, vector<16x4xf32> -> vector<16x4xf32>
    %94 = vector.extract_strided_slice %4 {offsets = [0, 20], sizes = [16, 4], strides = [1, 1]} : vector<16x32xf32> to vector<16x4xf32>
    %cst_33 = arith.constant 5.000000e-01 : f32
    %95 = vector.broadcast %cst_33 : f32 to vector<16x4xf32>
    %96 = arith.mulf %94, %95 : vector<16x4xf32>
    %97 = vector.extract_strided_slice %6 {offsets = [0, 20], sizes = [8, 4], strides = [1, 1]} : vector<8x32xf32> to vector<8x4xf32>
    %98 = vector.extract_strided_slice %8 {offsets = [0, 20], sizes = [8, 4], strides = [1, 1]} : vector<8x32xf32> to vector<8x4xf32>
    %cst_34 = arith.constant dense<0.000000e+00> : vector<16x8xf32>
    %99 = tpu.matmul %96, %97, %cst_34 {dimension_numbers = #tpu.dot_dimension_numbers<[1], [1], [0], [0], [0, 0, 1, 0], [], []>} : vector<16x4xf32>, vector<8x4xf32>, vector<16x8xf32> -> vector<16x8xf32>
    %cst_35 = arith.constant dense<0xFF800000> : vector<16xf32>
    %100 = vector.multi_reduction <maximumf>, %99, %cst_35 [1] : vector<16x8xf32> to vector<16xf32>
    %101 = vector.shape_cast %100 : vector<16xf32> to vector<16x1xf32>
    %102 = vector.broadcast %101 : vector<16x1xf32> to vector<16x8xf32>
    %103 = arith.subf %99, %102 : vector<16x8xf32>
    %104 = math.exp %103 : vector<16x8xf32>
    %cst_36 = arith.constant dense<0.000000e+00> : vector<16xf32>
    %105 = vector.multi_reduction <add>, %104, %cst_36 [1] : vector<16x8xf32> to vector<16xf32>
    %106 = vector.shape_cast %105 : vector<16xf32> to vector<16x1xf32>
    %107 = tpu.reciprocal %106 {approx = true} : vector<16x1xf32> -> vector<16x1xf32>
    %108 = vector.broadcast %107 : vector<16x1xf32> to vector<16x8xf32>
    %109 = arith.mulf %104, %108 : vector<16x8xf32>
    %cst_37 = arith.constant dense<0.000000e+00> : vector<16x4xf32>
    %110 = tpu.matmul %109, %98, %cst_37 {dimension_numbers = #tpu.dot_dimension_numbers<[1], [0], [0], [1], [0, 0, 1, 1], [], []>} : vector<16x8xf32>, vector<8x4xf32>, vector<16x4xf32> -> vector<16x4xf32>
    %111 = vector.extract_strided_slice %4 {offsets = [0, 24], sizes = [16, 4], strides = [1, 1]} : vector<16x32xf32> to vector<16x4xf32>
    %cst_38 = arith.constant 5.000000e-01 : f32
    %112 = vector.broadcast %cst_38 : f32 to vector<16x4xf32>
    %113 = arith.mulf %111, %112 : vector<16x4xf32>
    %114 = vector.extract_strided_slice %6 {offsets = [0, 24], sizes = [8, 4], strides = [1, 1]} : vector<8x32xf32> to vector<8x4xf32>
    %115 = vector.extract_strided_slice %8 {offsets = [0, 24], sizes = [8, 4], strides = [1, 1]} : vector<8x32xf32> to vector<8x4xf32>
    %cst_39 = arith.constant dense<0.000000e+00> : vector<16x8xf32>
    %116 = tpu.matmul %113, %114, %cst_39 {dimension_numbers = #tpu.dot_dimension_numbers<[1], [1], [0], [0], [0, 0, 1, 0], [], []>} : vector<16x4xf32>, vector<8x4xf32>, vector<16x8xf32> -> vector<16x8xf32>
    %cst_40 = arith.constant dense<0xFF800000> : vector<16xf32>
    %117 = vector.multi_reduction <maximumf>, %116, %cst_40 [1] : vector<16x8xf32> to vector<16xf32>
    %118 = vector.shape_cast %117 : vector<16xf32> to vector<16x1xf32>
    %119 = vector.broadcast %118 : vector<16x1xf32> to vector<16x8xf32>
    %120 = arith.subf %116, %119 : vector<16x8xf32>
    %121 = math.exp %120 : vector<16x8xf32>
    %cst_41 = arith.constant dense<0.000000e+00> : vector<16xf32>
    %122 = vector.multi_reduction <add>, %121, %cst_41 [1] : vector<16x8xf32> to vector<16xf32>
    %123 = vector.shape_cast %122 : vector<16xf32> to vector<16x1xf32>
    %124 = tpu.reciprocal %123 {approx = true} : vector<16x1xf32> -> vector<16x1xf32>
    %125 = vector.broadcast %124 : vector<16x1xf32> to vector<16x8xf32>
    %126 = arith.mulf %121, %125 : vector<16x8xf32>
    %cst_42 = arith.constant dense<0.000000e+00> : vector<16x4xf32>
    %127 = tpu.matmul %126, %115, %cst_42 {dimension_numbers = #tpu.dot_dimension_numbers<[1], [0], [0], [1], [0, 0, 1, 1], [], []>} : vector<16x8xf32>, vector<8x4xf32>, vector<16x4xf32> -> vector<16x4xf32>
    %128 = vector.extract_strided_slice %4 {offsets = [0, 28], sizes = [16, 4], strides = [1, 1]} : vector<16x32xf32> to vector<16x4xf32>
    %cst_43 = arith.constant 5.000000e-01 : f32
    %129 = vector.broadcast %cst_43 : f32 to vector<16x4xf32>
    %130 = arith.mulf %128, %129 : vector<16x4xf32>
    %131 = vector.extract_strided_slice %6 {offsets = [0, 28], sizes = [8, 4], strides = [1, 1]} : vector<8x32xf32> to vector<8x4xf32>
    %132 = vector.extract_strided_slice %8 {offsets = [0, 28], sizes = [8, 4], strides = [1, 1]} : vector<8x32xf32> to vector<8x4xf32>
    %cst_44 = arith.constant dense<0.000000e+00> : vector<16x8xf32>
    %133 = tpu.matmul %130, %131, %cst_44 {dimension_numbers = #tpu.dot_dimension_numbers<[1], [1], [0], [0], [0, 0, 1, 0], [], []>} : vector<16x4xf32>, vector<8x4xf32>, vector<16x8xf32> -> vector<16x8xf32>
    %cst_45 = arith.constant dense<0xFF800000> : vector<16xf32>
    %134 = vector.multi_reduction <maximumf>, %133, %cst_45 [1] : vector<16x8xf32> to vector<16xf32>
    %135 = vector.shape_cast %134 : vector<16xf32> to vector<16x1xf32>
    %136 = vector.broadcast %135 : vector<16x1xf32> to vector<16x8xf32>
    %137 = arith.subf %133, %136 : vector<16x8xf32>
    %138 = math.exp %137 : vector<16x8xf32>
    %cst_46 = arith.constant dense<0.000000e+00> : vector<16xf32>
    %139 = vector.multi_reduction <add>, %138, %cst_46 [1] : vector<16x8xf32> to vector<16xf32>
    %140 = vector.shape_cast %139 : vector<16xf32> to vector<16x1xf32>
    %141 = tpu.reciprocal %140 {approx = true} : vector<16x1xf32> -> vector<16x1xf32>
    %142 = vector.broadcast %141 : vector<16x1xf32> to vector<16x8xf32>
    %143 = arith.mulf %138, %142 : vector<16x8xf32>
    %cst_47 = arith.constant dense<0.000000e+00> : vector<16x4xf32>
    %144 = tpu.matmul %143, %132, %cst_47 {dimension_numbers = #tpu.dot_dimension_numbers<[1], [0], [0], [1], [0, 0, 1, 1], [], []>} : vector<16x8xf32>, vector<8x4xf32>, vector<16x4xf32> -> vector<16x4xf32>
    %145 = tpu.concatenate %25, %42, %59, %76, %93, %110, %127, %144 in 1 : vector<16x4xf32>, vector<16x4xf32>, vector<16x4xf32>, vector<16x4xf32>, vector<16x4xf32>, vector<16x4xf32>, vector<16x4xf32>, vector<16x4xf32> -> vector<16x32xf32>
    %c0_48 = arith.constant 0 : index
    %c0_49 = arith.constant 0 : index
    %146 = vector.load %arg7[%c0_48, %c0_49] : memref<16x32xf32, #tpu.memory_space<vmem>>, vector<16x32xf32>
    %147 = arith.index_cast %arg1 : i32 to index
    %148 = memref.load %arg2[%147] : memref<3xf32, #tpu.memory_space<smem>>
    %149 = vector.broadcast %148 : f32 to vector<16x32xf32>
    %150 = arith.mulf %149, %145 : vector<16x32xf32>
    %151 = arith.addf %146, %150 : vector<16x32xf32>
    %c0_50 = arith.constant 0 : index
    %c0_51 = arith.constant 0 : index
    %152 = vector.load %arg7[%c0_50, %c0_51] : memref<16x32xf32, #tpu.memory_space<vmem>>, vector<16x32xf32>
    tpu.vector_store %arg7[%c0_50, %c0_51], %151 {strides = array<i32>} : memref<16x32xf32, #tpu.memory_space<vmem>>, vector<16x32xf32>,
    %c2_i32 = arith.constant 2 : i32
    %153 = arith.cmpi eq, %arg1, %c2_i32 : i32
    %154 = arith.extui %153 : i1 to i32
    %c0_i32_52 = arith.constant 0 : i32
    %155 = arith.cmpi ne, %154, %c0_i32_52 : i32
    scf.if %155 {
      %c0_53 = arith.constant 0 : index
      %c0_54 = arith.constant 0 : index
      %156 = vector.load %arg7[%c0_53, %c0_54] : memref<16x32xf32, #tpu.memory_space<vmem>>, vector<16x32xf32>
      %c0_55 = arith.constant 0 : index
      %c0_56 = arith.constant 0 : index
      %157 = vector.load %arg6[%c0_55, %c0_56] : memref<16x32xf32, #tpu.memory_space<vmem>>, vector<16x32xf32>
      tpu.vector_store %arg6[%c0_55, %c0_56], %156 {strides = array<i32>} : memref<16x32xf32, #tpu.memory_space<vmem>>, vector<16x32xf32>,
    } else {
    }
    return
  }
  func.func @transform_0(%arg0: i32, %arg1: i32) -> i32 {
    %c0_i32 = arith.constant 0 : i32
    %c0_i32_0 = arith.constant 0 : i32
    return %c0_i32 : i32
  }
  func.func @transform_1(%arg0: i32, %arg1: i32) -> (i32, i32, i32) {
    %c0_i32 = arith.constant 0 : i32
    %c0_i32_0 = arith.constant 0 : i32
    return %arg1, %arg0, %c0_i32 : i32, i32, i32
  }
  func.func @transform_2(%arg0: i32, %arg1: i32) -> (i32, i32, i32) {
    %c0_i32 = arith.constant 0 : i32
    %c0_i32_0 = arith.constant 0 : i32
    return %arg1, %arg0, %c0_i32 : i32, i32, i32
  }
  func.func @transform_3(%arg0: i32, %arg1: i32) -> (i32, i32, i32) {
    %c0_i32 = arith.constant 0 : i32
    %c0_i32_0 = arith.constant 0 : i32
    return %arg1, %arg0, %c0_i32 : i32, i32, i32
  }
  func.func @transform_4(%arg0: i32, %arg1: i32) -> (i32, i32) {
    %c0_i32 = arith.constant 0 : i32
    %c0_i32_0 = arith.constant 0 : i32
    return %arg0, %c0_i32 : i32, i32
  }
}

</mosaic_0001>

<llo_original>
// kernel: cross_attention_forward.7
$region0: #{cross_attention_forward.7}
  #allocation0 [shape = 'u32[]', space=smem, size = 0x4, offset = 0x4, fixed_abs, tag = 'smem constant byte address 0x4 - core index']
  #allocation1 [shape = 'u32[72,128]{1,0:T(1,128)}', space=vmem, size = 0x9000, scoped, tag = 'internal scratch']
  %s0 = inlined_call_operand.vmem [shape: f32[48,32], index: 0, kind: input, shape index: {}]
  %s1 = inlined_call_operand.vmem [shape: f32[32,32], index: 1, kind: input, shape index: {}]
  %s2 = inlined_call_operand.vmem [shape: f32[1,32], index: 2, kind: input, shape index: {}]
  %s3 = inlined_call_operand.vmem [shape: f32[1,32], index: 3, kind: input, shape index: {}]
  %s4 = inlined_call_operand.vmem [shape: f32[1,32], index: 4, kind: input, shape index: {}]
  %s5 = inlined_call_operand.vmem [shape: f32[32,128], index: 5, kind: input, shape index: {}]
  %s6 = inlined_call_operand.vmem [shape: f32[1,128], index: 6, kind: input, shape index: {}]
  %s7 = inlined_call_operand.vmem [shape: f32[32,128], index: 7, kind: input, shape index: {}]
  %s8 = inlined_call_operand.vmem [shape: f32[1,128], index: 8, kind: input, shape index: {}]
  %s9 = inlined_call_operand.vmem [shape: f32[128,32], index: 9, kind: input, shape index: {}]
  %s10 = inlined_call_operand.vmem [shape: f32[1,32], index: 10, kind: input, shape index: {}]
  %s11 = inlined_call_operand.vmem [shape: f32[48,32], index: 11, kind: output, shape index: {}]
  %s12 = sld [smem:[#allocation0]]
  $region77: #{cross_attention_forward.7} parent=0
    _
  %s14 = ssub.s32 1, %s12
  %s15 = scalar_select 0, %s14, %s12
  loop: start=0, step=1, limit=5
  $region2: #{cross_attention_forward.7} parent=0 // loop_pre_header
    _
  $region3: #{cross_attention_forward.7} parent=0 // loop_header
    %s17 = sphi 0, %s21
    %p18 = scmp.ge.s32.totalorder %s17, 5
    %s27 = sphi 0, %s29
    %s30 = sphi 0, %s27
    %s31 = sphi 0, %s30
    %s47 = sphi 0, %s31
    %s51 = sphi 0, %s51
    %s53 = sphi 0, %s51
    %s54 = sphi 0, %s53
    %s68 = sphi 0, %s54
    %s72 = sphi 0, %s72
    %s74 = sphi 0, %s72
    %s75 = sphi 0, %s74
    %s89 = sphi 0, %s75
    %s93 = sphi 0, %s93
    %s95 = sphi 0, %s93
    %s96 = sphi 0, %s95
    %s110 = sphi 0, %s96
    %s114 = sphi 0, %s114
    %s116 = sphi 0, %s114
    %s117 = sphi 0, %s116
    %s131 = sphi 0, %s117
    %s135 = sphi 0, %s135
    %s137 = sphi 0, %s135
    %s138 = sphi 0, %s137
    %s152 = sphi 0, %s138
    %s156 = sphi 0, %s156
    %s158 = sphi 0, %s156
    %s159 = sphi 0, %s158
    %s173 = sphi 0, %s159
    %s177 = sphi 0, %s177
    %s179 = sphi 0, %s177
    %s180 = sphi 0, %s179
    %s194 = sphi 0, %s180
    %s198 = sphi 0, %s198
    %s200 = sphi 0, %s198
    %s201 = sphi 0, %s200
    %s215 = sphi 0, %s201
    %s219 = sphi 0, %s219
    %s221 = sphi 0, %s219
    %s222 = sphi 0, %s221
    %s236 = sphi 0, %s222
    %s240 = sphi 0, %s240
    %s242 = sphi 0, %s240
    %s243 = sphi 0, %s242
    %s257 = sphi 0, %s243
    %s263 = sphi 0, %s265
    %s266 = sphi 0, %s263
    %s267 = sphi 0, %s266
    %s283 = sphi 0, %s267
  $region4: #{cross_attention_forward.7} parent=0 // loop_header_branch
    %20 = sbr.rel (%p18) target = $region8
  $region5: #{cross_attention_forward.7} parent=0 // loop_body
    %s22 = ssub.s32 %s17, 1
    %s23 = ssub.s32 %s17, 2
    %s24 = sadd.s32 %s17, 1
    %s25 = ssub.s32 %s17, %s24
    %p26 = scmp.eq.s32.totalorder %s25, 0
    %s28 = sadd.s32 %s27, 1
    %s29 = scalar_select %p26, %s27, %s28
    %p32 = pneg %p26
    %p33 = scmp.eq.s32.totalorder %s17, 2
    %p34 = por %p32, %p33
    %p35 = scmp.ne.s32.totalorder %s27, %s30
    %p36 = scmp.eq.s32.totalorder %s17, 0
    %p37 = por %p35, %p36
    %p38 = scmp.ne.s32.totalorder %s27, %s30
    %p39 = scmp.eq.s32.totalorder %s22, 2
    %p40 = por %p38, %p39
    %p41 = scmp.ne.s32.totalorder %s30, %s31
    %p42 = scmp.eq.s32.totalorder %s22, 0
    %p43 = por %p41, %p42
    %p44 = scmp.ne.s32.totalorder %s30, %s31
    %p45 = scmp.eq.s32.totalorder %s23, 2
    %p46 = por %p44, %p45
    %p48 = scmp.ne.s32.totalorder %s31, %s47
    %p49 = scmp.eq.s32.totalorder %s23, 0
    %p50 = por %p48, %p49
    %s52 = sadd.s32 %s51, 1
    %p55 = scmp.eq.s32.totalorder %s17, 2
    %p56 = scmp.ne.s32.totalorder %s51, %s53
    %p57 = scmp.eq.s32.totalorder %s17, 0
    %p58 = por %p56, %p57
    %p59 = scmp.ne.s32.totalorder %s51, %s53
    %p60 = scmp.eq.s32.totalorder %s22, 2
    %p61 = por %p59, %p60
    %p62 = scmp.ne.s32.totalorder %s53, %s54
    %p63 = scmp.eq.s32.totalorder %s22, 0
    %p64 = por %p62, %p63
    %p65 = scmp.ne.s32.totalorder %s53, %s54
    %p66 = scmp.eq.s32.totalorder %s23, 2
    %p67 = por %p65, %p66
    %p69 = scmp.ne.s32.totalorder %s54, %s68
    %p70 = scmp.eq.s32.totalorder %s23, 0
    %p71 = por %p69, %p70
    %s73 = sadd.s32 %s72, 1
    %p76 = scmp.eq.s32.totalorder %s17, 2
    %p77 = scmp.ne.s32.totalorder %s72, %s74
    %p78 = scmp.eq.s32.totalorder %s17, 0
    %p79 = por %p77, %p78
    %p80 = scmp.ne.s32.totalorder %s72, %s74
    %p81 = scmp.eq.s32.totalorder %s22, 2
    %p82 = por %p80, %p81
    %p83 = scmp.ne.s32.totalorder %s74, %s75
    %p84 = scmp.eq.s32.totalorder %s22, 0
    %p85 = por %p83, %p84
    %p86 = scmp.ne.s32.totalorder %s74, %s75
    %p87 = scmp.eq.s32.totalorder %s23, 2
    %p88 = por %p86, %p87
    %p90 = scmp.ne.s32.totalorder %s75, %s89
    %p91 = scmp.eq.s32.totalorder %s23, 0
    %p92 = por %p90, %p91
    %s94 = sadd.s32 %s93, 1
    %p97 = scmp.eq.s32.totalorder %s17, 2
    %p98 = scmp.ne.s32.totalorder %s93, %s95
    %p99 = scmp.eq.s32.totalorder %s17, 0
    %p100 = por %p98, %p99
    %p101 = scmp.ne.s32.totalorder %s93, %s95
    %p102 = scmp.eq.s32.totalorder %s22, 2
    %p103 = por %p101, %p102
    %p104 = scmp.ne.s32.totalorder %s95, %s96
    %p105 = scmp.eq.s32.totalorder %s22, 0
    %p106 = por %p104, %p105
    %p107 = scmp.ne.s32.totalorder %s95, %s96
    %p108 = scmp.eq.s32.totalorder %s23, 2
    %p109 = por %p107, %p108
    %p111 = scmp.ne.s32.totalorder %s96, %s110
    %p112 = scmp.eq.s32.totalorder %s23, 0
    %p113 = por %p111, %p112
    %s115 = sadd.s32 %s114, 1
    %p118 = scmp.eq.s32.totalorder %s17, 2
    %p119 = scmp.ne.s32.totalorder %s114, %s116
    %p120 = scmp.eq.s32.totalorder %s17, 0
    %p121 = por %p119, %p120
    %p122 = scmp.ne.s32.totalorder %s114, %s116
    %p123 = scmp.eq.s32.totalorder %s22, 2
    %p124 = por %p122, %p123
    %p125 = scmp.ne.s32.totalorder %s116, %s117
    %p126 = scmp.eq.s32.totalorder %s22, 0
    %p127 = por %p125, %p126
    %p128 = scmp.ne.s32.totalorder %s116, %s117
    %p129 = scmp.eq.s32.totalorder %s23, 2
    %p130 = por %p128, %p129
    %p132 = scmp.ne.s32.totalorder %s117, %s131
    %p133 = scmp.eq.s32.totalorder %s23, 0
    %p134 = por %p132, %p133
    %s136 = sadd.s32 %s135, 1
    %p139 = scmp.eq.s32.totalorder %s17, 2
    %p140 = scmp.ne.s32.totalorder %s135, %s137
    %p141 = scmp.eq.s32.totalorder %s17, 0
    %p142 = por %p140, %p141
    %p143 = scmp.ne.s32.totalorder %s135, %s137
    %p144 = scmp.eq.s32.totalorder %s22, 2
    %p145 = por %p143, %p144
    %p146 = scmp.ne.s32.totalorder %s137, %s138
    %p147 = scmp.eq.s32.totalorder %s22, 0
    %p148 = por %p146, %p147
    %p149 = scmp.ne.s32.totalorder %s137, %s138
    %p150 = scmp.eq.s32.totalorder %s23, 2
    %p151 = por %p149, %p150
    %p153 = scmp.ne.s32.totalorder %s138, %s152
    %p154 = scmp.eq.s32.totalorder %s23, 0
    %p155 = por %p153, %p154
    %s157 = sadd.s32 %s156, 1
    %p160 = scmp.eq.s32.totalorder %s17, 2
    %p161 = scmp.ne.s32.totalorder %s156, %s158
    %p162 = scmp.eq.s32.totalorder %s17, 0
    %p163 = por %p161, %p162
    %p164 = scmp.ne.s32.totalorder %s156, %s158
    %p165 = scmp.eq.s32.totalorder %s22, 2
    %p166 = por %p164, %p165
    %p167 = scmp.ne.s32.totalorder %s158, %s159
    %p168 = scmp.eq.s32.totalorder %s22, 0
    %p169 = por %p167, %p168
    %p170 = scmp.ne.s32.totalorder %s158, %s159
    %p171 = scmp.eq.s32.totalorder %s23, 2
    %p172 = por %p170, %p171
    %p174 = scmp.ne.s32.totalorder %s159, %s173
    %p175 = scmp.eq.s32.totalorder %s23, 0
    %p176 = por %p174, %p175
    %s178 = sadd.s32 %s177, 1
    %p181 = scmp.eq.s32.totalorder %s17, 2
    %p182 = scmp.ne.s32.totalorder %s177, %s179
    %p183 = scmp.eq.s32.totalorder %s17, 0
    %p184 = por %p182, %p183
    %p185 = scmp.ne.s32.totalorder %s177, %s179
    %p186 = scmp.eq.s32.totalorder %s22, 2
    %p187 = por %p185, %p186
    %p188 = scmp.ne.s32.totalorder %s179, %s180
    %p189 = scmp.eq.s32.totalorder %s22, 0
    %p190 = por %p188, %p189
    %p191 = scmp.ne.s32.totalorder %s179, %s180
    %p192 = scmp.eq.s32.totalorder %s23, 2
    %p193 = por %p191, %p192
    %p195 = scmp.ne.s32.totalorder %s180, %s194
    %p196 = scmp.eq.s32.totalorder %s23, 0
    %p197 = por %p195, %p196
    %s199 = sadd.s32 %s198, 1
    %p202 = scmp.eq.s32.totalorder %s17, 2
    %p203 = scmp.ne.s32.totalorder %s198, %s200
    %p204 = scmp.eq.s32.totalorder %s17, 0
    %p205 = por %p203, %p204
    %p206 = scmp.ne.s32.totalorder %s198, %s200
    %p207 = scmp.eq.s32.totalorder %s22, 2
    %p208 = por %p206, %p207
    %p209 = scmp.ne.s32.totalorder %s200, %s201
    %p210 = scmp.eq.s32.totalorder %s22, 0
    %p211 = por %p209, %p210
    %p212 = scmp.ne.s32.totalorder %s200, %s201
    %p213 = scmp.eq.s32.totalorder %s23, 2
    %p214 = por %p212, %p213
    %p216 = scmp.ne.s32.totalorder %s201, %s215
    %p217 = scmp.eq.s32.totalorder %s23, 0
    %p218 = por %p216, %p217
    %s220 = sadd.s32 %s219, 1
    %p223 = scmp.eq.s32.totalorder %s17, 2
    %p224 = scmp.ne.s32.totalorder %s219, %s221
    %p225 = scmp.eq.s32.totalorder %s17, 0
    %p226 = por %p224, %p225
    %p227 = scmp.ne.s32.totalorder %s219, %s221
    %p228 = scmp.eq.s32.totalorder %s22, 2
    %p229 = por %p227, %p228
    %p230 = scmp.ne.s32.totalorder %s221, %s222
    %p231 = scmp.eq.s32.totalorder %s22, 0
    %p232 = por %p230, %p231
    %p233 = scmp.ne.s32.totalorder %s221, %s222
    %p234 = scmp.eq.s32.totalorder %s23, 2
    %p235 = por %p233, %p234
    %p237 = scmp.ne.s32.totalorder %s222, %s236
    %p238 = scmp.eq.s32.totalorder %s23, 0
    %p239 = por %p237, %p238
    %s241 = sadd.s32 %s240, 1
    %p244 = scmp.eq.s32.totalorder %s17, 2
    %p245 = scmp.ne.s32.totalorder %s240, %s242
    %p246 = scmp.eq.s32.totalorder %s17, 0
    %p247 = por %p245, %p246
    %p248 = scmp.ne.s32.totalorder %s240, %s242
    %p249 = scmp.eq.s32.totalorder %s22, 2
    %p250 = por %p248, %p249
    %p251 = scmp.ne.s32.totalorder %s242, %s243
    %p252 = scmp.eq.s32.totalorder %s22, 0
    %p253 = por %p251, %p252
    %p254 = scmp.ne.s32.totalorder %s242, %s243
    %p255 = scmp.eq.s32.totalorder %s23, 2
    %p256 = por %p254, %p255
    %p258 = scmp.ne.s32.totalorder %s243, %s257
    %p259 = scmp.eq.s32.totalorder %s23, 0
    %p260 = por %p258, %p259
    %s261 = ssub.s32 %s17, %s24
    %p262 = scmp.eq.s32.totalorder %s261, 0
    %s264 = sadd.s32 %s263, 1
    %s265 = scalar_select %p262, %s263, %s264
    %p268 = pneg %p262
    %p269 = scmp.eq.s32.totalorder %s17, 2
    %p270 = por %p268, %p269
    %p271 = scmp.ne.s32.totalorder %s263, %s266
    %p272 = scmp.eq.s32.totalorder %s17, 0
    %p273 = por %p271, %p272
    %p274 = scmp.ne.s32.totalorder %s263, %s266
    %p275 = scmp.eq.s32.totalorder %s22, 2
    %p276 = por %p274, %p275
    %p277 = scmp.ne.s32.totalorder %s266, %s267
    %p278 = scmp.eq.s32.totalorder %s22, 0
    %p279 = por %p277, %p278
    %p280 = scmp.ne.s32.totalorder %s266, %s267
    %p281 = scmp.eq.s32.totalorder %s23, 2
    %p282 = por %p280, %p281
    %p284 = scmp.ne.s32.totalorder %s267, %s283
    %p285 = scmp.eq.s32.totalorder %s23, 0
    %p286 = por %p284, %p285
    %p287 = scmp.le.s32.totalorder 1, %s17
    %p288 = scmp.lt.s32.totalorder %s17, 4
    %p289 = pnand %p287, %p288
    %p290 = pneg %p289
    // Predicated region
    $region9: #{cross_attention_forward.7} parent=5 // pred_check
      _
    $region10: #{cross_attention_forward.7} parent=5 // pred_check_branch
      %292 = sbr.rel (%p289) target = $region12
    $region11: #{cross_attention_forward.7} parent=5 // pred_region
      %s293 = ssub.s32 %s17, 1
      // Predicated region
      $region13: #{cross_attention_forward.7} parent=11 // pred_check
        %p294 = pneg %p64
      $region14: #{cross_attention_forward.7} parent=11 // pred_check_branch
        %296 = sbr.rel (%p294) target = $region16
      $region15: #{cross_attention_forward.7} parent=11 // pred_region
        _
      $region16: #{cross_attention_forward.7} parent=11 // pred_fallthru
        _
      // Predicated region
      $region17: #{cross_attention_forward.7} parent=11 // pred_check
        %p297 = pneg %p85
      $region18: #{cross_attention_forward.7} parent=11 // pred_check_branch
        %299 = sbr.rel (%p297) target = $region20
      $region19: #{cross_attention_forward.7} parent=11 // pred_region
        _
      $region20: #{cross_attention_forward.7} parent=11 // pred_fallthru
        _
      // Predicated region
      $region21: #{cross_attention_forward.7} parent=11 // pred_check
        %p300 = pneg %p106
      $region22: #{cross_attention_forward.7} parent=11 // pred_check_branch
        %302 = sbr.rel (%p300) target = $region24
      $region23: #{cross_attention_forward.7} parent=11 // pred_region
        _
      $region24: #{cross_attention_forward.7} parent=11 // pred_fallthru
        _
      // Predicated region
      $region25: #{cross_attention_forward.7} parent=11 // pred_check
        %p303 = pneg %p127
      $region26: #{cross_attention_forward.7} parent=11 // pred_check_branch
        %305 = sbr.rel (%p303) target = $region28
      $region27: #{cross_attention_forward.7} parent=11 // pred_region
        _
      $region28: #{cross_attention_forward.7} parent=11 // pred_fallthru
        _
      // Predicated region
      $region29: #{cross_attention_forward.7} parent=11 // pred_check
        %p306 = pneg %p148
      $region30: #{cross_attention_forward.7} parent=11 // pred_check_branch
        %308 = sbr.rel (%p306) target = $region32
      $region31: #{cross_attention_forward.7} parent=11 // pred_region
        _
      $region32: #{cross_attention_forward.7} parent=11 // pred_fallthru
        _
      // Predicated region
      $region33: #{cross_attention_forward.7} parent=11 // pred_check
        %p309 = pneg %p169
      $region34: #{cross_attention_forward.7} parent=11 // pred_check_branch
        %311 = sbr.rel (%p309) target = $region36
      $region35: #{cross_attention_forward.7} parent=11 // pred_region
        _
      $region36: #{cross_attention_forward.7} parent=11 // pred_fallthru
        _
      // Predicated region
      $region37: #{cross_attention_forward.7} parent=11 // pred_check
        %p312 = pneg %p190
      $region38: #{cross_attention_forward.7} parent=11 // pred_check_branch
        %314 = sbr.rel (%p312) target = $region40
      $region39: #{cross_attention_forward.7} parent=11 // pred_region
        _
      $region40: #{cross_attention_forward.7} parent=11 // pred_fallthru
        _
      // Predicated region
      $region41: #{cross_attention_forward.7} parent=11 // pred_check
        %p315 = pneg %p211
      $region42: #{cross_attention_forward.7} parent=11 // pred_check_branch
        %317 = sbr.rel (%p315) target = $region44
      $region43: #{cross_attention_forward.7} parent=11 // pred_region
        _
      $region44: #{cross_attention_forward.7} parent=11 // pred_fallthru
        _
      // Predicated region
      $region45: #{cross_attention_forward.7} parent=11 // pred_check
        %p318 = pneg %p232
      $region46: #{cross_attention_forward.7} parent=11 // pred_check_branch
        %320 = sbr.rel (%p318) target = $region48
      $region47: #{cross_attention_forward.7} parent=11 // pred_region
        _
      $region48: #{cross_attention_forward.7} parent=11 // pred_fallthru
        _
      // Predicated region
      $region49: #{cross_attention_forward.7} parent=11 // pred_check
        %p321 = pneg %p253
      $region50: #{cross_attention_forward.7} parent=11 // pred_check_branch
        %323 = sbr.rel (%p321) target = $region52
      $region51: #{cross_attention_forward.7} parent=11 // pred_region
        _
      $region52: #{cross_attention_forward.7} parent=11 // pred_fallthru
        _
    $region12: #{cross_attention_forward.7} parent=5 // pred_fallthru
      _
    %p324 = scmp.lt.s32.totalorder %s17, 3
    // Predicated region
    $region53: #{cross_attention_forward.7} parent=5 // pred_check
      %p325 = pneg %p324
    $region54: #{cross_attention_forward.7} parent=5 // pred_check_branch
      %327 = sbr.rel (%p325) target = $region56
    $region55: #{cross_attention_forward.7} parent=5 // pred_region
      // Predicated region
      $region57: #{cross_attention_forward.7} parent=55 // pred_check
        %p328 = pneg %p37
      $region58: #{cross_attention_forward.7} parent=55 // pred_check_branch
        %330 = sbr.rel (%p328) target = $region60
      $region59: #{cross_attention_forward.7} parent=55 // pred_region
        %s331 = smul.u32 2, %s17
        %p332 = scmp.lt.s32.totalorder %s331, 5
        %s333 = scalar_select %p332, %s331, 5
        %s334 = smul.addr %s333, 8
        %s335 = scalar_lea.vmem %s0, %s334
        %s336 = smul.u32 2, %s17
      $region60: #{cross_attention_forward.7} parent=55 // pred_fallthru
        _
    $region56: #{cross_attention_forward.7} parent=5 // pred_fallthru
      _
    %p337 = scmp.le.s32.totalorder 1, %s17
    %p338 = scmp.lt.s32.totalorder %s17, 4
    %p339 = pnand %p337, %p338
    %p340 = pneg %p339
    // Predicated region
    $region61: #{cross_attention_forward.7} parent=5 // pred_check
      _
    $region62: #{cross_attention_forward.7} parent=5 // pred_check_branch
      %342 = sbr.rel (%p339) target = $region64
    $region63: #{cross_attention_forward.7} parent=5 // pred_region
      %s343 = ssub.s32 %s17, 1
      %s344 = smul.u32 2, %s22
      %p345 = scmp.lt.s32.totalorder %s344, 5
      %s346 = scalar_select %p345, %s344, 5
      %s347 = smul.addr %s346, 8
      %s348 = scalar_lea.vmem %s0, %s347
      %p349 = pneg %p43
      %p350 = pneg %p40
      %p351 = pneg %p64
      %p352 = pneg %p61
      %p353 = pneg %p85
      %p354 = pneg %p82
      %p355 = pneg %p106
      %p356 = pneg %p103
      %p357 = pneg %p127
      %p358 = pneg %p124
      %p359 = pneg %p148
      %p360 = pneg %p145
      %p361 = pneg %p169
      %p362 = pneg %p166
      %p363 = pneg %p190
      %p364 = pneg %p187
      %p365 = pneg %p211
      %p366 = pneg %p208
      %p367 = pneg %p232
      %p368 = pneg %p229
      %p369 = pneg %p253
      %p370 = pneg %p250
      %p371 = pneg %p279
      %p372 = pneg %p276
      %s373 = smul.u32 2, %s22
      %p374 = scmp.lt.s32.totalorder %s373, 5
      %s375 = scalar_select %p374, %s373, 5
      %s376 = smul.addr %s375, 8
      %s377 = scalar_lea.vmem %s11, %s376
      %s378 = smul.u32 2, %s22
      %p379 = scmp.lt.s32.totalorder %s378, 5
      %s380 = scalar_select %p379, %s378, 5
      %s381 = smul.addr %s380, 8
      %s382 = scalar_lea.vmem %s0, %s381
      %s383 = smul.u32 2, %s22
      %s384 = smul.u32 2, %s22
      %p385 = scmp.lt.s32.totalorder %s384, 5
      %s386 = scalar_select %p385, %s384, 5
      %s387 = smul.addr %s386, 8
      %s388 = scalar_lea.vmem %s11, %s387
      %s389 = smul.u32 2, %s22
      %v390 = vld [vmem:[%s382] sm:$0xff]
      %v391 = vld [vmem:[%s382 + $0x8] sm:$0xff]
      %v392 = vld [vmem:[%s1] sm:$0xff]
      %v393 = vld [vmem:[%s1 + $0x8] sm:$0xff]
      %v394 = vld [vmem:[%s1 + $0x10] sm:$0xff]
      %v395 = vld [vmem:[%s1 + $0x18] sm:$0xff]
      %v396 = vld [vmem:[%s2] sm:$0x1]
      %v398 = vperm.slane %v396, 0
      %vm400 = vcmask 261120
      %v402 = vsel %vm400, %v390, 0
      %v405 = vsel %vm400, %v391, 0
      %407 = vmatpush.msra.mxu0 0.0
      %408 = vmatpush.msra.mxu0 0.0
      %409 = vmatpush.msra.mxu0 0.0
      %410 = vmatpush.msra.mxu0 0.0
      %411 = vmatpush.msra.mxu0 0.0
      %412 = vmatpush.msra.mxu0 0.0
      %413 = vmatpush.msra.mxu0 0.0
      %414 = vmatpush.msra.mxu0 0.0
      %415 = vmatpush.msra.mxu0 0.0
      %416 = vmatpush.msra.mxu0 0.0
      %417 = vmatpush.msra.mxu0 0.0
      %418 = vmatpush.msra.mxu0 0.0
      %419 = vmatpush.msra.mxu0 %v395
      %420 = vmatpush.msra.mxu0 %v394
      %421 = vmatpush.msra.mxu0 %v393
      %422 = vmatpush.msra.mxu0 %v392
      %423 = vmatmul.f32.gmra.mxu0 %v402
      %v424 = vpop.f32.mrf.mxu0
      %v425 = vadd.f32 %v398, %v424
      %426 = vmatmul.f32.gmra.mxu0 %v405
      %v427 = vpop.f32.mrf.mxu0
      %v428 = vadd.f32 %v398, %v427
      %429 = vdwg.mxu0
      %v430 = vld [vmem:[%s3] sm:$0x1]
      %v431 = vld [vmem:[%s4] sm:$0x1]
      %v432 = vsel %vm400, %v425, 0.0
      %433 = vadd.xlane.f32.xlu0 %v432
      %v434 = vpop.xlane.xlu0 %433
      %v435 = vsel %vm400, %v428, 0.0
      %436 = vadd.xlane.f32.xlu0 %v435
      %v437 = vpop.xlane.xlu0 %436
      %v438 = vrcp.pop 32.0
      %v439 = vmul.f32 32.0, %v438
      %v440 = vsub.f32 1.0, %v439
      %v441 = vmul.f32 %v438, %v440
      %v442 = vadd.f32 %v438, %v441
      %vm443 = vweird.f32 %v438
      %v444 = vsel %vm443, %v438, %v442
      %v445 = vmul.f32 %v434, %v444
      %v446 = vmul.f32 %v437, %v444
      %v447 = vsub.f32 %v425, %v445
      %v448 = vsub.f32 %v428, %v446
      %v449 = vmul.f32 %v447, %v447
      %v450 = vmul.f32 %v448, %v448
      %v451 = vsel %vm400, %v449, 0.0
      %452 = vadd.xlane.f32.xlu0 %v451
      %v453 = vpop.xlane.xlu0 %452
      %v454 = vsel %vm400, %v450, 0.0
      %455 = vadd.xlane.f32.xlu0 %v454
      %v456 = vpop.xlane.xlu0 %455
      %v457 = vmul.f32 %v453, %v444
      %v458 = vmul.f32 %v456, %v444
      %v459 = vadd.f32 %v457, 1e-05
      %v460 = vadd.f32 %v458, 1e-05
      %v461 = vrsqrt.pop %v459
      %v462 = vmul.f32 %v461, %v459
      %v463 = vmul.f32 %v462, %v461
      %v464 = vmul.f32 0.5, %v463
      %v465 = vsub.f32 1.5, %v464
      %v466 = vmul.f32 %v461, %v465
      %vm467 = vweird.f32 %v459
      %vm468 = vweird.f32 %v461
      %vm469 = vmor %vm467, %vm468
      %v470 = vsel %vm469, %v461, %v466
      %v471 = vrsqrt.pop %v460
      %v472 = vmul.f32 %v471, %v460
      %v473 = vmul.f32 %v472, %v471
      %v474 = vmul.f32 0.5, %v473
      %v475 = vsub.f32 1.5, %v474
      %v476 = vmul.f32 %v471, %v475
      %vm477 = vweird.f32 %v460
      %vm478 = vweird.f32 %v471
      %vm479 = vmor %vm477, %vm478
      %v480 = vsel %vm479, %v471, %v476
      %v481 = vmul.f32 %v447, %v470
      %v482 = vmul.f32 %v448, %v480
      %v484 = vperm.slane %v430, 0
      %v486 = vmul.f32 %v481, %v484
      %v487 = vmul.f32 %v482, %v484
      %v489 = vperm.slane %v431, 0
      %v491 = vadd.f32 %v486, %v489
      %v492 = vadd.f32 %v487, %v489
      %v493 = vld [vmem:[%s5] sm:$0xff]
      %v494 = vld [vmem:[%s5 + $0x8] sm:$0xff]
      %v495 = vld [vmem:[%s5 + $0x10] sm:$0xff]
      %v496 = vld [vmem:[%s5 + $0x18] sm:$0xff]
      %v497 = vld [vmem:[%s6] sm:$0x1]
      %v499 = vperm.slane %v497, 0
      %v502 = vsel %vm400, %v491, 0
      %v505 = vsel %vm400, %v492, 0
      %507 = vmatpush.msra.mxu0 0.0
      %508 = vmatpush.msra.mxu0 0.0
      %509 = vmatpush.msra.mxu0 0.0
      %510 = vmatpush.msra.mxu0 0.0
      %511 = vmatpush.msra.mxu0 0.0
      %512 = vmatpush.msra.mxu0 0.0
      %513 = vmatpush.msra.mxu0 0.0
      %514 = vmatpush.msra.mxu0 0.0
      %515 = vmatpush.msra.mxu0 0.0
      %516 = vmatpush.msra.mxu0 0.0
      %517 = vmatpush.msra.mxu0 0.0
      %518 = vmatpush.msra.mxu0 0.0
      %519 = vmatpush.msra.mxu0 %v496
      %520 = vmatpush.msra.mxu0 %v495
      %521 = vmatpush.msra.mxu0 %v494
      %522 = vmatpush.msra.mxu0 %v493
      %523 = vmatmul.f32.gmra.mxu0 %v502
      %v524 = vpop.f32.mrf.mxu0
      %v525 = vadd.f32 %v499, %v524
      %526 = vmatmul.f32.gmra.mxu0 %v505
      %v527 = vpop.f32.mrf.mxu0
      %v528 = vadd.f32 %v499, %v527
      %529 = vdwg.mxu0
      %v530 = vmul.f32 %v525, 0.5
      %v531 = vmul.f32 %v528, 0.5
      %v532 = vmul.f32 %v525, 0.70710677
      %v533 = vmul.f32 %v528, 0.70710677
      %v534 = vmul.f32 %v532, %v532
      %v535 = vmin.f32 16.0, %v534
      %v536 = vmul.f32 %v535, 2.1237322e-06
      %v537 = vadd.f32 %v536, 0.00028619796
      %v538 = vmul.f32 %v535, %v537
      %v539 = vadd.f32 %v538, 0.0036580483
      %v540 = vmul.f32 %v535, %v539
      %v541 = vadd.f32 %v540, 0.05243302
      %v542 = vmul.f32 %v535, %v541
      %v543 = vadd.f32 %v542, 0.18741608
      %v544 = vmul.f32 %v535, %v543
      %v545 = vadd.f32 %v544, 1.1283791
      %v546 = vmul.f32 %v532, %v545
      %v547 = vmul.f32 %v535, 3.8918573e-05
      %v548 = vadd.f32 %v547, 0.001143296
      %v549 = vmul.f32 %v535, %v548
      %v550 = vadd.f32 %v549, 0.014752088
      %v551 = vmul.f32 %v535, %v550
      %v552 = vadd.f32 %v551, 0.112945676
      %v553 = vmul.f32 %v535, %v552
      %v554 = vadd.f32 %v553, 0.4994258
      %v555 = vmul.f32 %v535, %v554
      %v556 = vadd.f32 %v555, 1.0
      %v557 = vrcp.pop %v556
      %v558 = vmul.f32 %v556, %v557
      %v559 = vsub.f32 1.0, %v558
      %v560 = vmul.f32 %v557, %v559
      %v561 = vadd.f32 %v557, %v560
      %vm562 = vweird.f32 %v556
      %vm563 = vweird.f32 %v557
      %vm564 = vmor %vm562, %vm563
      %v565 = vsel %vm564, %v557, %v561
      %v566 = vand.u32 2147483647, %v556
      %vm567 = vcmp.eq.f32.partialorder %v566, 8.507059e+37
      %v568 = vand.u32 %v556, 2147483648
      %v569 = vor.u32 1.1754944e-38, %v568
      %v570 = vsel %vm567, %v569, %v565
      %v571 = vmul.f32 %v546, %v570
      %v572 = vmin.f32 %v571, 1.0
      %v573 = vmax.f32 %v572, -1.0
      %v574 = vmul.f32 %v533, %v533
      %v575 = vmin.f32 16.0, %v574
      %v576 = vmul.f32 %v575, 2.1237322e-06
      %v577 = vadd.f32 %v576, 0.00028619796
      %v578 = vmul.f32 %v575, %v577
      %v579 = vadd.f32 %v578, 0.0036580483
      %v580 = vmul.f32 %v575, %v579
      %v581 = vadd.f32 %v580, 0.05243302
      %v582 = vmul.f32 %v575, %v581
      %v583 = vadd.f32 %v582, 0.18741608
      %v584 = vmul.f32 %v575, %v583
      %v585 = vadd.f32 %v584, 1.1283791
      %v586 = vmul.f32 %v533, %v585
      %v587 = vmul.f32 %v575, 3.8918573e-05
      %v588 = vadd.f32 %v587, 0.001143296
      %v589 = vmul.f32 %v575, %v588
      %v590 = vadd.f32 %v589, 0.014752088
      %v591 = vmul.f32 %v575, %v590
      %v592 = vadd.f32 %v591, 0.112945676
      %v593 = vmul.f32 %v575, %v592
      %v594 = vadd.f32 %v593, 0.4994258
      %v595 = vmul.f32 %v575, %v594
      %v596 = vadd.f32 %v595, 1.0
      %v597 = vrcp.pop %v596
      %v598 = vmul.f32 %v596, %v597
      %v599 = vsub.f32 1.0, %v598
      %v600 = vmul.f32 %v597, %v599
      %v601 = vadd.f32 %v597, %v600
      %vm602 = vweird.f32 %v596
      %vm603 = vweird.f32 %v597
      %vm604 = vmor %vm602, %vm603
      %v605 = vsel %vm604, %v597, %v601
      %v606 = vand.u32 2147483647, %v596
      %vm607 = vcmp.eq.f32.partialorder %v606, 8.507059e+37
      %v608 = vand.u32 %v596, 2147483648
      %v609 = vor.u32 1.1754944e-38, %v608
      %v610 = vsel %vm607, %v609, %v605
      %v611 = vmul.f32 %v586, %v610
      %v612 = vmin.f32 %v611, 1.0
      %v613 = vmax.f32 %v612, -1.0
      %v614 = vadd.f32 %v573, 1.0
      %v615 = vadd.f32 %v613, 1.0
      %v616 = vmul.f32 %v530, %v614
      %v617 = vmul.f32 %v531, %v615
      %v618 = vld [vmem:[%s7] sm:$0xff]
      %v619 = vld [vmem:[%s7 + $0x8] sm:$0xff]
      %v620 = vld [vmem:[%s7 + $0x10] sm:$0xff]
      %v621 = vld [vmem:[%s7 + $0x18] sm:$0xff]
      %v622 = vld [vmem:[%s8] sm:$0x1]
      %v624 = vperm.slane %v622, 0
      %626 = vmatpush.msra.mxu0 0.0
      %627 = vmatpush.msra.mxu0 0.0
      %628 = vmatpush.msra.mxu0 0.0
      %629 = vmatpush.msra.mxu0 0.0
      %630 = vmatpush.msra.mxu0 0.0
      %631 = vmatpush.msra.mxu0 0.0
      %632 = vmatpush.msra.mxu0 0.0
      %633 = vmatpush.msra.mxu0 0.0
      %634 = vmatpush.msra.mxu0 0.0
      %635 = vmatpush.msra.mxu0 0.0
      %636 = vmatpush.msra.mxu0 0.0
      %637 = vmatpush.msra.mxu0 0.0
      %638 = vmatpush.msra.mxu0 %v621
      %639 = vmatpush.msra.mxu0 %v620
      %640 = vmatpush.msra.mxu0 %v619
      %641 = vmatpush.msra.mxu0 %v618
      %642 = vmatmul.f32.gmra.mxu0 %v502
      %v643 = vpop.f32.mrf.mxu0
      %v644 = vadd.f32 %v624, %v643
      %645 = vmatmul.f32.gmra.mxu0 %v505
      %v646 = vpop.f32.mrf.mxu0
      %v647 = vadd.f32 %v624, %v646
      %648 = vdwg.mxu0
      %v649 = vmul.f32 %v644, 0.5
      %v650 = vmul.f32 %v647, 0.5
      %v651 = vmul.f32 %v644, 0.70710677
      %v652 = vmul.f32 %v647, 0.70710677
      %v653 = vmul.f32 %v651, %v651
      %v654 = vmin.f32 16.0, %v653
      %v655 = vmul.f32 %v654, 2.1237322e-06
      %v656 = vadd.f32 %v655, 0.00028619796
      %v657 = vmul.f32 %v654, %v656
      %v658 = vadd.f32 %v657, 0.0036580483
      %v659 = vmul.f32 %v654, %v658
      %v660 = vadd.f32 %v659, 0.05243302
      %v661 = vmul.f32 %v654, %v660
      %v662 = vadd.f32 %v661, 0.18741608
      %v663 = vmul.f32 %v654, %v662
      %v664 = vadd.f32 %v663, 1.1283791
      %v665 = vmul.f32 %v651, %v664
      %v666 = vmul.f32 %v654, 3.8918573e-05
      %v667 = vadd.f32 %v666, 0.001143296
      %v668 = vmul.f32 %v654, %v667
      %v669 = vadd.f32 %v668, 0.014752088
      %v670 = vmul.f32 %v654, %v669
      %v671 = vadd.f32 %v670, 0.112945676
      %v672 = vmul.f32 %v654, %v671
      %v673 = vadd.f32 %v672, 0.4994258
      %v674 = vmul.f32 %v654, %v673
      %v675 = vadd.f32 %v674, 1.0
      %v676 = vrcp.pop %v675
      %v677 = vmul.f32 %v675, %v676
      %v678 = vsub.f32 1.0, %v677
      %v679 = vmul.f32 %v676, %v678
      %v680 = vadd.f32 %v676, %v679
      %vm681 = vweird.f32 %v675
      %vm682 = vweird.f32 %v676
      %vm683 = vmor %vm681, %vm682
      %v684 = vsel %vm683, %v676, %v680
      %v685 = vand.u32 2147483647, %v675
      %vm686 = vcmp.eq.f32.partialorder %v685, 8.507059e+37
      %v687 = vand.u32 %v675, 2147483648
      %v688 = vor.u32 1.1754944e-38, %v687
      %v689 = vsel %vm686, %v688, %v684
      %v690 = vmul.f32 %v665, %v689
      %v691 = vmin.f32 %v690, 1.0
      %v692 = vmax.f32 %v691, -1.0
      %v693 = vmul.f32 %v652, %v652
      %v694 = vmin.f32 16.0, %v693
      %v695 = vmul.f32 %v694, 2.1237322e-06
      %v696 = vadd.f32 %v695, 0.00028619796
      %v697 = vmul.f32 %v694, %v696
      %v698 = vadd.f32 %v697, 0.0036580483
      %v699 = vmul.f32 %v694, %v698
      %v700 = vadd.f32 %v699, 0.05243302
      %v701 = vmul.f32 %v694, %v700
      %v702 = vadd.f32 %v701, 0.18741608
      %v703 = vmul.f32 %v694, %v702
      %v704 = vadd.f32 %v703, 1.1283791
      %v705 = vmul.f32 %v652, %v704
      %v706 = vmul.f32 %v694, 3.8918573e-05
      %v707 = vadd.f32 %v706, 0.001143296
      %v708 = vmul.f32 %v694, %v707
      %v709 = vadd.f32 %v708, 0.014752088
      %v710 = vmul.f32 %v694, %v709
      %v711 = vadd.f32 %v710, 0.112945676
      %v712 = vmul.f32 %v694, %v711
      %v713 = vadd.f32 %v712, 0.4994258
      %v714 = vmul.f32 %v694, %v713
      %v715 = vadd.f32 %v714, 1.0
      %v716 = vrcp.pop %v715
      %v717 = vmul.f32 %v715, %v716
      %v718 = vsub.f32 1.0, %v717
      %v719 = vmul.f32 %v716, %v718
      %v720 = vadd.f32 %v716, %v719
      %vm721 = vweird.f32 %v715
      %vm722 = vweird.f32 %v716
      %vm723 = vmor %vm721, %vm722
      %v724 = vsel %vm723, %v716, %v720
      %v725 = vand.u32 2147483647, %v715
      %vm726 = vcmp.eq.f32.partialorder %v725, 8.507059e+37
      %v727 = vand.u32 %v715, 2147483648
      %v728 = vor.u32 1.1754944e-38, %v727
      %v729 = vsel %vm726, %v728, %v724
      %v730 = vmul.f32 %v705, %v729
      %v731 = vmin.f32 %v730, 1.0
      %v732 = vmax.f32 %v731, -1.0
      %v733 = vadd.f32 %v692, 1.0
      %v734 = vadd.f32 %v732, 1.0
      %v735 = vmul.f32 %v649, %v733
      %v736 = vmul.f32 %v650, %v734
      %v737 = vmul.f32 %v616, %v735
      %v738 = vmul.f32 %v617, %v736
      %v739 = vld [vmem:[%s9] sm:$0xff]
      %v740 = vld [vmem:[%s9 + $0x8] sm:$0xff]
      %v741 = vld [vmem:[%s9 + $0x10] sm:$0xff]
      %v742 = vld [vmem:[%s9 + $0x18] sm:$0xff]
      %v743 = vld [vmem:[%s9 + $0x20] sm:$0xff]
      %v744 = vld [vmem:[%s9 + $0x28] sm:$0xff]
      %v745 = vld [vmem:[%s9 + $0x30] sm:$0xff]
      %v746 = vld [vmem:[%s9 + $0x38] sm:$0xff]
      %v747 = vld [vmem:[%s9 + $0x40] sm:$0xff]
      %v748 = vld [vmem:[%s9 + $0x48] sm:$0xff]
      %v749 = vld [vmem:[%s9 + $0x50] sm:$0xff]
      %v750 = vld [vmem:[%s9 + $0x58] sm:$0xff]
      %v751 = vld [vmem:[%s9 + $0x60] sm:$0xff]
      %v752 = vld [vmem:[%s9 + $0x68] sm:$0xff]
      %v753 = vld [vmem:[%s9 + $0x70] sm:$0xff]
      %v754 = vld [vmem:[%s9 + $0x78] sm:$0xff]
      %v755 = vld [vmem:[%s10] sm:$0x1]
      %v757 = vperm.slane %v755, 0
      %759 = vmatpush.msra.mxu0 %v754
      %760 = vmatpush.msra.mxu0 %v753
      %761 = vmatpush.msra.mxu0 %v752
      %762 = vmatpush.msra.mxu0 %v751
      %763 = vmatpush.msra.mxu0 %v750
      %764 = vmatpush.msra.mxu0 %v749
      %765 = vmatpush.msra.mxu0 %v748
      %766 = vmatpush.msra.mxu0 %v747
      %767 = vmatpush.msra.mxu0 %v746
      %768 = vmatpush.msra.mxu0 %v745
      %769 = vmatpush.msra.mxu0 %v744
      %770 = vmatpush.msra.mxu0 %v743
      %771 = vmatpush.msra.mxu0 %v742
      %772 = vmatpush.msra.mxu0 %v741
      %773 = vmatpush.msra.mxu0 %v740
      %774 = vmatpush.msra.mxu0 %v739
      %775 = vmatmul.f32.gmra.mxu0 %v737
      %v776 = vpop.f32.mrf.mxu0
      %v777 = vadd.f32 %v757, %v776
      %778 = vmatmul.f32.gmra.mxu0 %v738
      %v779 = vpop.f32.mrf.mxu0
      %v780 = vadd.f32 %v757, %v779
      %781 = vdwg.mxu0
      %v782 = vadd.f32 %v777, %v425
      %v783 = vadd.f32 %v780, %v428
      %784 = vst.msk [vmem:[%s388] sm:$0xff] %vm400, %v782
      %785 = vst.msk [vmem:[%s388 + $0x8] sm:$0xff] %vm400, %v783
      %s786 = smul.u32 2, %s22
      %p787 = scmp.lt.s32.totalorder %s786, 5
      %s788 = scalar_select %p787, %s786, 5
      %s789 = smul.addr %s788, 8
      %s790 = scalar_lea.vmem %s11, %s789
      // Predicated region
      $region65: #{cross_attention_forward.7} parent=63 // pred_check
        %p791 = pneg %p276
      $region66: #{cross_attention_forward.7} parent=63 // pred_check_branch
        %793 = sbr.rel (%p791) target = $region68
      $region67: #{cross_attention_forward.7} parent=63 // pred_region
        %s794 = smul.u32 2, %s22
      $region68: #{cross_attention_forward.7} parent=63 // pred_fallthru
        _
    $region64: #{cross_attention_forward.7} parent=5 // pred_fallthru
      _
    %p795 = scmp.le.s32.totalorder 2, %s17
    // Predicated region
    $region69: #{cross_attention_forward.7} parent=5 // pred_check
      %p796 = pneg %p795
    $region70: #{cross_attention_forward.7} parent=5 // pred_check_branch
      %798 = sbr.rel (%p796) target = $region72
    $region71: #{cross_attention_forward.7} parent=5 // pred_region
      %s799 = ssub.s32 %s17, 2
      // Predicated region
      $region73: #{cross_attention_forward.7} parent=71 // pred_check
        %p800 = pneg %p282
      $region74: #{cross_attention_forward.7} parent=71 // pred_check_branch
        %802 = sbr.rel (%p800) target = $region76
      $region75: #{cross_attention_forward.7} parent=71 // pred_region
        %s803 = smul.u32 2, %s23
        %p804 = scmp.lt.s32.totalorder %s803, 5
        %s805 = scalar_select %p804, %s803, 5
        %s806 = smul.addr %s805, 8
        %s807 = scalar_lea.vmem %s11, %s806
      $region76: #{cross_attention_forward.7} parent=71 // pred_fallthru
        _
    $region72: #{cross_attention_forward.7} parent=5 // pred_fallthru
      _
  $region6: #{cross_attention_forward.7} parent=0 // loop_footer
    %s21 = sadd.s32 1, %s17
  $region7: #{cross_attention_forward.7} parent=0 // loop_footer_branch
    %16 = sbr.rel target = $region3
  $region8: #{cross_attention_forward.7} parent=0 // loop_exit
    _

// kernel: cross_attention_forward.4
$region0: #{cross_attention_forward.4}
  #allocation0 [shape = 'u32[]', space=smem, size = 0x4, offset = 0x4, fixed_abs, tag = 'smem constant byte address 0x4 - core index']
  #allocation1 [shape = 'u32[72,128]{1,0:T(1,128)}', space=vmem, size = 0x9000, scoped, tag = 'internal scratch']
  %s0 = inlined_call_operand.vmem [shape: f32[48,32], index: 0, kind: input, shape index: {}]
  %s1 = inlined_call_operand.vmem [shape: f32[3,32,32], index: 1, kind: input, shape index: {}]
  %s2 = inlined_call_operand.vmem [shape: f32[3,1,32], index: 2, kind: input, shape index: {}]
  %s3 = inlined_call_operand.vmem [shape: f32[3,1,32], index: 3, kind: input, shape index: {}]
  %s4 = inlined_call_operand.vmem [shape: f32[3,1,32], index: 4, kind: input, shape index: {}]
  %s5 = inlined_call_operand.vmem [shape: f32[1,32], index: 5, kind: input, shape index: {}]
  %s6 = inlined_call_operand.vmem [shape: f32[1,32], index: 6, kind: input, shape index: {}]
  %s7 = inlined_call_operand.vmem [shape: f32[32,96], index: 7, kind: input, shape index: {}]
  %s8 = inlined_call_operand.vmem [shape: f32[1,96], index: 8, kind: input, shape index: {}]
  %s9 = inlined_call_operand.vmem [shape: f32[3,48,96], index: 9, kind: output, shape index: {}]
  %s10 = sld [smem:[#allocation0]]
  $region69: #{cross_attention_forward.4} parent=0
    _
  %s12 = ssub.s32 1, %s10
  %s13 = scalar_select 0, %s12, %s10
  loop: start=0, step=1, limit=11
  $region2: #{cross_attention_forward.4} parent=0 // loop_pre_header
    _
  $region3: #{cross_attention_forward.4} parent=0 // loop_header
    %s15 = sphi 0, %s19
    %p16 = scmp.ge.s32.totalorder %s15, 11
    %s22 = sphi 0, %s34
    %s23 = sphi 0, %s30
    %s24 = sphi 0, %s22
    %s25 = sphi 0, %s23
    %s26 = sphi 0, %s24
    %s27 = sphi 0, %s25
    %s37 = sphi 0, %s39
    %s40 = sphi 0, %s37
    %s41 = sphi 0, %s40
    %s57 = sphi 0, %s41
    %s63 = sphi 0, %s65
    %s66 = sphi 0, %s63
    %s67 = sphi 0, %s66
    %s83 = sphi 0, %s67
    %s89 = sphi 0, %s91
    %s92 = sphi 0, %s89
    %s93 = sphi 0, %s92
    %s109 = sphi 0, %s93
    %s115 = sphi 0, %s117
    %s118 = sphi 0, %s115
    %s119 = sphi 0, %s118
    %s135 = sphi 0, %s119
    %s141 = sphi 0, %s143
    %s144 = sphi 0, %s141
    %s145 = sphi 0, %s144
    %s161 = sphi 0, %s145
    %s165 = sphi 0, %s165
    %s167 = sphi 0, %s165
    %s168 = sphi 0, %s167
    %s182 = sphi 0, %s168
    %s186 = sphi 0, %s186
    %s188 = sphi 0, %s186
    %s189 = sphi 0, %s188
    %s203 = sphi 0, %s189
    %s207 = sphi 0, %s207
    %s209 = sphi 0, %s207
    %s210 = sphi 0, %s209
    %s224 = sphi 0, %s210
    %s228 = sphi 0, %s228
    %s230 = sphi 0, %s228
    %s231 = sphi 0, %s230
    %s245 = sphi 0, %s231
    %s253 = sphi 0, %s255
    %s256 = sphi 0, %s253
    %s257 = sphi 0, %s256
    %s273 = sphi 0, %s257
  $region4: #{cross_attention_forward.4} parent=0 // loop_header_branch
    %18 = sbr.rel (%p16) target = $region8
  $region5: #{cross_attention_forward.4} parent=0 // loop_body
    %s20 = ssub.s32 %s15, 1
    %s21 = ssub.s32 %s15, 2
    %s28 = sadd.s32 1, %s23
    %p29 = scmp.ge.s32.totalorder %s28, 3
    %s30 = scalar_select %p29, 0, %s28
    %s31 = sadd.s32 1, %s22
    %s32 = scalar_select %p29, %s31, %s22
    %p33 = scmp.ge.s32.totalorder %s32, 3
    %s34 = scalar_select %p33, 0, %s32
    %s35 = ssub.s32 %s23, %s30
    %p36 = scmp.eq.s32.totalorder %s35, 0
    %s38 = sadd.s32 %s37, 1
    %s39 = scalar_select %p36, %s37, %s38
    %p42 = pneg %p36
    %p43 = scmp.eq.s32.totalorder %s15, 8
    %p44 = por %p42, %p43
    %p45 = scmp.ne.s32.totalorder %s37, %s40
    %p46 = scmp.eq.s32.totalorder %s15, 0
    %p47 = por %p45, %p46
    %p48 = scmp.ne.s32.totalorder %s37, %s40
    %p49 = scmp.eq.s32.totalorder %s20, 8
    %p50 = por %p48, %p49
    %p51 = scmp.ne.s32.totalorder %s40, %s41
    %p52 = scmp.eq.s32.totalorder %s20, 0
    %p53 = por %p51, %p52
    %p54 = scmp.ne.s32.totalorder %s40, %s41
    %p55 = scmp.eq.s32.totalorder %s21, 8
    %p56 = por %p54, %p55
    %p58 = scmp.ne.s32.totalorder %s41, %s57
    %p59 = scmp.eq.s32.totalorder %s21, 0
    %p60 = por %p58, %p59
    %s61 = ssub.s32 %s22, %s34
    %p62 = scmp.eq.s32.totalorder %s61, 0
    %s64 = sadd.s32 %s63, 1
    %s65 = scalar_select %p62, %s63, %s64
    %p68 = pneg %p62
    %p69 = scmp.eq.s32.totalorder %s15, 8
    %p70 = por %p68, %p69
    %p71 = scmp.ne.s32.totalorder %s63, %s66
    %p72 = scmp.eq.s32.totalorder %s15, 0
    %p73 = por %p71, %p72
    %p74 = scmp.ne.s32.totalorder %s63, %s66
    %p75 = scmp.eq.s32.totalorder %s20, 8
    %p76 = por %p74, %p75
    %p77 = scmp.ne.s32.totalorder %s66, %s67
    %p78 = scmp.eq.s32.totalorder %s20, 0
    %p79 = por %p77, %p78
    %p80 = scmp.ne.s32.totalorder %s66, %s67
    %p81 = scmp.eq.s32.totalorder %s21, 8
    %p82 = por %p80, %p81
    %p84 = scmp.ne.s32.totalorder %s67, %s83
    %p85 = scmp.eq.s32.totalorder %s21, 0
    %p86 = por %p84, %p85
    %s87 = ssub.s32 %s22, %s34
    %p88 = scmp.eq.s32.totalorder %s87, 0
    %s90 = sadd.s32 %s89, 1
    %s91 = scalar_select %p88, %s89, %s90
    %p94 = pneg %p88
    %p95 = scmp.eq.s32.totalorder %s15, 8
    %p96 = por %p94, %p95
    %p97 = scmp.ne.s32.totalorder %s89, %s92
    %p98 = scmp.eq.s32.totalorder %s15, 0
    %p99 = por %p97, %p98
    %p100 = scmp.ne.s32.totalorder %s89, %s92
    %p101 = scmp.eq.s32.totalorder %s20, 8
    %p102 = por %p100, %p101
    %p103 = scmp.ne.s32.totalorder %s92, %s93
    %p104 = scmp.eq.s32.totalorder %s20, 0
    %p105 = por %p103, %p104
    %p106 = scmp.ne.s32.totalorder %s92, %s93
    %p107 = scmp.eq.s32.totalorder %s21, 8
    %p108 = por %p106, %p107
    %p110 = scmp.ne.s32.totalorder %s93, %s109
    %p111 = scmp.eq.s32.totalorder %s21, 0
    %p112 = por %p110, %p111
    %s113 = ssub.s32 %s22, %s34
    %p114 = scmp.eq.s32.totalorder %s113, 0
    %s116 = sadd.s32 %s115, 1
    %s117 = scalar_select %p114, %s115, %s116
    %p120 = pneg %p114
    %p121 = scmp.eq.s32.totalorder %s15, 8
    %p122 = por %p120, %p121
    %p123 = scmp.ne.s32.totalorder %s115, %s118
    %p124 = scmp.eq.s32.totalorder %s15, 0
    %p125 = por %p123, %p124
    %p126 = scmp.ne.s32.totalorder %s115, %s118
    %p127 = scmp.eq.s32.totalorder %s20, 8
    %p128 = por %p126, %p127
    %p129 = scmp.ne.s32.totalorder %s118, %s119
    %p130 = scmp.eq.s32.totalorder %s20, 0
    %p131 = por %p129, %p130
    %p132 = scmp.ne.s32.totalorder %s118, %s119
    %p133 = scmp.eq.s32.totalorder %s21, 8
    %p134 = por %p132, %p133
    %p136 = scmp.ne.s32.totalorder %s119, %s135
    %p137 = scmp.eq.s32.totalorder %s21, 0
    %p138 = por %p136, %p137
    %s139 = ssub.s32 %s22, %s34
    %p140 = scmp.eq.s32.totalorder %s139, 0
    %s142 = sadd.s32 %s141, 1
    %s143 = scalar_select %p140, %s141, %s142
    %p146 = pneg %p140
    %p147 = scmp.eq.s32.totalorder %s15, 8
    %p148 = por %p146, %p147
    %p149 = scmp.ne.s32.totalorder %s141, %s144
    %p150 = scmp.eq.s32.totalorder %s15, 0
    %p151 = por %p149, %p150
    %p152 = scmp.ne.s32.totalorder %s141, %s144
    %p153 = scmp.eq.s32.totalorder %s20, 8
    %p154 = por %p152, %p153
    %p155 = scmp.ne.s32.totalorder %s144, %s145
    %p156 = scmp.eq.s32.totalorder %s20, 0
    %p157 = por %p155, %p156
    %p158 = scmp.ne.s32.totalorder %s144, %s145
    %p159 = scmp.eq.s32.totalorder %s21, 8
    %p160 = por %p158, %p159
    %p162 = scmp.ne.s32.totalorder %s145, %s161
    %p163 = scmp.eq.s32.totalorder %s21, 0
    %p164 = por %p162, %p163
    %s166 = sadd.s32 %s165, 1
    %p169 = scmp.eq.s32.totalorder %s15, 8
    %p170 = scmp.ne.s32.totalorder %s165, %s167
    %p171 = scmp.eq.s32.totalorder %s15, 0
    %p172 = por %p170, %p171
    %p173 = scmp.ne.s32.totalorder %s165, %s167
    %p174 = scmp.eq.s32.totalorder %s20, 8
    %p175 = por %p173, %p174
    %p176 = scmp.ne.s32.totalorder %s167, %s168
    %p177 = scmp.eq.s32.totalorder %s20, 0
    %p178 = por %p176, %p177
    %p179 = scmp.ne.s32.totalorder %s167, %s168
    %p180 = scmp.eq.s32.totalorder %s21, 8
    %p181 = por %p179, %p180
    %p183 = scmp.ne.s32.totalorder %s168, %s182
    %p184 = scmp.eq.s32.totalorder %s21, 0
    %p185 = por %p183, %p184
    %s187 = sadd.s32 %s186, 1
    %p190 = scmp.eq.s32.totalorder %s15, 8
    %p191 = scmp.ne.s32.totalorder %s186, %s188
    %p192 = scmp.eq.s32.totalorder %s15, 0
    %p193 = por %p191, %p192
    %p194 = scmp.ne.s32.totalorder %s186, %s188
    %p195 = scmp.eq.s32.totalorder %s20, 8
    %p196 = por %p194, %p195
    %p197 = scmp.ne.s32.totalorder %s188, %s189
    %p198 = scmp.eq.s32.totalorder %s20, 0
    %p199 = por %p197, %p198
    %p200 = scmp.ne.s32.totalorder %s188, %s189
    %p201 = scmp.eq.s32.totalorder %s21, 8
    %p202 = por %p200, %p201
    %p204 = scmp.ne.s32.totalorder %s189, %s203
    %p205 = scmp.eq.s32.totalorder %s21, 0
    %p206 = por %p204, %p205
    %s208 = sadd.s32 %s207, 1
    %p211 = scmp.eq.s32.totalorder %s15, 8
    %p212 = scmp.ne.s32.totalorder %s207, %s209
    %p213 = scmp.eq.s32.totalorder %s15, 0
    %p214 = por %p212, %p213
    %p215 = scmp.ne.s32.totalorder %s207, %s209
    %p216 = scmp.eq.s32.totalorder %s20, 8
    %p217 = por %p215, %p216
    %p218 = scmp.ne.s32.totalorder %s209, %s210
    %p219 = scmp.eq.s32.totalorder %s20, 0
    %p220 = por %p218, %p219
    %p221 = scmp.ne.s32.totalorder %s209, %s210
    %p222 = scmp.eq.s32.totalorder %s21, 8
    %p223 = por %p221, %p222
    %p225 = scmp.ne.s32.totalorder %s210, %s224
    %p226 = scmp.eq.s32.totalorder %s21, 0
    %p227 = por %p225, %p226
    %s229 = sadd.s32 %s228, 1
    %p232 = scmp.eq.s32.totalorder %s15, 8
    %p233 = scmp.ne.s32.totalorder %s228, %s230
    %p234 = scmp.eq.s32.totalorder %s15, 0
    %p235 = por %p233, %p234
    %p236 = scmp.ne.s32.totalorder %s228, %s230
    %p237 = scmp.eq.s32.totalorder %s20, 8
    %p238 = por %p236, %p237
    %p239 = scmp.ne.s32.totalorder %s230, %s231
    %p240 = scmp.eq.s32.totalorder %s20, 0
    %p241 = por %p239, %p240
    %p242 = scmp.ne.s32.totalorder %s230, %s231
    %p243 = scmp.eq.s32.totalorder %s21, 8
    %p244 = por %p242, %p243
    %p246 = scmp.ne.s32.totalorder %s231, %s245
    %p247 = scmp.eq.s32.totalorder %s21, 0
    %p248 = por %p246, %p247
    %s249 = ssub.s32 %s22, %s34
    %s250 = ssub.s32 %s23, %s30
    %s251 = sor.u32 %s249, %s250
    %p252 = scmp.eq.s32.totalorder %s251, 0
    %s254 = sadd.s32 %s253, 1
    %s255 = scalar_select %p252, %s253, %s254
    %p258 = pneg %p252
    %p259 = scmp.eq.s32.totalorder %s15, 8
    %p260 = por %p258, %p259
    %p261 = scmp.ne.s32.totalorder %s253, %s256
    %p262 = scmp.eq.s32.totalorder %s15, 0
    %p263 = por %p261, %p262
    %p264 = scmp.ne.s32.totalorder %s253, %s256
    %p265 = scmp.eq.s32.totalorder %s20, 8
    %p266 = por %p264, %p265
    %p267 = scmp.ne.s32.totalorder %s256, %s257
    %p268 = scmp.eq.s32.totalorder %s20, 0
    %p269 = por %p267, %p268
    %p270 = scmp.ne.s32.totalorder %s256, %s257
    %p271 = scmp.eq.s32.totalorder %s21, 8
    %p272 = por %p270, %p271
    %p274 = scmp.ne.s32.totalorder %s257, %s273
    %p275 = scmp.eq.s32.totalorder %s21, 0
    %p276 = por %p274, %p275
    %p277 = scmp.le.s32.totalorder 1, %s15
    %p278 = scmp.lt.s32.totalorder %s15, 10
    %p279 = pnand %p277, %p278
    %p280 = pneg %p279
    // Predicated region
    $region9: #{cross_attention_forward.4} parent=5 // pred_check
      _
    $region10: #{cross_attention_forward.4} parent=5 // pred_check_branch
      %282 = sbr.rel (%p279) target = $region12
    $region11: #{cross_attention_forward.4} parent=5 // pred_region
      %s283 = ssub.s32 %s15, 1
      // Predicated region
      $region13: #{cross_attention_forward.4} parent=11 // pred_check
        %p284 = pneg %p178
      $region14: #{cross_attention_forward.4} parent=11 // pred_check_branch
        %286 = sbr.rel (%p284) target = $region16
      $region15: #{cross_attention_forward.4} parent=11 // pred_region
        _
      $region16: #{cross_attention_forward.4} parent=11 // pred_fallthru
        _
      // Predicated region
      $region17: #{cross_attention_forward.4} parent=11 // pred_check
        %p287 = pneg %p199
      $region18: #{cross_attention_forward.4} parent=11 // pred_check_branch
        %289 = sbr.rel (%p287) target = $region20
      $region19: #{cross_attention_forward.4} parent=11 // pred_region
        _
      $region20: #{cross_attention_forward.4} parent=11 // pred_fallthru
        _
      // Predicated region
      $region21: #{cross_attention_forward.4} parent=11 // pred_check
        %p290 = pneg %p220
      $region22: #{cross_attention_forward.4} parent=11 // pred_check_branch
        %292 = sbr.rel (%p290) target = $region24
      $region23: #{cross_attention_forward.4} parent=11 // pred_region
        _
      $region24: #{cross_attention_forward.4} parent=11 // pred_fallthru
        _
      // Predicated region
      $region25: #{cross_attention_forward.4} parent=11 // pred_check
        %p293 = pneg %p241
      $region26: #{cross_attention_forward.4} parent=11 // pred_check_branch
        %295 = sbr.rel (%p293) target = $region28
      $region27: #{cross_attention_forward.4} parent=11 // pred_region
        _
      $region28: #{cross_attention_forward.4} parent=11 // pred_fallthru
        _
    $region12: #{cross_attention_forward.4} parent=5 // pred_fallthru
      _
    %p296 = scmp.lt.s32.totalorder %s15, 9
    // Predicated region
    $region29: #{cross_attention_forward.4} parent=5 // pred_check
      %p297 = pneg %p296
    $region30: #{cross_attention_forward.4} parent=5 // pred_check_branch
      %299 = sbr.rel (%p297) target = $region32
    $region31: #{cross_attention_forward.4} parent=5 // pred_region
      // Predicated region
      $region33: #{cross_attention_forward.4} parent=31 // pred_check
        %p300 = pneg %p47
      $region34: #{cross_attention_forward.4} parent=31 // pred_check_branch
        %302 = sbr.rel (%p300) target = $region36
      $region35: #{cross_attention_forward.4} parent=31 // pred_region
        %s303 = smul.u32 2, %s23
        %p304 = scmp.lt.s32.totalorder %s303, 5
        %s305 = scalar_select %p304, %s303, 5
        %s306 = smul.addr %s305, 8
        %s307 = scalar_lea.vmem %s0, %s306
        %s308 = smul.u32 2, %s23
      $region36: #{cross_attention_forward.4} parent=31 // pred_fallthru
        _
      // Predicated region
      $region37: #{cross_attention_forward.4} parent=31 // pred_check
        %p309 = pneg %p73
      $region38: #{cross_attention_forward.4} parent=31 // pred_check_branch
        %311 = sbr.rel (%p309) target = $region40
      $region39: #{cross_attention_forward.4} parent=31 // pred_region
        %p312 = scmp.lt.s32.totalorder %s22, 2
        %s313 = scalar_select %p312, %s22, 2
        %s314 = smul.addr %s313, 4
        %s315 = smul.addr %s314, 8
        %s316 = scalar_lea.vmem %s1, %s315
      $region40: #{cross_attention_forward.4} parent=31 // pred_fallthru
        _
      // Predicated region
      $region41: #{cross_attention_forward.4} parent=31 // pred_check
        %p317 = pneg %p99
      $region42: #{cross_attention_forward.4} parent=31 // pred_check_branch
        %319 = sbr.rel (%p317) target = $region44
      $region43: #{cross_attention_forward.4} parent=31 // pred_region
        %p320 = scmp.lt.s32.totalorder %s22, 2
        %s321 = scalar_select %p320, %s22, 2
        %s322 = scalar_lea.vmem %s2, %s321
      $region44: #{cross_attention_forward.4} parent=31 // pred_fallthru
        _
      // Predicated region
      $region45: #{cross_attention_forward.4} parent=31 // pred_check
        %p323 = pneg %p125
      $region46: #{cross_attention_forward.4} parent=31 // pred_check_branch
        %325 = sbr.rel (%p323) target = $region48
      $region47: #{cross_attention_forward.4} parent=31 // pred_region
        %p326 = scmp.lt.s32.totalorder %s22, 2
        %s327 = scalar_select %p326, %s22, 2
        %s328 = scalar_lea.vmem %s3, %s327
      $region48: #{cross_attention_forward.4} parent=31 // pred_fallthru
        _
      // Predicated region
      $region49: #{cross_attention_forward.4} parent=31 // pred_check
        %p329 = pneg %p151
      $region50: #{cross_attention_forward.4} parent=31 // pred_check_branch
        %331 = sbr.rel (%p329) target = $region52
      $region51: #{cross_attention_forward.4} parent=31 // pred_region
        %p332 = scmp.lt.s32.totalorder %s22, 2
        %s333 = scalar_select %p332, %s22, 2
        %s334 = scalar_lea.vmem %s4, %s333
      $region52: #{cross_attention_forward.4} parent=31 // pred_fallthru
        _
    $region32: #{cross_attention_forward.4} parent=5 // pred_fallthru
      _
    %p335 = scmp.le.s32.totalorder 1, %s15
    %p336 = scmp.lt.s32.totalorder %s15, 10
    %p337 = pnand %p335, %p336
    %p338 = pneg %p337
    // Predicated region
    $region53: #{cross_attention_forward.4} parent=5 // pred_check
      _
    $region54: #{cross_attention_forward.4} parent=5 // pred_check_branch
      %340 = sbr.rel (%p337) target = $region56
    $region55: #{cross_attention_forward.4} parent=5 // pred_region
      %s341 = ssub.s32 %s15, 1
      %s342 = smul.u32 2, %s25
      %p343 = scmp.lt.s32.totalorder %s342, 5
      %s344 = scalar_select %p343, %s342, 5
      %s345 = smul.addr %s344, 8
      %s346 = scalar_lea.vmem %s0, %s345
      %p347 = pneg %p53
      %p348 = pneg %p50
      %p349 = scmp.lt.s32.totalorder %s24, 2
      %s350 = scalar_select %p349, %s24, 2
      %s351 = smul.addr %s350, 4
      %s352 = smul.addr %s351, 8
      %s353 = scalar_lea.vmem %s1, %s352
      %p354 = pneg %p79
      %p355 = pneg %p76
      %p356 = scmp.lt.s32.totalorder %s24, 2
      %s357 = scalar_select %p356, %s24, 2
      %s358 = scalar_lea.vmem %s2, %s357
      %p359 = pneg %p105
      %p360 = pneg %p102
      %p361 = scmp.lt.s32.totalorder %s24, 2
      %s362 = scalar_select %p361, %s24, 2
      %s363 = scalar_lea.vmem %s3, %s362
      %p364 = pneg %p131
      %p365 = pneg %p128
      %p366 = scmp.lt.s32.totalorder %s24, 2
      %s367 = scalar_select %p366, %s24, 2
      %s368 = scalar_lea.vmem %s4, %s367
      %p369 = pneg %p157
      %p370 = pneg %p154
      %p371 = pneg %p178
      %p372 = pneg %p175
      %p373 = pneg %p199
      %p374 = pneg %p196
      %p375 = pneg %p220
      %p376 = pneg %p217
      %p377 = pneg %p241
      %p378 = pneg %p238
      %p379 = pneg %p269
      %p380 = pneg %p266
      %s381 = smul.u32 2, %s25
      %p382 = scmp.lt.s32.totalorder %s24, 2
      %s383 = scalar_select %p382, %s24, 2
      %p384 = scmp.lt.s32.totalorder %s381, 5
      %s385 = scalar_select %p384, %s381, 5
      %s386 = smul.addr %s383, 6
      %s387 = sadd.s32 %s385, %s386
      %s388 = smul.addr %s387, 8
      %s389 = scalar_lea.vmem %s9, %s388
      %s390 = smul.u32 2, %s25
      %p391 = scmp.lt.s32.totalorder %s390, 5
      %s392 = scalar_select %p391, %s390, 5
      %s393 = smul.addr %s392, 8
      %s394 = scalar_lea.vmem %s0, %s393
      %s395 = smul.u32 2, %s25
      %p396 = scmp.lt.s32.totalorder %s24, 2
      %s397 = scalar_select %p396, %s24, 2
      %s398 = smul.addr %s397, 4
      %s399 = smul.addr %s398, 8
      %s400 = scalar_lea.vmem %s1, %s399
      %p401 = scmp.lt.s32.totalorder %s24, 2
      %s402 = scalar_select %p401, %s24, 2
      %s403 = scalar_lea.vmem %s2, %s402
      %p404 = scmp.lt.s32.totalorder %s24, 2
      %s405 = scalar_select %p404, %s24, 2
      %s406 = scalar_lea.vmem %s3, %s405
      %p407 = scmp.lt.s32.totalorder %s24, 2
      %s408 = scalar_select %p407, %s24, 2
      %s409 = scalar_lea.vmem %s4, %s408
      %s410 = smul.u32 2, %s25
      %p411 = scmp.lt.s32.totalorder %s24, 2
      %s412 = scalar_select %p411, %s24, 2
      %p413 = scmp.lt.s32.totalorder %s410, 5
      %s414 = scalar_select %p413, %s410, 5
      %s415 = smul.addr %s412, 6
      %s416 = sadd.s32 %s414, %s415
      %s417 = smul.addr %s416, 8
      %s418 = scalar_lea.vmem %s9, %s417
      %s419 = smul.u32 2, %s25
      %v420 = vld [vmem:[%s394] sm:$0xff]
      %v421 = vld [vmem:[%s394 + $0x8] sm:$0xff]
      %v422 = vld [vmem:[%s400] sm:$0xff]
      %v423 = vld [vmem:[%s400 + $0x8] sm:$0xff]
      %v424 = vld [vmem:[%s400 + $0x10] sm:$0xff]
      %v425 = vld [vmem:[%s400 + $0x18] sm:$0xff]
      %v426 = vld [vmem:[%s403] sm:$0x1]
      %v428 = vperm.slane %v426, 0
      %vm430 = vcmask 261120
      %v432 = vsel %vm430, %v420, 0
      %v435 = vsel %vm430, %v421, 0
      %437 = vmatpush.msra.mxu0 0.0
      %438 = vmatpush.msra.mxu0 0.0
      %439 = vmatpush.msra.mxu0 0.0
      %440 = vmatpush.msra.mxu0 0.0
      %441 = vmatpush.msra.mxu0 0.0
      %442 = vmatpush.msra.mxu0 0.0
      %443 = vmatpush.msra.mxu0 0.0
      %444 = vmatpush.msra.mxu0 0.0
      %445 = vmatpush.msra.mxu0 0.0
      %446 = vmatpush.msra.mxu0 0.0
      %447 = vmatpush.msra.mxu0 0.0
      %448 = vmatpush.msra.mxu0 0.0
      %449 = vmatpush.msra.mxu0 %v425
      %450 = vmatpush.msra.mxu0 %v424
      %451 = vmatpush.msra.mxu0 %v423
      %452 = vmatpush.msra.mxu0 %v422
      %453 = vmatmul.f32.gmra.mxu0 %v432
      %v454 = vpop.f32.mrf.mxu0
      %v455 = vadd.f32 %v428, %v454
      %456 = vmatmul.f32.gmra.mxu0 %v435
      %v457 = vpop.f32.mrf.mxu0
      %v458 = vadd.f32 %v428, %v457
      %459 = vdwg.mxu0
      %v460 = vld [vmem:[%s406] sm:$0x1]
      %v461 = vld [vmem:[%s409] sm:$0x1]
      %v462 = vsel %vm430, %v455, 0.0
      %463 = vadd.xlane.f32.xlu0 %v462
      %v464 = vpop.xlane.xlu0 %463
      %v465 = vsel %vm430, %v458, 0.0
      %466 = vadd.xlane.f32.xlu0 %v465
      %v467 = vpop.xlane.xlu0 %466
      %v468 = vrcp.pop 32.0
      %v469 = vmul.f32 32.0, %v468
      %v470 = vsub.f32 1.0, %v469
      %v471 = vmul.f32 %v468, %v470
      %v472 = vadd.f32 %v468, %v471
      %vm473 = vweird.f32 %v468
      %v474 = vsel %vm473, %v468, %v472
      %v475 = vmul.f32 %v464, %v474
      %v476 = vmul.f32 %v467, %v474
      %v477 = vsub.f32 %v455, %v475
      %v478 = vsub.f32 %v458, %v476
      %v479 = vmul.f32 %v477, %v477
      %v480 = vmul.f32 %v478, %v478
      %v481 = vsel %vm430, %v479, 0.0
      %482 = vadd.xlane.f32.xlu0 %v481
      %v483 = vpop.xlane.xlu0 %482
      %v484 = vsel %vm430, %v480, 0.0
      %485 = vadd.xlane.f32.xlu0 %v484
      %v486 = vpop.xlane.xlu0 %485
      %v487 = vmul.f32 %v483, %v474
      %v488 = vmul.f32 %v486, %v474
      %v489 = vadd.f32 %v487, 1e-05
      %v490 = vadd.f32 %v488, 1e-05
      %v491 = vrsqrt.pop %v489
      %v492 = vmul.f32 %v491, %v489
      %v493 = vmul.f32 %v492, %v491
      %v494 = vmul.f32 0.5, %v493
      %v495 = vsub.f32 1.5, %v494
      %v496 = vmul.f32 %v491, %v495
      %vm497 = vweird.f32 %v489
      %vm498 = vweird.f32 %v491
      %vm499 = vmor %vm497, %vm498
      %v500 = vsel %vm499, %v491, %v496
      %v501 = vrsqrt.pop %v490
      %v502 = vmul.f32 %v501, %v490
      %v503 = vmul.f32 %v502, %v501
      %v504 = vmul.f32 0.5, %v503
      %v505 = vsub.f32 1.5, %v504
      %v506 = vmul.f32 %v501, %v505
      %vm507 = vweird.f32 %v490
      %vm508 = vweird.f32 %v501
      %vm509 = vmor %vm507, %vm508
      %v510 = vsel %vm509, %v501, %v506
      %v511 = vmul.f32 %v477, %v500
      %v512 = vmul.f32 %v478, %v510
      %v514 = vperm.slane %v460, 0
      %v516 = vmul.f32 %v511, %v514
      %v517 = vmul.f32 %v512, %v514
      %v519 = vperm.slane %v461, 0
      %v521 = vadd.f32 %v516, %v519
      %v522 = vadd.f32 %v517, %v519
      %v523 = vld [vmem:[%s5] sm:$0x1]
      %v524 = vld [vmem:[%s6] sm:$0x1]
      %v525 = vsel %vm430, %v521, 0.0
      %526 = vadd.xlane.f32.xlu0 %v525
      %v527 = vpop.xlane.xlu0 %526
      %v528 = vsel %vm430, %v522, 0.0
      %529 = vadd.xlane.f32.xlu0 %v528
      %v530 = vpop.xlane.xlu0 %529
      %v531 = vmul.f32 %v527, %v474
      %v532 = vmul.f32 %v530, %v474
      %v533 = vsub.f32 %v521, %v531
      %v534 = vsub.f32 %v522, %v532
      %v535 = vmul.f32 %v533, %v533
      %v536 = vmul.f32 %v534, %v534
      %v537 = vsel %vm430, %v535, 0.0
      %538 = vadd.xlane.f32.xlu0 %v537
      %v539 = vpop.xlane.xlu0 %538
      %v540 = vsel %vm430, %v536, 0.0
      %541 = vadd.xlane.f32.xlu0 %v540
      %v542 = vpop.xlane.xlu0 %541
      %v543 = vmul.f32 %v539, %v474
      %v544 = vmul.f32 %v542, %v474
      %v545 = vadd.f32 %v543, 1e-05
      %v546 = vadd.f32 %v544, 1e-05
      %v547 = vrsqrt.pop %v545
      %v548 = vmul.f32 %v547, %v545
      %v549 = vmul.f32 %v548, %v547
      %v550 = vmul.f32 0.5, %v549
      %v551 = vsub.f32 1.5, %v550
      %v552 = vmul.f32 %v547, %v551
      %vm553 = vweird.f32 %v545
      %vm554 = vweird.f32 %v547
      %vm555 = vmor %vm553, %vm554
      %v556 = vsel %vm555, %v547, %v552
      %v557 = vrsqrt.pop %v546
      %v558 = vmul.f32 %v557, %v546
      %v559 = vmul.f32 %v558, %v557
      %v560 = vmul.f32 0.5, %v559
      %v561 = vsub.f32 1.5, %v560
      %v562 = vmul.f32 %v557, %v561
      %vm563 = vweird.f32 %v546
      %vm564 = vweird.f32 %v557
      %vm565 = vmor %vm563, %vm564
      %v566 = vsel %vm565, %v557, %v562
      %v567 = vmul.f32 %v533, %v556
      %v568 = vmul.f32 %v534, %v566
      %v570 = vperm.slane %v523, 0
      %v572 = vmul.f32 %v567, %v570
      %v573 = vmul.f32 %v568, %v570
      %v575 = vperm.slane %v524, 0
      %v577 = vadd.f32 %v572, %v575
      %v578 = vadd.f32 %v573, %v575
      %v579 = vld [vmem:[%s7] sm:$0xff]
      %v580 = vld [vmem:[%s7 + $0x8] sm:$0xff]
      %v581 = vld [vmem:[%s7 + $0x10] sm:$0xff]
      %v582 = vld [vmem:[%s7 + $0x18] sm:$0xff]
      %v583 = vld [vmem:[%s8] sm:$0x1]
      %v585 = vperm.slane %v583, 0
      %v588 = vsel %vm430, %v577, 0
      %v591 = vsel %vm430, %v578, 0
      %593 = vmatpush.msra.mxu0 0.0
      %594 = vmatpush.msra.mxu0 0.0
      %595 = vmatpush.msra.mxu0 0.0
      %596 = vmatpush.msra.mxu0 0.0
      %597 = vmatpush.msra.mxu0 0.0
      %598 = vmatpush.msra.mxu0 0.0
      %599 = vmatpush.msra.mxu0 0.0
      %600 = vmatpush.msra.mxu0 0.0
      %601 = vmatpush.msra.mxu0 0.0
      %602 = vmatpush.msra.mxu0 0.0
      %603 = vmatpush.msra.mxu0 0.0
      %604 = vmatpush.msra.mxu0 0.0
      %605 = vmatpush.msra.mxu0 %v582
      %606 = vmatpush.msra.mxu0 %v581
      %607 = vmatpush.msra.mxu0 %v580
      %608 = vmatpush.msra.mxu0 %v579
      %609 = vmatmul.f32.gmra.mxu0 %v588
      %v610 = vpop.f32.mrf.mxu0
      %v611 = vadd.f32 %v585, %v610
      %612 = vmatmul.f32.gmra.mxu0 %v591
      %v613 = vpop.f32.mrf.mxu0
      %v614 = vadd.f32 %v585, %v613
      %615 = vdwg.mxu0
      %vm616 = vcmask 785408
      %617 = vst.msk [vmem:[%s418] sm:$0xff] %vm616, %v611
      %618 = vst.msk [vmem:[%s418 + $0x8] sm:$0xff] %vm616, %v614
      %s619 = smul.u32 2, %s25
      %p620 = scmp.lt.s32.totalorder %s24, 2
      %s621 = scalar_select %p620, %s24, 2
      %p622 = scmp.lt.s32.totalorder %s619, 5
      %s623 = scalar_select %p622, %s619, 5
      %s624 = smul.addr %s621, 6
      %s625 = sadd.s32 %s623, %s624
      %s626 = smul.addr %s625, 8
      %s627 = scalar_lea.vmem %s9, %s626
      // Predicated region
      $region57: #{cross_attention_forward.4} parent=55 // pred_check
        %p628 = pneg %p266
      $region58: #{cross_attention_forward.4} parent=55 // pred_check_branch
        %630 = sbr.rel (%p628) target = $region60
      $region59: #{cross_attention_forward.4} parent=55 // pred_region
        %s631 = smul.u32 2, %s25
      $region60: #{cross_attention_forward.4} parent=55 // pred_fallthru
        _
    $region56: #{cross_attention_forward.4} parent=5 // pred_fallthru
      _
    %p632 = scmp.le.s32.totalorder 2, %s15
    // Predicated region
    $region61: #{cross_attention_forward.4} parent=5 // pred_check
      %p633 = pneg %p632
    $region62: #{cross_attention_forward.4} parent=5 // pred_check_branch
      %635 = sbr.rel (%p633) target = $region64
    $region63: #{cross_attention_forward.4} parent=5 // pred_region
      %s636 = ssub.s32 %s15, 2
      // Predicated region
      $region65: #{cross_attention_forward.4} parent=63 // pred_check
        %p637 = pneg %p272
      $region66: #{cross_attention_forward.4} parent=63 // pred_check_branch
        %639 = sbr.rel (%p637) target = $region68
      $region67: #{cross_attention_forward.4} parent=63 // pred_region
        %s640 = smul.u32 2, %s27
        %p641 = scmp.lt.s32.totalorder %s26, 2
        %s642 = scalar_select %p641, %s26, 2
        %p643 = scmp.lt.s32.totalorder %s640, 5
        %s644 = scalar_select %p643, %s640, 5
        %s645 = smul.addr %s642, 6
        %s646 = sadd.s32 %s644, %s645
        %s647 = smul.addr %s646, 8
        %s648 = scalar_lea.vmem %s9, %s647
      $region68: #{cross_attention_forward.4} parent=63 // pred_fallthru
        _
    $region64: #{cross_attention_forward.4} parent=5 // pred_fallthru
      _
  $region6: #{cross_attention_forward.4} parent=0 // loop_footer
    %s19 = sadd.s32 1, %s15
  $region7: #{cross_attention_forward.4} parent=0 // loop_footer_branch
    %14 = sbr.rel target = $region3
  $region8: #{cross_attention_forward.4} parent=0 // loop_exit
    _

// kernel: cross_attention_forward.6
$region0: #{cross_attention_forward.6}
  #allocation0 [shape = 'u32[]', space=smem, size = 0x4, offset = 0x4, fixed_abs, tag = 'smem constant byte address 0x4 - core index']
  #allocation1 [shape = 'u32[72,128]{1,0:T(1,128)}', space=vmem, size = 0x9000, scoped, tag = 'internal scratch']
  #allocation2 [shape = 'f32[8,32]{1,0:T(8,128)}', space=vmem, size = 0x1000, scoped, tag = 'scratch operand']
  %s0 = inlined_call_operand.vmem [shape: f32[3], index: 0, kind: input, shape index: {}]
  %s1 = inlined_call_operand.vmem [shape: f32[3,16,32], index: 1, kind: input, shape index: {}]
  %s2 = inlined_call_operand.vmem [shape: f32[3,32,32], index: 2, kind: input, shape index: {}]
  %s3 = inlined_call_operand.vmem [shape: f32[3,32,32], index: 3, kind: input, shape index: {}]
  %s4 = inlined_call_operand.vmem [shape: f32[16,32], index: 4, kind: output, shape index: {}]
  %s5 = sld [smem:[#allocation0]]
  $region61: #{cross_attention_forward.6} parent=0
    _
  %s7 = ssub.s32 1, %s5
  %s8 = scalar_select 0, %s7, %s5
  $region1: #{cross_attention_forward.6} parent=0
    #allocation3 [shape = 'u8[512]{0}', space=smem, size = 0x200, scoped, tag = 'input window, operand 0, single buffered']
    #allocation4 [shape = 's32[2]{0}', space=sflag, size = 0x8, scoped, tag = 'scoped memory for cross_attention_forward.6']
    %9 = vsyncpa [#allocation4], 0
    loop: start=0, step=1, limit=8
    $region2: #{cross_attention_forward.6} parent=1 // loop_pre_header
      _
    $region3: #{cross_attention_forward.6} parent=1 // loop_header
      %s11 = sphi 0, %s15
      %p12 = scmp.ge.s32.totalorder %s11, 8
      %s18 = sphi 0, %s30
      %s19 = sphi 0, %s26
      %s20 = sphi 0, %s18
      %s21 = sphi 0, %s19
      %s22 = sphi 0, %s20
      %s23 = sphi 0, %s21
      %s31 = sphi 0, %s31
      %s33 = sphi 0, %s31
      %s34 = sphi 0, %s33
      %s48 = sphi 0, %s34
      %s56 = sphi 0, %s58
      %s59 = sphi 0, %s56
      %s60 = sphi 0, %s59
      %s76 = sphi 0, %s60
      %s84 = sphi 0, %s86
      %s87 = sphi 0, %s84
      %s88 = sphi 0, %s87
      %s104 = sphi 0, %s88
      %s112 = sphi 0, %s114
      %s115 = sphi 0, %s112
      %s116 = sphi 0, %s115
      %s132 = sphi 0, %s116
      %s138 = sphi 0, %s140
      %s141 = sphi 0, %s138
      %s142 = sphi 0, %s141
      %s158 = sphi 0, %s142
    $region4: #{cross_attention_forward.6} parent=1 // loop_header_branch
      %14 = sbr.rel (%p12) target = $region8
    $region5: #{cross_attention_forward.6} parent=1 // loop_body
      %s16 = ssub.s32 %s11, 1
      %s17 = ssub.s32 %s11, 2
      %s24 = sadd.s32 1, %s19
      %p25 = scmp.ge.s32.totalorder %s24, 3
      %s26 = scalar_select %p25, 0, %s24
      %s27 = sadd.s32 1, %s18
      %s28 = scalar_select %p25, %s27, %s18
      %p29 = scmp.ge.s32.totalorder %s28, 2
      %s30 = scalar_select %p29, 0, %s28
      %s32 = sadd.s32 %s31, 1
      %p35 = scmp.eq.s32.totalorder %s11, 5
      %p36 = scmp.ne.s32.totalorder %s31, %s33
      %p37 = scmp.eq.s32.totalorder %s11, 0
      %p38 = por %p36, %p37
      %p39 = scmp.ne.s32.totalorder %s31, %s33
      %p40 = scmp.eq.s32.totalorder %s16, 5
      %p41 = por %p39, %p40
      %p42 = scmp.ne.s32.totalorder %s33, %s34
      %p43 = scmp.eq.s32.totalorder %s16, 0
      %p44 = por %p42, %p43
      %p45 = scmp.ne.s32.totalorder %s33, %s34
      %p46 = scmp.eq.s32.totalorder %s17, 5
      %p47 = por %p45, %p46
      %p49 = scmp.ne.s32.totalorder %s34, %s48
      %p50 = scmp.eq.s32.totalorder %s17, 0
      %p51 = por %p49, %p50
      %s52 = ssub.s32 %s19, %s26
      %s53 = ssub.s32 %s18, %s30
      %s54 = sor.u32 %s52, %s53
      %p55 = scmp.eq.s32.totalorder %s54, 0
      %s57 = sadd.s32 %s56, 1
      %s58 = scalar_select %p55, %s56, %s57
      %p61 = pneg %p55
      %p62 = scmp.eq.s32.totalorder %s11, 5
      %p63 = por %p61, %p62
      %p64 = scmp.ne.s32.totalorder %s56, %s59
      %p65 = scmp.eq.s32.totalorder %s11, 0
      %p66 = por %p64, %p65
      %p67 = scmp.ne.s32.totalorder %s56, %s59
      %p68 = scmp.eq.s32.totalorder %s16, 5
      %p69 = por %p67, %p68
      %p70 = scmp.ne.s32.totalorder %s59, %s60
      %p71 = scmp.eq.s32.totalorder %s16, 0
      %p72 = por %p70, %p71
      %p73 = scmp.ne.s32.totalorder %s59, %s60
      %p74 = scmp.eq.s32.totalorder %s17, 5
      %p75 = por %p73, %p74
      %p77 = scmp.ne.s32.totalorder %s60, %s76
      %p78 = scmp.eq.s32.totalorder %s17, 0
      %p79 = por %p77, %p78
      %s80 = ssub.s32 %s19, %s26
      %s81 = ssub.s32 %s18, %s30
      %s82 = sor.u32 %s80, %s81
      %p83 = scmp.eq.s32.totalorder %s82, 0
      %s85 = sadd.s32 %s84, 1
      %s86 = scalar_select %p83, %s84, %s85
      %p89 = pneg %p83
      %p90 = scmp.eq.s32.totalorder %s11, 5
      %p91 = por %p89, %p90
      %p92 = scmp.ne.s32.totalorder %s84, %s87
      %p93 = scmp.eq.s32.totalorder %s11, 0
      %p94 = por %p92, %p93
      %p95 = scmp.ne.s32.totalorder %s84, %s87
      %p96 = scmp.eq.s32.totalorder %s16, 5
      %p97 = por %p95, %p96
      %p98 = scmp.ne.s32.totalorder %s87, %s88
      %p99 = scmp.eq.s32.totalorder %s16, 0
      %p100 = por %p98, %p99
      %p101 = scmp.ne.s32.totalorder %s87, %s88
      %p102 = scmp.eq.s32.totalorder %s17, 5
      %p103 = por %p101, %p102
      %p105 = scmp.ne.s32.totalorder %s88, %s104
      %p106 = scmp.eq.s32.totalorder %s17, 0
      %p107 = por %p105, %p106
      %s108 = ssub.s32 %s19, %s26
      %s109 = ssub.s32 %s18, %s30
      %s110 = sor.u32 %s108, %s109
      %p111 = scmp.eq.s32.totalorder %s110, 0
      %s113 = sadd.s32 %s112, 1
      %s114 = scalar_select %p111, %s112, %s113
      %p117 = pneg %p111
      %p118 = scmp.eq.s32.totalorder %s11, 5
      %p119 = por %p117, %p118
      %p120 = scmp.ne.s32.totalorder %s112, %s115
      %p121 = scmp.eq.s32.totalorder %s11, 0
      %p122 = por %p120, %p121
      %p123 = scmp.ne.s32.totalorder %s112, %s115
      %p124 = scmp.eq.s32.totalorder %s16, 5
      %p125 = por %p123, %p124
      %p126 = scmp.ne.s32.totalorder %s115, %s116
      %p127 = scmp.eq.s32.totalorder %s16, 0
      %p128 = por %p126, %p127
      %p129 = scmp.ne.s32.totalorder %s115, %s116
      %p130 = scmp.eq.s32.totalorder %s17, 5
      %p131 = por %p129, %p130
      %p133 = scmp.ne.s32.totalorder %s116, %s132
      %p134 = scmp.eq.s32.totalorder %s17, 0
      %p135 = por %p133, %p134
      %s136 = ssub.s32 %s18, %s30
      %p137 = scmp.eq.s32.totalorder %s136, 0
      %s139 = sadd.s32 %s138, 1
      %s140 = scalar_select %p137, %s138, %s139
      %p143 = pneg %p137
      %p144 = scmp.eq.s32.totalorder %s11, 5
      %p145 = por %p143, %p144
      %p146 = scmp.ne.s32.totalorder %s138, %s141
      %p147 = scmp.eq.s32.totalorder %s11, 0
      %p148 = por %p146, %p147
      %p149 = scmp.ne.s32.totalorder %s138, %s141
      %p150 = scmp.eq.s32.totalorder %s16, 5
      %p151 = por %p149, %p150
      %p152 = scmp.ne.s32.totalorder %s141, %s142
      %p153 = scmp.eq.s32.totalorder %s16, 0
      %p154 = por %p152, %p153
      %p155 = scmp.ne.s32.totalorder %s141, %s142
      %p156 = scmp.eq.s32.totalorder %s17, 5
      %p157 = por %p155, %p156
      %p159 = scmp.ne.s32.totalorder %s142, %s158
      %p160 = scmp.eq.s32.totalorder %s17, 0
      %p161 = por %p159, %p160
      %p162 = scmp.le.s32.totalorder 1, %s11
      %p163 = scmp.lt.s32.totalorder %s11, 7
      %p164 = pnand %p162, %p163
      %p165 = pneg %p164
      // Predicated region
      $region9: #{cross_attention_forward.6} parent=5 // pred_check
        _
      $region10: #{cross_attention_forward.6} parent=5 // pred_check_branch
        %167 = sbr.rel (%p164) target = $region12
      $region11: #{cross_attention_forward.6} parent=5 // pred_region
        %s168 = ssub.s32 %s11, 1
        // Predicated region
        $region13: #{cross_attention_forward.6} parent=11 // pred_check
          %p169 = pneg %p44
        $region14: #{cross_attention_forward.6} parent=11 // pred_check_branch
          %171 = sbr.rel (%p169) target = $region16
        $region15: #{cross_attention_forward.6} parent=11 // pred_region
          %173 = vsyncadd [#allocation4], 0
          %s175 = sshll.u32 %s0, 4
          %s176 = int_to_ptr.vmem [resolvable:$true] %s175
          %178 = dma.vmem_to_smem %s176, 16, [#allocation3], [#allocation4]
        $region16: #{cross_attention_forward.6} parent=11 // pred_fallthru
          _
      $region12: #{cross_attention_forward.6} parent=5 // pred_fallthru
        _
      %p179 = scmp.lt.s32.totalorder %s11, 6
      // Predicated region
      $region17: #{cross_attention_forward.6} parent=5 // pred_check
        %p180 = pneg %p179
      $region18: #{cross_attention_forward.6} parent=5 // pred_check_branch
        %182 = sbr.rel (%p180) target = $region20
      $region19: #{cross_attention_forward.6} parent=5 // pred_region
        // Predicated region
        $region21: #{cross_attention_forward.6} parent=19 // pred_check
          %p183 = pneg %p66
        $region22: #{cross_attention_forward.6} parent=19 // pred_check_branch
          %185 = sbr.rel (%p183) target = $region24
        $region23: #{cross_attention_forward.6} parent=19 // pred_region
          %p186 = scmp.lt.s32.totalorder %s19, 2
          %s187 = scalar_select %p186, %s19, 2
          %p188 = scmp.lt.s32.totalorder %s18, 1
          %s189 = scalar_select %p188, %s18, 1
          %s190 = smul.addr %s187, 2
          %s191 = sadd.s32 %s189, %s190
          %s192 = smul.addr %s191, 8
          %s193 = scalar_lea.vmem %s1, %s192
        $region24: #{cross_attention_forward.6} parent=19 // pred_fallthru
          _
        // Predicated region
        $region25: #{cross_attention_forward.6} parent=19 // pred_check
          %p194 = pneg %p94
        $region26: #{cross_attention_forward.6} parent=19 // pred_check_branch
          %196 = sbr.rel (%p194) target = $region28
        $region27: #{cross_attention_forward.6} parent=19 // pred_region
          %s197 = smul.u32 2, %s18
          %p198 = scmp.lt.s32.totalorder %s19, 2
          %s199 = scalar_select %p198, %s19, 2
          %p200 = scmp.lt.s32.totalorder %s197, 3
          %s201 = scalar_select %p200, %s197, 3
          %s202 = smul.addr %s199, 4
          %s203 = sadd.s32 %s201, %s202
          %s204 = smul.addr %s203, 8
          %s205 = scalar_lea.vmem %s2, %s204
          %s206 = smul.u32 2, %s18
        $region28: #{cross_attention_forward.6} parent=19 // pred_fallthru
          _
        // Predicated region
        $region29: #{cross_attention_forward.6} parent=19 // pred_check
          %p207 = pneg %p122
        $region30: #{cross_attention_forward.6} parent=19 // pred_check_branch
          %209 = sbr.rel (%p207) target = $region32
        $region31: #{cross_attention_forward.6} parent=19 // pred_region
          %s210 = smul.u32 2, %s18
          %p211 = scmp.lt.s32.totalorder %s19, 2
          %s212 = scalar_select %p211, %s19, 2
          %p213 = scmp.lt.s32.totalorder %s210, 3
          %s214 = scalar_select %p213, %s210, 3
          %s215 = smul.addr %s212, 4
          %s216 = sadd.s32 %s214, %s215
          %s217 = smul.addr %s216, 8
          %s218 = scalar_lea.vmem %s3, %s217
          %s219 = smul.u32 2, %s18
        $region32: #{cross_attention_forward.6} parent=19 // pred_fallthru
          _
      $region20: #{cross_attention_forward.6} parent=5 // pred_fallthru
        _
      %p220 = scmp.le.s32.totalorder 1, %s11
      %p221 = scmp.lt.s32.totalorder %s11, 7
      %p222 = pnand %p220, %p221
      %p223 = pneg %p222
      // Predicated region
      $region33: #{cross_attention_forward.6} parent=5 // pred_check
        _
      $region34: #{cross_attention_forward.6} parent=5 // pred_check_branch
        %225 = sbr.rel (%p222) target = $region36
      $region35: #{cross_attention_forward.6} parent=5 // pred_region
        %s226 = ssub.s32 %s11, 1
        // Predicated region
        $region37: #{cross_attention_forward.6} parent=35 // pred_check
          %p227 = pneg %p44
        $region38: #{cross_attention_forward.6} parent=35 // pred_check_branch
          %229 = sbr.rel (%p227) target = $region40
        $region39: #{cross_attention_forward.6} parent=35 // pred_region
          %231 = dma.done [#allocation4], 16
        $region40: #{cross_attention_forward.6} parent=35 // pred_fallthru
          _
        %232 = sfence
        %p233 = pneg %p44
        %p234 = pneg %p41
        %p235 = scmp.lt.s32.totalorder %s21, 2
        %s236 = scalar_select %p235, %s21, 2
        %p237 = scmp.lt.s32.totalorder %s20, 1
        %s238 = scalar_select %p237, %s20, 1
        %s239 = smul.addr %s236, 2
        %s240 = sadd.s32 %s238, %s239
        %s241 = smul.addr %s240, 8
        %s242 = scalar_lea.vmem %s1, %s241
        %p243 = pneg %p72
        %p244 = pneg %p69
        %s245 = smul.u32 2, %s20
        %p246 = scmp.lt.s32.totalorder %s21, 2
        %s247 = scalar_select %p246, %s21, 2
        %p248 = scmp.lt.s32.totalorder %s245, 3
        %s249 = scalar_select %p248, %s245, 3
        %s250 = smul.addr %s247, 4
        %s251 = sadd.s32 %s249, %s250
        %s252 = smul.addr %s251, 8
        %s253 = scalar_lea.vmem %s2, %s252
        %p254 = pneg %p100
        %p255 = pneg %p97
        %s256 = smul.u32 2, %s20
        %p257 = scmp.lt.s32.totalorder %s21, 2
        %s258 = scalar_select %p257, %s21, 2
        %p259 = scmp.lt.s32.totalorder %s256, 3
        %s260 = scalar_select %p259, %s256, 3
        %s261 = smul.addr %s258, 4
        %s262 = sadd.s32 %s260, %s261
        %s263 = smul.addr %s262, 8
        %s264 = scalar_lea.vmem %s3, %s263
        %p265 = pneg %p128
        %p266 = pneg %p125
        %p267 = pneg %p154
        %p268 = pneg %p151
        %p269 = scmp.lt.s32.totalorder %s20, 1
        %s270 = scalar_select %p269, %s20, 1
        %s271 = smul.addr %s270, 8
        %s272 = scalar_lea.vmem %s4, %s271
        %p273 = scmp.lt.s32.totalorder %s21, 2
        %s274 = scalar_select %p273, %s21, 2
        %p275 = scmp.lt.s32.totalorder %s20, 1
        %s276 = scalar_select %p275, %s20, 1
        %s277 = smul.addr %s274, 2
        %s278 = sadd.s32 %s276, %s277
        %s279 = smul.addr %s278, 8
        %s280 = scalar_lea.vmem %s1, %s279
        %s281 = smul.u32 2, %s20
        %p282 = scmp.lt.s32.totalorder %s21, 2
        %s283 = scalar_select %p282, %s21, 2
        %p284 = scmp.lt.s32.totalorder %s281, 3
        %s285 = scalar_select %p284, %s281, 3
        %s286 = smul.addr %s283, 4
        %s287 = sadd.s32 %s285, %s286
        %s288 = smul.addr %s287, 8
        %s289 = scalar_lea.vmem %s2, %s288
        %s290 = smul.u32 2, %s20
        %s291 = smul.u32 2, %s20
        %p292 = scmp.lt.s32.totalorder %s21, 2
        %s293 = scalar_select %p292, %s21, 2
        %p294 = scmp.lt.s32.totalorder %s291, 3
        %s295 = scalar_select %p294, %s291, 3
        %s296 = smul.addr %s293, 4
        %s297 = sadd.s32 %s295, %s296
        %s298 = smul.addr %s297, 8
        %s299 = scalar_lea.vmem %s3, %s298
        %s300 = smul.u32 2, %s20
        %p301 = scmp.lt.s32.totalorder %s20, 1
        %s302 = scalar_select %p301, %s20, 1
        %s303 = smul.addr %s302, 8
        %s304 = scalar_lea.vmem %s4, %s303
        %p305 = scmp.eq.s32.totalorder %s21, 0
        // Predicated region
        $region41: #{cross_attention_forward.6} parent=35 // pred_check
          %p306 = pneg %p305
        $region42: #{cross_attention_forward.6} parent=35 // pred_check_branch
          %308 = sbr.rel (%p306) target = $region44
        $region43: #{cross_attention_forward.6} parent=35 // pred_region
          %vm309 = vcmask 261120
          %310 = vst.msk [vmem:[#allocation2] sm:$0xff] %vm309, 0.0
        $region44: #{cross_attention_forward.6} parent=35 // pred_fallthru
          _
        %v311 = vld [vmem:[%s280] sm:$0xff]
        %v312 = vld [vmem:[%s289] sm:$0xff]
        %v313 = vld [vmem:[%s289 + $0x8] sm:$0xff]
        %v314 = vld [vmem:[%s299] sm:$0xff]
        %v315 = vld [vmem:[%s299 + $0x8] sm:$0xff]
        %v316 = vmul.f32 %v311, 0.5
        %vm317 = vcmask 31744
        %v319 = vsel %vm317, %v316, 0
        %v322 = vsel %vm317, %v312, 0
        %v325 = vsel %vm317, %v313, 0
        %327 = vmatpush.xpose.msra.mxu0 0.0
        %328 = vmatpush.xpose.msra.mxu0 0.0
        %329 = vmatpush.xpose.msra.mxu0 0.0
        %330 = vmatpush.xpose.msra.mxu0 0.0
        %331 = vmatpush.xpose.msra.mxu0 0.0
        %332 = vmatpush.xpose.msra.mxu0 0.0
        %333 = vmatpush.xpose.msra.mxu0 0.0
        %334 = vmatpush.xpose.msra.mxu0 0.0
        %335 = vmatpush.xpose.msra.mxu0 0.0
        %336 = vmatpush.xpose.msra.mxu0 0.0
        %337 = vmatpush.xpose.msra.mxu0 0.0
        %338 = vmatpush.xpose.msra.mxu0 0.0
        %339 = vmatpush.xpose.msra.mxu0 0.0
        %340 = vmatpush.xpose.msra.mxu0 0.0
        %341 = vmatpush.xpose.msra.mxu0 %v325
        %342 = vmatpush.xpose.msra.mxu0 %v322
        %343 = vmatmul.f32.gmra.mxu0 %v319
        %v344 = vpop.f32.mrf.mxu0
        %v345 = vadd.f32 0.0, %v344
        %346 = vdwg.mxu0
        %vm347 = vcmask 130048
        %v348 = vsel %vm347, %v345, -inf
        %349 = vmax.xlane.f32.xlu0 %v348
        %v350 = vpop.xlane.xlu0 %349
        %v351 = vsub.f32 %v345, %v350
        %v352 = vmul.f32 %v351, 1.442695
        %v353 = vpow.pop %v352
        %v354 = vsel %vm347, %v353, 0.0
        %355 = vadd.xlane.f32.xlu0 %v354
        %v356 = vpop.xlane.xlu0 %355
        %v357 = vrcp.pop %v356
        %v358 = vmul.f32 %v353, %v357
        %v360 = vsel %vm347, %v358, 0
        %362 = vmatpush.msra.mxu0 0.0
        %363 = vmatpush.msra.mxu0 0.0
        %364 = vmatpush.msra.mxu0 0.0
        %365 = vmatpush.msra.mxu0 0.0
        %366 = vmatpush.msra.mxu0 0.0
        %367 = vmatpush.msra.mxu0 0.0
        %368 = vmatpush.msra.mxu0 0.0
        %369 = vmatpush.msra.mxu0 0.0
        %370 = vmatpush.msra.mxu0 0.0
        %371 = vmatpush.msra.mxu0 0.0
        %372 = vmatpush.msra.mxu0 0.0
        %373 = vmatpush.msra.mxu0 0.0
        %374 = vmatpush.msra.mxu0 0.0
        %375 = vmatpush.msra.mxu0 0.0
        %376 = vmatpush.msra.mxu0 %v315
        %377 = vmatpush.msra.mxu0 %v314
        %378 = vmatmul.f32.gmra.mxu0 %v360
        %v379 = vpop.f32.mrf.mxu0
        %v380 = vadd.f32 0.0, %v379
        %381 = vdwg.mxu0
        %382 = vrot.lane.b32.xlu0 %v316, 124
        %v383 = vpop.permute.xlu0 %382
        %384 = vrot.lane.b32.xlu0 %v312, 124
        %v385 = vpop.permute.xlu0 %384
        %386 = vrot.lane.b32.xlu0 %v313, 124
        %v387 = vpop.permute.xlu0 %386
        %v388 = vsel %vm317, %v383, 0
        %v390 = vsel %vm317, %v385, 0
        %v392 = vsel %vm317, %v387, 0
        %394 = vmatpush.xpose.msra.mxu0 0.0
        %395 = vmatpush.xpose.msra.mxu0 0.0
        %396 = vmatpush.xpose.msra.mxu0 0.0
        %397 = vmatpush.xpose.msra.mxu0 0.0
        %398 = vmatpush.xpose.msra.mxu0 0.0
        %399 = vmatpush.xpose.msra.mxu0 0.0
        %400 = vmatpush.xpose.msra.mxu0 0.0
        %401 = vmatpush.xpose.msra.mxu0 0.0
        %402 = vmatpush.xpose.msra.mxu0 0.0
        %403 = vmatpush.xpose.msra.mxu0 0.0
        %404 = vmatpush.xpose.msra.mxu0 0.0
        %405 = vmatpush.xpose.msra.mxu0 0.0
        %406 = vmatpush.xpose.msra.mxu0 0.0
        %407 = vmatpush.xpose.msra.mxu0 0.0
        %408 = vmatpush.xpose.msra.mxu0 %v392
        %409 = vmatpush.xpose.msra.mxu0 %v390
        %410 = vmatmul.f32.gmra.mxu0 %v388
        %v411 = vpop.f32.mrf.mxu0
        %v412 = vadd.f32 0.0, %v411
        %413 = vdwg.mxu0
        %v414 = vsel %vm347, %v412, -inf
        %415 = vmax.xlane.f32.xlu0 %v414
        %v416 = vpop.xlane.xlu0 %415
        %v417 = vsub.f32 %v412, %v416
        %v418 = vmul.f32 %v417, 1.442695
        %v419 = vpow.pop %v418
        %v420 = vsel %vm347, %v419, 0.0
        %421 = vadd.xlane.f32.xlu0 %v420
        %v422 = vpop.xlane.xlu0 %421
        %v423 = vrcp.pop %v422
        %v424 = vmul.f32 %v419, %v423
        %427 = vrot.lane.b32.xlu0 %v314, 124
        %v428 = vpop.permute.xlu0 %427
        %429 = vrot.lane.b32.xlu0 %v315, 124
        %v430 = vpop.permute.xlu0 %429
        %v434 = vsel %vm347, %v424, 0
        %436 = vmatpush.msra.mxu0 0.0
        %437 = vmatpush.msra.mxu0 0.0
        %438 = vmatpush.msra.mxu0 0.0
        %439 = vmatpush.msra.mxu0 0.0
        %440 = vmatpush.msra.mxu0 0.0
        %441 = vmatpush.msra.mxu0 0.0
        %442 = vmatpush.msra.mxu0 0.0
        %443 = vmatpush.msra.mxu0 0.0
        %444 = vmatpush.msra.mxu0 0.0
        %445 = vmatpush.msra.mxu0 0.0
        %446 = vmatpush.msra.mxu0 0.0
        %447 = vmatpush.msra.mxu0 0.0
        %448 = vmatpush.msra.mxu0 0.0
        %449 = vmatpush.msra.mxu0 0.0
        %450 = vmatpush.msra.mxu0 %v430
        %451 = vmatpush.msra.mxu0 %v428
        %452 = vmatmul.f32.gmra.mxu0 %v434
        %v453 = vpop.f32.mrf.mxu0
        %v454 = vadd.f32 0.0, %v453
        %455 = vdwg.mxu0
        %456 = vrot.lane.b32.xlu0 %v316, 120
        %v457 = vpop.permute.xlu0 %456
        %458 = vrot.lane.b32.xlu0 %v312, 120
        %v459 = vpop.permute.xlu0 %458
        %460 = vrot.lane.b32.xlu0 %v313, 120
        %v461 = vpop.permute.xlu0 %460
        %v462 = vsel %vm317, %v457, 0
        %v464 = vsel %vm317, %v459, 0
        %v466 = vsel %vm317, %v461, 0
        %468 = vmatpush.xpose.msra.mxu0 0.0
        %469 = vmatpush.xpose.msra.mxu0 0.0
        %470 = vmatpush.xpose.msra.mxu0 0.0
        %471 = vmatpush.xpose.msra.mxu0 0.0
        %472 = vmatpush.xpose.msra.mxu0 0.0
        %473 = vmatpush.xpose.msra.mxu0 0.0
        %474 = vmatpush.xpose.msra.mxu0 0.0
        %475 = vmatpush.xpose.msra.mxu0 0.0
        %476 = vmatpush.xpose.msra.mxu0 0.0
        %477 = vmatpush.xpose.msra.mxu0 0.0
        %478 = vmatpush.xpose.msra.mxu0 0.0
        %479 = vmatpush.xpose.msra.mxu0 0.0
        %480 = vmatpush.xpose.msra.mxu0 0.0
        %481 = vmatpush.xpose.msra.mxu0 0.0
        %482 = vmatpush.xpose.msra.mxu0 %v466
        %483 = vmatpush.xpose.msra.mxu0 %v464
        %484 = vmatmul.f32.gmra.mxu0 %v462
        %v485 = vpop.f32.mrf.mxu0
        %v486 = vadd.f32 0.0, %v485
        %487 = vdwg.mxu0
        %v488 = vsel %vm347, %v486, -inf
        %489 = vmax.xlane.f32.xlu0 %v488
        %v490 = vpop.xlane.xlu0 %489
        %v491 = vsub.f32 %v486, %v490
        %v492 = vmul.f32 %v491, 1.442695
        %v493 = vpow.pop %v492
        %v494 = vsel %vm347, %v493, 0.0
        %495 = vadd.xlane.f32.xlu0 %v494
        %v496 = vpop.xlane.xlu0 %495
        %v497 = vrcp.pop %v496
        %v498 = vmul.f32 %v493, %v497
        %499 = vrot.lane.b32.xlu0 %v314, 120
        %v500 = vpop.permute.xlu0 %499
        %501 = vrot.lane.b32.xlu0 %v315, 120
        %v502 = vpop.permute.xlu0 %501
        %v506 = vsel %vm347, %v498, 0
        %508 = vmatpush.msra.mxu0 0.0
        %509 = vmatpush.msra.mxu0 0.0
        %510 = vmatpush.msra.mxu0 0.0
        %511 = vmatpush.msra.mxu0 0.0
        %512 = vmatpush.msra.mxu0 0.0
        %513 = vmatpush.msra.mxu0 0.0
        %514 = vmatpush.msra.mxu0 0.0
        %515 = vmatpush.msra.mxu0 0.0
        %516 = vmatpush.msra.mxu0 0.0
        %517 = vmatpush.msra.mxu0 0.0
        %518 = vmatpush.msra.mxu0 0.0
        %519 = vmatpush.msra.mxu0 0.0
        %520 = vmatpush.msra.mxu0 0.0
        %521 = vmatpush.msra.mxu0 0.0
        %522 = vmatpush.msra.mxu0 %v502
        %523 = vmatpush.msra.mxu0 %v500
        %524 = vmatmul.f32.gmra.mxu0 %v506
        %v525 = vpop.f32.mrf.mxu0
        %v526 = vadd.f32 0.0, %v525
        %527 = vdwg.mxu0
        %528 = vrot.lane.b32.xlu0 %v316, 116
        %v529 = vpop.permute.xlu0 %528
        %530 = vrot.lane.b32.xlu0 %v312, 116
        %v531 = vpop.permute.xlu0 %530
        %532 = vrot.lane.b32.xlu0 %v313, 116
        %v533 = vpop.permute.xlu0 %532
        %v534 = vsel %vm317, %v529, 0
        %v536 = vsel %vm317, %v531, 0
        %v538 = vsel %vm317, %v533, 0
        %540 = vmatpush.xpose.msra.mxu0 0.0
        %541 = vmatpush.xpose.msra.mxu0 0.0
        %542 = vmatpush.xpose.msra.mxu0 0.0
        %543 = vmatpush.xpose.msra.mxu0 0.0
        %544 = vmatpush.xpose.msra.mxu0 0.0
        %545 = vmatpush.xpose.msra.mxu0 0.0
        %546 = vmatpush.xpose.msra.mxu0 0.0
        %547 = vmatpush.xpose.msra.mxu0 0.0
        %548 = vmatpush.xpose.msra.mxu0 0.0
        %549 = vmatpush.xpose.msra.mxu0 0.0
        %550 = vmatpush.xpose.msra.mxu0 0.0
        %551 = vmatpush.xpose.msra.mxu0 0.0
        %552 = vmatpush.xpose.msra.mxu0 0.0
        %553 = vmatpush.xpose.msra.mxu0 0.0
        %554 = vmatpush.xpose.msra.mxu0 %v538
        %555 = vmatpush.xpose.msra.mxu0 %v536
        %556 = vmatmul.f32.gmra.mxu0 %v534
        %v557 = vpop.f32.mrf.mxu0
        %v558 = vadd.f32 0.0, %v557
        %559 = vdwg.mxu0
        %v560 = vsel %vm347, %v558, -inf
        %561 = vmax.xlane.f32.xlu0 %v560
        %v562 = vpop.xlane.xlu0 %561
        %v563 = vsub.f32 %v558, %v562
        %v564 = vmul.f32 %v563, 1.442695
        %v565 = vpow.pop %v564
        %v566 = vsel %vm347, %v565, 0.0
        %567 = vadd.xlane.f32.xlu0 %v566
        %v568 = vpop.xlane.xlu0 %567
        %v569 = vrcp.pop %v568
        %v570 = vmul.f32 %v565, %v569
        %571 = vrot.lane.b32.xlu0 %v314, 116
        %v572 = vpop.permute.xlu0 %571
        %573 = vrot.lane.b32.xlu0 %v315, 116
        %v574 = vpop.permute.xlu0 %573
        %v578 = vsel %vm347, %v570, 0
        %580 = vmatpush.msra.mxu0 0.0
        %581 = vmatpush.msra.mxu0 0.0
        %582 = vmatpush.msra.mxu0 0.0
        %583 = vmatpush.msra.mxu0 0.0
        %584 = vmatpush.msra.mxu0 0.0
        %585 = vmatpush.msra.mxu0 0.0
        %586 = vmatpush.msra.mxu0 0.0
        %587 = vmatpush.msra.mxu0 0.0
        %588 = vmatpush.msra.mxu0 0.0
        %589 = vmatpush.msra.mxu0 0.0
        %590 = vmatpush.msra.mxu0 0.0
        %591 = vmatpush.msra.mxu0 0.0
        %592 = vmatpush.msra.mxu0 0.0
        %593 = vmatpush.msra.mxu0 0.0
        %594 = vmatpush.msra.mxu0 %v574
        %595 = vmatpush.msra.mxu0 %v572
        %596 = vmatmul.f32.gmra.mxu0 %v578
        %v597 = vpop.f32.mrf.mxu0
        %v598 = vadd.f32 0.0, %v597
        %599 = vdwg.mxu0
        %600 = vrot.lane.b32.xlu0 %v316, 112
        %v601 = vpop.permute.xlu0 %600
        %602 = vrot.lane.b32.xlu0 %v312, 112
        %v603 = vpop.permute.xlu0 %602
        %604 = vrot.lane.b32.xlu0 %v313, 112
        %v605 = vpop.permute.xlu0 %604
        %v606 = vsel %vm317, %v601, 0
        %v608 = vsel %vm317, %v603, 0
        %v610 = vsel %vm317, %v605, 0
        %612 = vmatpush.xpose.msra.mxu0 0.0
        %613 = vmatpush.xpose.msra.mxu0 0.0
        %614 = vmatpush.xpose.msra.mxu0 0.0
        %615 = vmatpush.xpose.msra.mxu0 0.0
        %616 = vmatpush.xpose.msra.mxu0 0.0
        %617 = vmatpush.xpose.msra.mxu0 0.0
        %618 = vmatpush.xpose.msra.mxu0 0.0
        %619 = vmatpush.xpose.msra.mxu0 0.0
        %620 = vmatpush.xpose.msra.mxu0 0.0
        %621 = vmatpush.xpose.msra.mxu0 0.0
        %622 = vmatpush.xpose.msra.mxu0 0.0
        %623 = vmatpush.xpose.msra.mxu0 0.0
        %624 = vmatpush.xpose.msra.mxu0 0.0
        %625 = vmatpush.xpose.msra.mxu0 0.0
        %626 = vmatpush.xpose.msra.mxu0 %v610
        %627 = vmatpush.xpose.msra.mxu0 %v608
        %628 = vmatmul.f32.gmra.mxu0 %v606
        %v629 = vpop.f32.mrf.mxu0
        %v630 = vadd.f32 0.0, %v629
        %631 = vdwg.mxu0
        %v632 = vsel %vm347, %v630, -inf
        %633 = vmax.xlane.f32.xlu0 %v632
        %v634 = vpop.xlane.xlu0 %633
        %v635 = vsub.f32 %v630, %v634
        %v636 = vmul.f32 %v635, 1.442695
        %v637 = vpow.pop %v636
        %v638 = vsel %vm347, %v637, 0.0
        %639 = vadd.xlane.f32.xlu0 %v638
        %v640 = vpop.xlane.xlu0 %639
        %v641 = vrcp.pop %v640
        %v642 = vmul.f32 %v637, %v641
        %643 = vrot.lane.b32.xlu0 %v314, 112
        %v644 = vpop.permute.xlu0 %643
        %645 = vrot.lane.b32.xlu0 %v315, 112
        %v646 = vpop.permute.xlu0 %645
        %v650 = vsel %vm347, %v642, 0
        %652 = vmatpush.msra.mxu0 0.0
        %653 = vmatpush.msra.mxu0 0.0
        %654 = vmatpush.msra.mxu0 0.0
        %655 = vmatpush.msra.mxu0 0.0
        %656 = vmatpush.msra.mxu0 0.0
        %657 = vmatpush.msra.mxu0 0.0
        %658 = vmatpush.msra.mxu0 0.0
        %659 = vmatpush.msra.mxu0 0.0
        %660 = vmatpush.msra.mxu0 0.0
        %661 = vmatpush.msra.mxu0 0.0
        %662 = vmatpush.msra.mxu0 0.0
        %663 = vmatpush.msra.mxu0 0.0
        %664 = vmatpush.msra.mxu0 0.0
        %665 = vmatpush.msra.mxu0 0.0
        %666 = vmatpush.msra.mxu0 %v646
        %667 = vmatpush.msra.mxu0 %v644
        %668 = vmatmul.f32.gmra.mxu0 %v650
        %v669 = vpop.f32.mrf.mxu0
        %v670 = vadd.f32 0.0, %v669
        %671 = vdwg.mxu0
        %672 = vrot.lane.b32.xlu0 %v316, 108
        %v673 = vpop.permute.xlu0 %672
        %674 = vrot.lane.b32.xlu0 %v312, 108
        %v675 = vpop.permute.xlu0 %674
        %676 = vrot.lane.b32.xlu0 %v313, 108
        %v677 = vpop.permute.xlu0 %676
        %v678 = vsel %vm317, %v673, 0
        %v680 = vsel %vm317, %v675, 0
        %v682 = vsel %vm317, %v677, 0
        %684 = vmatpush.xpose.msra.mxu0 0.0
        %685 = vmatpush.xpose.msra.mxu0 0.0
        %686 = vmatpush.xpose.msra.mxu0 0.0
        %687 = vmatpush.xpose.msra.mxu0 0.0
        %688 = vmatpush.xpose.msra.mxu0 0.0
        %689 = vmatpush.xpose.msra.mxu0 0.0
        %690 = vmatpush.xpose.msra.mxu0 0.0
        %691 = vmatpush.xpose.msra.mxu0 0.0
        %692 = vmatpush.xpose.msra.mxu0 0.0
        %693 = vmatpush.xpose.msra.mxu0 0.0
        %694 = vmatpush.xpose.msra.mxu0 0.0
        %695 = vmatpush.xpose.msra.mxu0 0.0
        %696 = vmatpush.xpose.msra.mxu0 0.0
        %697 = vmatpush.xpose.msra.mxu0 0.0
        %698 = vmatpush.xpose.msra.mxu0 %v682
        %699 = vmatpush.xpose.msra.mxu0 %v680
        %700 = vmatmul.f32.gmra.mxu0 %v678
        %v701 = vpop.f32.mrf.mxu0
        %v702 = vadd.f32 0.0, %v701
        %703 = vdwg.mxu0
        %v704 = vsel %vm347, %v702, -inf
        %705 = vmax.xlane.f32.xlu0 %v704
        %v706 = vpop.xlane.xlu0 %705
        %v707 = vsub.f32 %v702, %v706
        %v708 = vmul.f32 %v707, 1.442695
        %v709 = vpow.pop %v708
        %v710 = vsel %vm347, %v709, 0.0
        %711 = vadd.xlane.f32.xlu0 %v710
        %v712 = vpop.xlane.xlu0 %711
        %v713 = vrcp.pop %v712
        %v714 = vmul.f32 %v709, %v713
        %715 = vrot.lane.b32.xlu0 %v314, 108
        %v716 = vpop.permute.xlu0 %715
        %717 = vrot.lane.b32.xlu0 %v315, 108
        %v718 = vpop.permute.xlu0 %717
        %v722 = vsel %vm347, %v714, 0
        %724 = vmatpush.msra.mxu0 0.0
        %725 = vmatpush.msra.mxu0 0.0
        %726 = vmatpush.msra.mxu0 0.0
        %727 = vmatpush.msra.mxu0 0.0
        %728 = vmatpush.msra.mxu0 0.0
        %729 = vmatpush.msra.mxu0 0.0
        %730 = vmatpush.msra.mxu0 0.0
        %731 = vmatpush.msra.mxu0 0.0
        %732 = vmatpush.msra.mxu0 0.0
        %733 = vmatpush.msra.mxu0 0.0
        %734 = vmatpush.msra.mxu0 0.0
        %735 = vmatpush.msra.mxu0 0.0
        %736 = vmatpush.msra.mxu0 0.0
        %737 = vmatpush.msra.mxu0 0.0
        %738 = vmatpush.msra.mxu0 %v718
        %739 = vmatpush.msra.mxu0 %v716
        %740 = vmatmul.f32.gmra.mxu0 %v722
        %v741 = vpop.f32.mrf.mxu0
        %v742 = vadd.f32 0.0, %v741
        %743 = vdwg.mxu0
        %744 = vrot.lane.b32.xlu0 %v316, 104
        %v745 = vpop.permute.xlu0 %744
        %746 = vrot.lane.b32.xlu0 %v312, 104
        %v747 = vpop.permute.xlu0 %746
        %748 = vrot.lane.b32.xlu0 %v313, 104
        %v749 = vpop.permute.xlu0 %748
        %v750 = vsel %vm317, %v745, 0
        %v752 = vsel %vm317, %v747, 0
        %v754 = vsel %vm317, %v749, 0
        %756 = vmatpush.xpose.msra.mxu0 0.0
        %757 = vmatpush.xpose.msra.mxu0 0.0
        %758 = vmatpush.xpose.msra.mxu0 0.0
        %759 = vmatpush.xpose.msra.mxu0 0.0
        %760 = vmatpush.xpose.msra.mxu0 0.0
        %761 = vmatpush.xpose.msra.mxu0 0.0
        %762 = vmatpush.xpose.msra.mxu0 0.0
        %763 = vmatpush.xpose.msra.mxu0 0.0
        %764 = vmatpush.xpose.msra.mxu0 0.0
        %765 = vmatpush.xpose.msra.mxu0 0.0
        %766 = vmatpush.xpose.msra.mxu0 0.0
        %767 = vmatpush.xpose.msra.mxu0 0.0
        %768 = vmatpush.xpose.msra.mxu0 0.0
        %769 = vmatpush.xpose.msra.mxu0 0.0
        %770 = vmatpush.xpose.msra.mxu0 %v754
        %771 = vmatpush.xpose.msra.mxu0 %v752
        %772 = vmatmul.f32.gmra.mxu0 %v750
        %v773 = vpop.f32.mrf.mxu0
        %v774 = vadd.f32 0.0, %v773
        %775 = vdwg.mxu0
        %v776 = vsel %vm347, %v774, -inf
        %777 = vmax.xlane.f32.xlu0 %v776
        %v778 = vpop.xlane.xlu0 %777
        %v779 = vsub.f32 %v774, %v778
        %v780 = vmul.f32 %v779, 1.442695
        %v781 = vpow.pop %v780
        %v782 = vsel %vm347, %v781, 0.0
        %783 = vadd.xlane.f32.xlu0 %v782
        %v784 = vpop.xlane.xlu0 %783
        %v785 = vrcp.pop %v784
        %v786 = vmul.f32 %v781, %v785
        %787 = vrot.lane.b32.xlu0 %v314, 104
        %v788 = vpop.permute.xlu0 %787
        %789 = vrot.lane.b32.xlu0 %v315, 104
        %v790 = vpop.permute.xlu0 %789
        %v794 = vsel %vm347, %v786, 0
        %796 = vmatpush.msra.mxu0 0.0
        %797 = vmatpush.msra.mxu0 0.0
        %798 = vmatpush.msra.mxu0 0.0
        %799 = vmatpush.msra.mxu0 0.0
        %800 = vmatpush.msra.mxu0 0.0
        %801 = vmatpush.msra.mxu0 0.0
        %802 = vmatpush.msra.mxu0 0.0
        %803 = vmatpush.msra.mxu0 0.0
        %804 = vmatpush.msra.mxu0 0.0
        %805 = vmatpush.msra.mxu0 0.0
        %806 = vmatpush.msra.mxu0 0.0
        %807 = vmatpush.msra.mxu0 0.0
        %808 = vmatpush.msra.mxu0 0.0
        %809 = vmatpush.msra.mxu0 0.0
        %810 = vmatpush.msra.mxu0 %v790
        %811 = vmatpush.msra.mxu0 %v788
        %812 = vmatmul.f32.gmra.mxu0 %v794
        %v813 = vpop.f32.mrf.mxu0
        %v814 = vadd.f32 0.0, %v813
        %815 = vdwg.mxu0
        %816 = vrot.lane.b32.xlu0 %v316, 100
        %v817 = vpop.permute.xlu0 %816
        %818 = vrot.lane.b32.xlu0 %v312, 100
        %v819 = vpop.permute.xlu0 %818
        %820 = vrot.lane.b32.xlu0 %v313, 100
        %v821 = vpop.permute.xlu0 %820
        %v822 = vsel %vm317, %v817, 0
        %v824 = vsel %vm317, %v819, 0
        %v826 = vsel %vm317, %v821, 0
        %828 = vmatpush.xpose.msra.mxu0 0.0
        %829 = vmatpush.xpose.msra.mxu0 0.0
        %830 = vmatpush.xpose.msra.mxu0 0.0
        %831 = vmatpush.xpose.msra.mxu0 0.0
        %832 = vmatpush.xpose.msra.mxu0 0.0
        %833 = vmatpush.xpose.msra.mxu0 0.0
        %834 = vmatpush.xpose.msra.mxu0 0.0
        %835 = vmatpush.xpose.msra.mxu0 0.0
        %836 = vmatpush.xpose.msra.mxu0 0.0
        %837 = vmatpush.xpose.msra.mxu0 0.0
        %838 = vmatpush.xpose.msra.mxu0 0.0
        %839 = vmatpush.xpose.msra.mxu0 0.0
        %840 = vmatpush.xpose.msra.mxu0 0.0
        %841 = vmatpush.xpose.msra.mxu0 0.0
        %842 = vmatpush.xpose.msra.mxu0 %v826
        %843 = vmatpush.xpose.msra.mxu0 %v824
        %844 = vmatmul.f32.gmra.mxu0 %v822
        %v845 = vpop.f32.mrf.mxu0
        %v846 = vadd.f32 0.0, %v845
        %847 = vdwg.mxu0
        %v848 = vsel %vm347, %v846, -inf
        %849 = vmax.xlane.f32.xlu0 %v848
        %v850 = vpop.xlane.xlu0 %849
        %v851 = vsub.f32 %v846, %v850
        %v852 = vmul.f32 %v851, 1.442695
        %v853 = vpow.pop %v852
        %v854 = vsel %vm347, %v853, 0.0
        %855 = vadd.xlane.f32.xlu0 %v854
        %v856 = vpop.xlane.xlu0 %855
        %v857 = vrcp.pop %v856
        %v858 = vmul.f32 %v853, %v857
        %859 = vrot.lane.b32.xlu0 %v314, 100
        %v860 = vpop.permute.xlu0 %859
        %861 = vrot.lane.b32.xlu0 %v315, 100
        %v862 = vpop.permute.xlu0 %861
        %v866 = vsel %vm347, %v858, 0
        %868 = vmatpush.msra.mxu0 0.0
        %869 = vmatpush.msra.mxu0 0.0
        %870 = vmatpush.msra.mxu0 0.0
        %871 = vmatpush.msra.mxu0 0.0
        %872 = vmatpush.msra.mxu0 0.0
        %873 = vmatpush.msra.mxu0 0.0
        %874 = vmatpush.msra.mxu0 0.0
        %875 = vmatpush.msra.mxu0 0.0
        %876 = vmatpush.msra.mxu0 0.0
        %877 = vmatpush.msra.mxu0 0.0
        %878 = vmatpush.msra.mxu0 0.0
        %879 = vmatpush.msra.mxu0 0.0
        %880 = vmatpush.msra.mxu0 0.0
        %881 = vmatpush.msra.mxu0 0.0
        %882 = vmatpush.msra.mxu0 %v862
        %883 = vmatpush.msra.mxu0 %v860
        %884 = vmatmul.f32.gmra.mxu0 %v866
        %v885 = vpop.f32.mrf.mxu0
        %v886 = vadd.f32 0.0, %v885
        %887 = vdwg.mxu0
        %889 = vrot.lane.b32.xlu0 %v454, 4
        %v890 = vpop.permute.xlu0 %889
        %893 = vrot.lane.b32.xlu0 %v526, 8
        %v894 = vpop.permute.xlu0 %893
        %897 = vrot.lane.b32.xlu0 %v598, 12
        %v898 = vpop.permute.xlu0 %897
        %901 = vrot.lane.b32.xlu0 %v670, 16
        %v902 = vpop.permute.xlu0 %901
        %905 = vrot.lane.b32.xlu0 %v742, 20
        %v906 = vpop.permute.xlu0 %905
        %909 = vrot.lane.b32.xlu0 %v814, 24
        %v910 = vpop.permute.xlu0 %909
        %913 = vrot.lane.b32.xlu0 %v886, 28
        %v914 = vpop.permute.xlu0 %913
        %v916 = vsel %vm317, %v380, %v890
        %vm917 = vcmask 64512
        %v918 = vsel %vm917, %v916, %v894
        %vm919 = vcmask 97280
        %v920 = vsel %vm919, %v918, %v898
        %v921 = vsel %vm347, %v920, %v902
        %vm922 = vcmask 162816
        %v923 = vsel %vm922, %v921, %v906
        %vm924 = vcmask 195584
        %v925 = vsel %vm924, %v923, %v910
        %vm926 = vcmask 228352
        %v927 = vsel %vm926, %v925, %v914
        %v928 = vld [vmem:[#allocation2] sm:$0xff]
        %s929 = sld [smem:[#allocation3 + %s21]]
        %v930 = vstv %s929
        %v931 = vmul.f32 %v930, %v927
        %v932 = vadd.f32 %v928, %v931
        %vm933 = vcmask 261120
        %934 = vst.msk [vmem:[#allocation2] sm:$0xff] %vm933, %v932
        %p935 = scmp.eq.s32.totalorder %s21, 2
        // Predicated region
        $region45: #{cross_attention_forward.6} parent=35 // pred_check
          %p936 = pneg %p935
        $region46: #{cross_attention_forward.6} parent=35 // pred_check_branch
          %938 = sbr.rel (%p936) target = $region48
        $region47: #{cross_attention_forward.6} parent=35 // pred_region
          %v939 = vld [vmem:[#allocation2] sm:$0xff]
          %940 = vst.msk [vmem:[%s304] sm:$0xff] %vm933, %v939
        $region48: #{cross_attention_forward.6} parent=35 // pred_fallthru
          _
        %p941 = scmp.lt.s32.totalorder %s20, 1
        %s942 = scalar_select %p941, %s20, 1
        %s943 = smul.addr %s942, 8
        %s944 = scalar_lea.vmem %s4, %s943
        // Predicated region
        $region49: #{cross_attention_forward.6} parent=35 // pred_check
          %p945 = pneg %p151
        $region50: #{cross_attention_forward.6} parent=35 // pred_check_branch
          %947 = sbr.rel (%p945) target = $region52
        $region51: #{cross_attention_forward.6} parent=35 // pred_region
          _
        $region52: #{cross_attention_forward.6} parent=35 // pred_fallthru
          _
      $region36: #{cross_attention_forward.6} parent=5 // pred_fallthru
        _
      %p948 = scmp.le.s32.totalorder 2, %s11
      // Predicated region
      $region53: #{cross_attention_forward.6} parent=5 // pred_check
        %p949 = pneg %p948
      $region54: #{cross_attention_forward.6} parent=5 // pred_check_branch
        %951 = sbr.rel (%p949) target = $region56
      $region55: #{cross_attention_forward.6} parent=5 // pred_region
        %s952 = ssub.s32 %s11, 2
        // Predicated region
        $region57: #{cross_attention_forward.6} parent=55 // pred_check
          %p953 = pneg %p157
        $region58: #{cross_attention_forward.6} parent=55 // pred_check_branch
          %955 = sbr.rel (%p953) target = $region60
        $region59: #{cross_attention_forward.6} parent=55 // pred_region
          %p956 = scmp.lt.s32.totalorder %s22, 1
          %s957 = scalar_select %p956, %s22, 1
          %s958 = smul.addr %s957, 8
          %s959 = scalar_lea.vmem %s4, %s958
        $region60: #{cross_attention_forward.6} parent=55 // pred_fallthru
          _
      $region56: #{cross_attention_forward.6} parent=5 // pred_fallthru
        _
    $region6: #{cross_attention_forward.6} parent=1 // loop_footer
      %s15 = sadd.s32 1, %s11
    $region7: #{cross_attention_forward.6} parent=1 // loop_footer_branch
      %10 = sbr.rel target = $region3
    $region8: #{cross_attention_forward.6} parent=1 // loop_exit
      _
    %960 = vsyncpa [#allocation4], 1
    %s961 = scalar_lea.sflag [#allocation4], 1
    %962 = vsyncpa %s961, 1

// kernel: cross_attention_forward.5
$region0: #{cross_attention_forward.5}
  #allocation0 [shape = 'u32[]', space=smem, size = 0x4, offset = 0x4, fixed_abs, tag = 'smem constant byte address 0x4 - core index']
  #allocation1 [shape = 'u32[72,128]{1,0:T(1,128)}', space=vmem, size = 0x9000, scoped, tag = 'internal scratch']
  #allocation2 [shape = 'f32[16,32]{1,0:T(8,128)}', space=vmem, size = 0x2000, scoped, tag = 'scratch operand']
  %s0 = inlined_call_operand.vmem [shape: f32[3], index: 0, kind: input, shape index: {}]
  %s1 = inlined_call_operand.vmem [shape: f32[3,32,32], index: 1, kind: input, shape index: {}]
  %s2 = inlined_call_operand.vmem [shape: f32[3,16,32], index: 2, kind: input, shape index: {}]
  %s3 = inlined_call_operand.vmem [shape: f32[3,16,32], index: 3, kind: input, shape index: {}]
  %s4 = inlined_call_operand.vmem [shape: f32[32,32], index: 4, kind: output, shape index: {}]
  %s5 = sld [smem:[#allocation0]]
  $region61: #{cross_attention_forward.5} parent=0
    _
  %s7 = ssub.s32 1, %s5
  %s8 = scalar_select 0, %s7, %s5
  $region1: #{cross_attention_forward.5} parent=0
    #allocation3 [shape = 'u8[512]{0}', space=smem, size = 0x200, scoped, tag = 'input window, operand 0, single buffered']
    #allocation4 [shape = 's32[2]{0}', space=sflag, size = 0x8, scoped, tag = 'scoped memory for cross_attention_forward.5']
    %9 = vsyncpa [#allocation4], 0
    loop: start=0, step=1, limit=8
    $region2: #{cross_attention_forward.5} parent=1 // loop_pre_header
      _
    $region3: #{cross_attention_forward.5} parent=1 // loop_header
      %s11 = sphi 0, %s15
      %p12 = scmp.ge.s32.totalorder %s11, 8
      %s18 = sphi 0, %s30
      %s19 = sphi 0, %s26
      %s20 = sphi 0, %s18
      %s21 = sphi 0, %s19
      %s22 = sphi 0, %s20
      %s23 = sphi 0, %s21
      %s31 = sphi 0, %s31
      %s33 = sphi 0, %s31
      %s34 = sphi 0, %s33
      %s48 = sphi 0, %s34
      %s56 = sphi 0, %s58
      %s59 = sphi 0, %s56
      %s60 = sphi 0, %s59
      %s76 = sphi 0, %s60
      %s84 = sphi 0, %s86
      %s87 = sphi 0, %s84
      %s88 = sphi 0, %s87
      %s104 = sphi 0, %s88
      %s112 = sphi 0, %s114
      %s115 = sphi 0, %s112
      %s116 = sphi 0, %s115
      %s132 = sphi 0, %s116
      %s138 = sphi 0, %s140
      %s141 = sphi 0, %s138
      %s142 = sphi 0, %s141
      %s158 = sphi 0, %s142
    $region4: #{cross_attention_forward.5} parent=1 // loop_header_branch
      %14 = sbr.rel (%p12) target = $region8
    $region5: #{cross_attention_forward.5} parent=1 // loop_body
      %s16 = ssub.s32 %s11, 1
      %s17 = ssub.s32 %s11, 2
      %s24 = sadd.s32 1, %s19
      %p25 = scmp.ge.s32.totalorder %s24, 3
      %s26 = scalar_select %p25, 0, %s24
      %s27 = sadd.s32 1, %s18
      %s28 = scalar_select %p25, %s27, %s18
      %p29 = scmp.ge.s32.totalorder %s28, 2
      %s30 = scalar_select %p29, 0, %s28
      %s32 = sadd.s32 %s31, 1
      %p35 = scmp.eq.s32.totalorder %s11, 5
      %p36 = scmp.ne.s32.totalorder %s31, %s33
      %p37 = scmp.eq.s32.totalorder %s11, 0
      %p38 = por %p36, %p37
      %p39 = scmp.ne.s32.totalorder %s31, %s33
      %p40 = scmp.eq.s32.totalorder %s16, 5
      %p41 = por %p39, %p40
      %p42 = scmp.ne.s32.totalorder %s33, %s34
      %p43 = scmp.eq.s32.totalorder %s16, 0
      %p44 = por %p42, %p43
      %p45 = scmp.ne.s32.totalorder %s33, %s34
      %p46 = scmp.eq.s32.totalorder %s17, 5
      %p47 = por %p45, %p46
      %p49 = scmp.ne.s32.totalorder %s34, %s48
      %p50 = scmp.eq.s32.totalorder %s17, 0
      %p51 = por %p49, %p50
      %s52 = ssub.s32 %s19, %s26
      %s53 = ssub.s32 %s18, %s30
      %s54 = sor.u32 %s52, %s53
      %p55 = scmp.eq.s32.totalorder %s54, 0
      %s57 = sadd.s32 %s56, 1
      %s58 = scalar_select %p55, %s56, %s57
      %p61 = pneg %p55
      %p62 = scmp.eq.s32.totalorder %s11, 5
      %p63 = por %p61, %p62
      %p64 = scmp.ne.s32.totalorder %s56, %s59
      %p65 = scmp.eq.s32.totalorder %s11, 0
      %p66 = por %p64, %p65
      %p67 = scmp.ne.s32.totalorder %s56, %s59
      %p68 = scmp.eq.s32.totalorder %s16, 5
      %p69 = por %p67, %p68
      %p70 = scmp.ne.s32.totalorder %s59, %s60
      %p71 = scmp.eq.s32.totalorder %s16, 0
      %p72 = por %p70, %p71
      %p73 = scmp.ne.s32.totalorder %s59, %s60
      %p74 = scmp.eq.s32.totalorder %s17, 5
      %p75 = por %p73, %p74
      %p77 = scmp.ne.s32.totalorder %s60, %s76
      %p78 = scmp.eq.s32.totalorder %s17, 0
      %p79 = por %p77, %p78
      %s80 = ssub.s32 %s19, %s26
      %s81 = ssub.s32 %s18, %s30
      %s82 = sor.u32 %s80, %s81
      %p83 = scmp.eq.s32.totalorder %s82, 0
      %s85 = sadd.s32 %s84, 1
      %s86 = scalar_select %p83, %s84, %s85
      %p89 = pneg %p83
      %p90 = scmp.eq.s32.totalorder %s11, 5
      %p91 = por %p89, %p90
      %p92 = scmp.ne.s32.totalorder %s84, %s87
      %p93 = scmp.eq.s32.totalorder %s11, 0
      %p94 = por %p92, %p93
      %p95 = scmp.ne.s32.totalorder %s84, %s87
      %p96 = scmp.eq.s32.totalorder %s16, 5
      %p97 = por %p95, %p96
      %p98 = scmp.ne.s32.totalorder %s87, %s88
      %p99 = scmp.eq.s32.totalorder %s16, 0
      %p100 = por %p98, %p99
      %p101 = scmp.ne.s32.totalorder %s87, %s88
      %p102 = scmp.eq.s32.totalorder %s17, 5
      %p103 = por %p101, %p102
      %p105 = scmp.ne.s32.totalorder %s88, %s104
      %p106 = scmp.eq.s32.totalorder %s17, 0
      %p107 = por %p105, %p106
      %s108 = ssub.s32 %s19, %s26
      %s109 = ssub.s32 %s18, %s30
      %s110 = sor.u32 %s108, %s109
      %p111 = scmp.eq.s32.totalorder %s110, 0
      %s113 = sadd.s32 %s112, 1
      %s114 = scalar_select %p111, %s112, %s113
      %p117 = pneg %p111
      %p118 = scmp.eq.s32.totalorder %s11, 5
      %p119 = por %p117, %p118
      %p120 = scmp.ne.s32.totalorder %s112, %s115
      %p121 = scmp.eq.s32.totalorder %s11, 0
      %p122 = por %p120, %p121
      %p123 = scmp.ne.s32.totalorder %s112, %s115
      %p124 = scmp.eq.s32.totalorder %s16, 5
      %p125 = por %p123, %p124
      %p126 = scmp.ne.s32.totalorder %s115, %s116
      %p127 = scmp.eq.s32.totalorder %s16, 0
      %p128 = por %p126, %p127
      %p129 = scmp.ne.s32.totalorder %s115, %s116
      %p130 = scmp.eq.s32.totalorder %s17, 5
      %p131 = por %p129, %p130
      %p133 = scmp.ne.s32.totalorder %s116, %s132
      %p134 = scmp.eq.s32.totalorder %s17, 0
      %p135 = por %p133, %p134
      %s136 = ssub.s32 %s18, %s30
      %p137 = scmp.eq.s32.totalorder %s136, 0
      %s139 = sadd.s32 %s138, 1
      %s140 = scalar_select %p137, %s138, %s139
      %p143 = pneg %p137
      %p144 = scmp.eq.s32.totalorder %s11, 5
      %p145 = por %p143, %p144
      %p146 = scmp.ne.s32.totalorder %s138, %s141
      %p147 = scmp.eq.s32.totalorder %s11, 0
      %p148 = por %p146, %p147
      %p149 = scmp.ne.s32.totalorder %s138, %s141
      %p150 = scmp.eq.s32.totalorder %s16, 5
      %p151 = por %p149, %p150
      %p152 = scmp.ne.s32.totalorder %s141, %s142
      %p153 = scmp.eq.s32.totalorder %s16, 0
      %p154 = por %p152, %p153
      %p155 = scmp.ne.s32.totalorder %s141, %s142
      %p156 = scmp.eq.s32.totalorder %s17, 5
      %p157 = por %p155, %p156
      %p159 = scmp.ne.s32.totalorder %s142, %s158
      %p160 = scmp.eq.s32.totalorder %s17, 0
      %p161 = por %p159, %p160
      %p162 = scmp.le.s32.totalorder 1, %s11
      %p163 = scmp.lt.s32.totalorder %s11, 7
      %p164 = pnand %p162, %p163
      %p165 = pneg %p164
      // Predicated region
      $region9: #{cross_attention_forward.5} parent=5 // pred_check
        _
      $region10: #{cross_attention_forward.5} parent=5 // pred_check_branch
        %167 = sbr.rel (%p164) target = $region12
      $region11: #{cross_attention_forward.5} parent=5 // pred_region
        %s168 = ssub.s32 %s11, 1
        // Predicated region
        $region13: #{cross_attention_forward.5} parent=11 // pred_check
          %p169 = pneg %p44
        $region14: #{cross_attention_forward.5} parent=11 // pred_check_branch
          %171 = sbr.rel (%p169) target = $region16
        $region15: #{cross_attention_forward.5} parent=11 // pred_region
          %173 = vsyncadd [#allocation4], 0
          %s175 = sshll.u32 %s0, 4
          %s176 = int_to_ptr.vmem [resolvable:$true] %s175
          %178 = dma.vmem_to_smem %s176, 16, [#allocation3], [#allocation4]
        $region16: #{cross_attention_forward.5} parent=11 // pred_fallthru
          _
      $region12: #{cross_attention_forward.5} parent=5 // pred_fallthru
        _
      %p179 = scmp.lt.s32.totalorder %s11, 6
      // Predicated region
      $region17: #{cross_attention_forward.5} parent=5 // pred_check
        %p180 = pneg %p179
      $region18: #{cross_attention_forward.5} parent=5 // pred_check_branch
        %182 = sbr.rel (%p180) target = $region20
      $region19: #{cross_attention_forward.5} parent=5 // pred_region
        // Predicated region
        $region21: #{cross_attention_forward.5} parent=19 // pred_check
          %p183 = pneg %p66
        $region22: #{cross_attention_forward.5} parent=19 // pred_check_branch
          %185 = sbr.rel (%p183) target = $region24
        $region23: #{cross_attention_forward.5} parent=19 // pred_region
          %s186 = smul.u32 2, %s18
          %p187 = scmp.lt.s32.totalorder %s19, 2
          %s188 = scalar_select %p187, %s19, 2
          %p189 = scmp.lt.s32.totalorder %s186, 3
          %s190 = scalar_select %p189, %s186, 3
          %s191 = smul.addr %s188, 4
          %s192 = sadd.s32 %s190, %s191
          %s193 = smul.addr %s192, 8
          %s194 = scalar_lea.vmem %s1, %s193
          %s195 = smul.u32 2, %s18
        $region24: #{cross_attention_forward.5} parent=19 // pred_fallthru
          _
        // Predicated region
        $region25: #{cross_attention_forward.5} parent=19 // pred_check
          %p196 = pneg %p94
        $region26: #{cross_attention_forward.5} parent=19 // pred_check_branch
          %198 = sbr.rel (%p196) target = $region28
        $region27: #{cross_attention_forward.5} parent=19 // pred_region
          %p199 = scmp.lt.s32.totalorder %s19, 2
          %s200 = scalar_select %p199, %s19, 2
          %p201 = scmp.lt.s32.totalorder %s18, 1
          %s202 = scalar_select %p201, %s18, 1
          %s203 = smul.addr %s200, 2
          %s204 = sadd.s32 %s202, %s203
          %s205 = smul.addr %s204, 8
          %s206 = scalar_lea.vmem %s2, %s205
        $region28: #{cross_attention_forward.5} parent=19 // pred_fallthru
          _
        // Predicated region
        $region29: #{cross_attention_forward.5} parent=19 // pred_check
          %p207 = pneg %p122
        $region30: #{cross_attention_forward.5} parent=19 // pred_check_branch
          %209 = sbr.rel (%p207) target = $region32
        $region31: #{cross_attention_forward.5} parent=19 // pred_region
          %p210 = scmp.lt.s32.totalorder %s19, 2
          %s211 = scalar_select %p210, %s19, 2
          %p212 = scmp.lt.s32.totalorder %s18, 1
          %s213 = scalar_select %p212, %s18, 1
          %s214 = smul.addr %s211, 2
          %s215 = sadd.s32 %s213, %s214
          %s216 = smul.addr %s215, 8
          %s217 = scalar_lea.vmem %s3, %s216
        $region32: #{cross_attention_forward.5} parent=19 // pred_fallthru
          _
      $region20: #{cross_attention_forward.5} parent=5 // pred_fallthru
        _
      %p218 = scmp.le.s32.totalorder 1, %s11
      %p219 = scmp.lt.s32.totalorder %s11, 7
      %p220 = pnand %p218, %p219
      %p221 = pneg %p220
      // Predicated region
      $region33: #{cross_attention_forward.5} parent=5 // pred_check
        _
      $region34: #{cross_attention_forward.5} parent=5 // pred_check_branch
        %223 = sbr.rel (%p220) target = $region36
      $region35: #{cross_attention_forward.5} parent=5 // pred_region
        %s224 = ssub.s32 %s11, 1
        // Predicated region
        $region37: #{cross_attention_forward.5} parent=35 // pred_check
          %p225 = pneg %p44
        $region38: #{cross_attention_forward.5} parent=35 // pred_check_branch
          %227 = sbr.rel (%p225) target = $region40
        $region39: #{cross_attention_forward.5} parent=35 // pred_region
          %229 = dma.done [#allocation4], 16
        $region40: #{cross_attention_forward.5} parent=35 // pred_fallthru
          _
        %230 = sfence
        %p231 = pneg %p44
        %p232 = pneg %p41
        %s233 = smul.u32 2, %s20
        %p234 = scmp.lt.s32.totalorder %s21, 2
        %s235 = scalar_select %p234, %s21, 2
        %p236 = scmp.lt.s32.totalorder %s233, 3
        %s237 = scalar_select %p236, %s233, 3
        %s238 = smul.addr %s235, 4
        %s239 = sadd.s32 %s237, %s238
        %s240 = smul.addr %s239, 8
        %s241 = scalar_lea.vmem %s1, %s240
        %p242 = pneg %p72
        %p243 = pneg %p69
        %p244 = scmp.lt.s32.totalorder %s21, 2
        %s245 = scalar_select %p244, %s21, 2
        %p246 = scmp.lt.s32.totalorder %s20, 1
        %s247 = scalar_select %p246, %s20, 1
        %s248 = smul.addr %s245, 2
        %s249 = sadd.s32 %s247, %s248
        %s250 = smul.addr %s249, 8
        %s251 = scalar_lea.vmem %s2, %s250
        %p252 = pneg %p100
        %p253 = pneg %p97
        %p254 = scmp.lt.s32.totalorder %s21, 2
        %s255 = scalar_select %p254, %s21, 2
        %p256 = scmp.lt.s32.totalorder %s20, 1
        %s257 = scalar_select %p256, %s20, 1
        %s258 = smul.addr %s255, 2
        %s259 = sadd.s32 %s257, %s258
        %s260 = smul.addr %s259, 8
        %s261 = scalar_lea.vmem %s3, %s260
        %p262 = pneg %p128
        %p263 = pneg %p125
        %p264 = pneg %p154
        %p265 = pneg %p151
        %s266 = smul.u32 2, %s20
        %p267 = scmp.lt.s32.totalorder %s266, 3
        %s268 = scalar_select %p267, %s266, 3
        %s269 = smul.addr %s268, 8
        %s270 = scalar_lea.vmem %s4, %s269
        %s271 = smul.u32 2, %s20
        %p272 = scmp.lt.s32.totalorder %s21, 2
        %s273 = scalar_select %p272, %s21, 2
        %p274 = scmp.lt.s32.totalorder %s271, 3
        %s275 = scalar_select %p274, %s271, 3
        %s276 = smul.addr %s273, 4
        %s277 = sadd.s32 %s275, %s276
        %s278 = smul.addr %s277, 8
        %s279 = scalar_lea.vmem %s1, %s278
        %s280 = smul.u32 2, %s20
        %p281 = scmp.lt.s32.totalorder %s21, 2
        %s282 = scalar_select %p281, %s21, 2
        %p283 = scmp.lt.s32.totalorder %s20, 1
        %s284 = scalar_select %p283, %s20, 1
        %s285 = smul.addr %s282, 2
        %s286 = sadd.s32 %s284, %s285
        %s287 = smul.addr %s286, 8
        %s288 = scalar_lea.vmem %s2, %s287
        %p289 = scmp.lt.s32.totalorder %s21, 2
        %s290 = scalar_select %p289, %s21, 2
        %p291 = scmp.lt.s32.totalorder %s20, 1
        %s292 = scalar_select %p291, %s20, 1
        %s293 = smul.addr %s290, 2
        %s294 = sadd.s32 %s292, %s293
        %s295 = smul.addr %s294, 8
        %s296 = scalar_lea.vmem %s3, %s295
        %s297 = smul.u32 2, %s20
        %p298 = scmp.lt.s32.totalorder %s297, 3
        %s299 = scalar_select %p298, %s297, 3
        %s300 = smul.addr %s299, 8
        %s301 = scalar_lea.vmem %s4, %s300
        %s302 = smul.u32 2, %s20
        %p303 = scmp.eq.s32.totalorder %s21, 0
        // Predicated region
        $region41: #{cross_attention_forward.5} parent=35 // pred_check
          %p304 = pneg %p303
        $region42: #{cross_attention_forward.5} parent=35 // pred_check_branch
          %306 = sbr.rel (%p304) target = $region44
        $region43: #{cross_attention_forward.5} parent=35 // pred_region
          %vm307 = vcmask 261120
          %308 = vst.msk [vmem:[#allocation2] sm:$0xff] %vm307, 0.0
          %309 = vst.msk [vmem:[#allocation2 + $0x8] sm:$0xff] %vm307, 0.0
        $region44: #{cross_attention_forward.5} parent=35 // pred_fallthru
          _
        %v310 = vld [vmem:[%s279] sm:$0xff]
        %v311 = vld [vmem:[%s279 + $0x8] sm:$0xff]
        %v312 = vld [vmem:[%s288] sm:$0xff]
        %v313 = vld [vmem:[%s296] sm:$0xff]
        %v314 = vmul.f32 %v310, 0.5
        %v315 = vmul.f32 %v311, 0.5
        %vm316 = vcmask 31744
        %v318 = vsel %vm316, %v314, 0
        %v321 = vsel %vm316, %v315, 0
        %v324 = vsel %vm316, %v312, 0
        %326 = vmatpush.xpose.msra.mxu0 0.0
        %327 = vmatpush.xpose.msra.mxu0 0.0
        %328 = vmatpush.xpose.msra.mxu0 0.0
        %329 = vmatpush.xpose.msra.mxu0 0.0
        %330 = vmatpush.xpose.msra.mxu0 0.0
        %331 = vmatpush.xpose.msra.mxu0 0.0
        %332 = vmatpush.xpose.msra.mxu0 0.0
        %333 = vmatpush.xpose.msra.mxu0 0.0
        %334 = vmatpush.xpose.msra.mxu0 0.0
        %335 = vmatpush.xpose.msra.mxu0 0.0
        %336 = vmatpush.xpose.msra.mxu0 0.0
        %337 = vmatpush.xpose.msra.mxu0 0.0
        %338 = vmatpush.xpose.msra.mxu0 0.0
        %339 = vmatpush.xpose.msra.mxu0 0.0
        %340 = vmatpush.xpose.msra.mxu0 0.0
        %341 = vmatpush.xpose.msra.mxu0 %v324
        %342 = vmatmul.f32.gmra.mxu0 %v318
        %v343 = vpop.f32.mrf.mxu0
        %v344 = vadd.f32 0.0, %v343
        %345 = vmatmul.f32.gmra.mxu0 %v321
        %v346 = vpop.f32.mrf.mxu0
        %v347 = vadd.f32 0.0, %v346
        %348 = vdwg.mxu0
        %vm349 = vcmask 64512
        %v350 = vsel %vm349, %v344, -inf
        %351 = vmax.xlane.f32.xlu0 %v350
        %v352 = vpop.xlane.xlu0 %351
        %v353 = vsel %vm349, %v347, -inf
        %354 = vmax.xlane.f32.xlu0 %v353
        %v355 = vpop.xlane.xlu0 %354
        %v356 = vsub.f32 %v344, %v352
        %v357 = vsub.f32 %v347, %v355
        %v358 = vmul.f32 %v356, 1.442695
        %v359 = vpow.pop %v358
        %v360 = vmul.f32 %v357, 1.442695
        %v361 = vpow.pop %v360
        %v362 = vsel %vm349, %v359, 0.0
        %363 = vadd.xlane.f32.xlu0 %v362
        %v364 = vpop.xlane.xlu0 %363
        %v365 = vsel %vm349, %v361, 0.0
        %366 = vadd.xlane.f32.xlu0 %v365
        %v367 = vpop.xlane.xlu0 %366
        %v368 = vrcp.pop %v364
        %v369 = vrcp.pop %v367
        %v370 = vmul.f32 %v359, %v368
        %v371 = vmul.f32 %v361, %v369
        %v373 = vsel %vm349, %v370, 0
        %v376 = vsel %vm349, %v371, 0
        %378 = vmatpush.msra.mxu0 0.0
        %379 = vmatpush.msra.mxu0 0.0
        %380 = vmatpush.msra.mxu0 0.0
        %381 = vmatpush.msra.mxu0 0.0
        %382 = vmatpush.msra.mxu0 0.0
        %383 = vmatpush.msra.mxu0 0.0
        %384 = vmatpush.msra.mxu0 0.0
        %385 = vmatpush.msra.mxu0 0.0
        %386 = vmatpush.msra.mxu0 0.0
        %387 = vmatpush.msra.mxu0 0.0
        %388 = vmatpush.msra.mxu0 0.0
        %389 = vmatpush.msra.mxu0 0.0
        %390 = vmatpush.msra.mxu0 0.0
        %391 = vmatpush.msra.mxu0 0.0
        %392 = vmatpush.msra.mxu0 0.0
        %393 = vmatpush.msra.mxu0 %v313
        %394 = vmatmul.f32.gmra.mxu0 %v373
        %v395 = vpop.f32.mrf.mxu0
        %v396 = vadd.f32 0.0, %v395
        %397 = vmatmul.f32.gmra.mxu0 %v376
        %v398 = vpop.f32.mrf.mxu0
        %v399 = vadd.f32 0.0, %v398
        %400 = vdwg.mxu0
        %401 = vrot.lane.b32.xlu0 %v314, 124
        %v402 = vpop.permute.xlu0 %401
        %403 = vrot.lane.b32.xlu0 %v315, 124
        %v404 = vpop.permute.xlu0 %403
        %405 = vrot.lane.b32.xlu0 %v312, 124
        %v406 = vpop.permute.xlu0 %405
        %v407 = vsel %vm316, %v402, 0
        %v409 = vsel %vm316, %v404, 0
        %v411 = vsel %vm316, %v406, 0
        %413 = vmatpush.xpose.msra.mxu0 0.0
        %414 = vmatpush.xpose.msra.mxu0 0.0
        %415 = vmatpush.xpose.msra.mxu0 0.0
        %416 = vmatpush.xpose.msra.mxu0 0.0
        %417 = vmatpush.xpose.msra.mxu0 0.0
        %418 = vmatpush.xpose.msra.mxu0 0.0
        %419 = vmatpush.xpose.msra.mxu0 0.0
        %420 = vmatpush.xpose.msra.mxu0 0.0
        %421 = vmatpush.xpose.msra.mxu0 0.0
        %422 = vmatpush.xpose.msra.mxu0 0.0
        %423 = vmatpush.xpose.msra.mxu0 0.0
        %424 = vmatpush.xpose.msra.mxu0 0.0
        %425 = vmatpush.xpose.msra.mxu0 0.0
        %426 = vmatpush.xpose.msra.mxu0 0.0
        %427 = vmatpush.xpose.msra.mxu0 0.0
        %428 = vmatpush.xpose.msra.mxu0 %v411
        %429 = vmatmul.f32.gmra.mxu0 %v407
        %v430 = vpop.f32.mrf.mxu0
        %v431 = vadd.f32 0.0, %v430
        %432 = vmatmul.f32.gmra.mxu0 %v409
        %v433 = vpop.f32.mrf.mxu0
        %v434 = vadd.f32 0.0, %v433
        %435 = vdwg.mxu0
        %v436 = vsel %vm349, %v431, -inf
        %437 = vmax.xlane.f32.xlu0 %v436
        %v438 = vpop.xlane.xlu0 %437
        %v439 = vsel %vm349, %v434, -inf
        %440 = vmax.xlane.f32.xlu0 %v439
        %v441 = vpop.xlane.xlu0 %440
        %v442 = vsub.f32 %v431, %v438
        %v443 = vsub.f32 %v434, %v441
        %v444 = vmul.f32 %v442, 1.442695
        %v445 = vpow.pop %v444
        %v446 = vmul.f32 %v443, 1.442695
        %v447 = vpow.pop %v446
        %v448 = vsel %vm349, %v445, 0.0
        %449 = vadd.xlane.f32.xlu0 %v448
        %v450 = vpop.xlane.xlu0 %449
        %v451 = vsel %vm349, %v447, 0.0
        %452 = vadd.xlane.f32.xlu0 %v451
        %v453 = vpop.xlane.xlu0 %452
        %v454 = vrcp.pop %v450
        %v455 = vrcp.pop %v453
        %v456 = vmul.f32 %v445, %v454
        %v457 = vmul.f32 %v447, %v455
        %459 = vrot.lane.b32.xlu0 %v313, 124
        %v460 = vpop.permute.xlu0 %459
        %v463 = vsel %vm349, %v456, 0
        %v466 = vsel %vm349, %v457, 0
        %468 = vmatpush.msra.mxu0 0.0
        %469 = vmatpush.msra.mxu0 0.0
        %470 = vmatpush.msra.mxu0 0.0
        %471 = vmatpush.msra.mxu0 0.0
        %472 = vmatpush.msra.mxu0 0.0
        %473 = vmatpush.msra.mxu0 0.0
        %474 = vmatpush.msra.mxu0 0.0
        %475 = vmatpush.msra.mxu0 0.0
        %476 = vmatpush.msra.mxu0 0.0
        %477 = vmatpush.msra.mxu0 0.0
        %478 = vmatpush.msra.mxu0 0.0
        %479 = vmatpush.msra.mxu0 0.0
        %480 = vmatpush.msra.mxu0 0.0
        %481 = vmatpush.msra.mxu0 0.0
        %482 = vmatpush.msra.mxu0 0.0
        %483 = vmatpush.msra.mxu0 %v460
        %484 = vmatmul.f32.gmra.mxu0 %v463
        %v485 = vpop.f32.mrf.mxu0
        %v486 = vadd.f32 0.0, %v485
        %487 = vmatmul.f32.gmra.mxu0 %v466
        %v488 = vpop.f32.mrf.mxu0
        %v489 = vadd.f32 0.0, %v488
        %490 = vdwg.mxu0
        %491 = vrot.lane.b32.xlu0 %v314, 120
        %v492 = vpop.permute.xlu0 %491
        %493 = vrot.lane.b32.xlu0 %v315, 120
        %v494 = vpop.permute.xlu0 %493
        %495 = vrot.lane.b32.xlu0 %v312, 120
        %v496 = vpop.permute.xlu0 %495
        %v497 = vsel %vm316, %v492, 0
        %v499 = vsel %vm316, %v494, 0
        %v501 = vsel %vm316, %v496, 0
        %503 = vmatpush.xpose.msra.mxu0 0.0
        %504 = vmatpush.xpose.msra.mxu0 0.0
        %505 = vmatpush.xpose.msra.mxu0 0.0
        %506 = vmatpush.xpose.msra.mxu0 0.0
        %507 = vmatpush.xpose.msra.mxu0 0.0
        %508 = vmatpush.xpose.msra.mxu0 0.0
        %509 = vmatpush.xpose.msra.mxu0 0.0
        %510 = vmatpush.xpose.msra.mxu0 0.0
        %511 = vmatpush.xpose.msra.mxu0 0.0
        %512 = vmatpush.xpose.msra.mxu0 0.0
        %513 = vmatpush.xpose.msra.mxu0 0.0
        %514 = vmatpush.xpose.msra.mxu0 0.0
        %515 = vmatpush.xpose.msra.mxu0 0.0
        %516 = vmatpush.xpose.msra.mxu0 0.0
        %517 = vmatpush.xpose.msra.mxu0 0.0
        %518 = vmatpush.xpose.msra.mxu0 %v501
        %519 = vmatmul.f32.gmra.mxu0 %v497
        %v520 = vpop.f32.mrf.mxu0
        %v521 = vadd.f32 0.0, %v520
        %522 = vmatmul.f32.gmra.mxu0 %v499
        %v523 = vpop.f32.mrf.mxu0
        %v524 = vadd.f32 0.0, %v523
        %525 = vdwg.mxu0
        %v526 = vsel %vm349, %v521, -inf
        %527 = vmax.xlane.f32.xlu0 %v526
        %v528 = vpop.xlane.xlu0 %527
        %v529 = vsel %vm349, %v524, -inf
        %530 = vmax.xlane.f32.xlu0 %v529
        %v531 = vpop.xlane.xlu0 %530
        %v532 = vsub.f32 %v521, %v528
        %v533 = vsub.f32 %v524, %v531
        %v534 = vmul.f32 %v532, 1.442695
        %v535 = vpow.pop %v534
        %v536 = vmul.f32 %v533, 1.442695
        %v537 = vpow.pop %v536
        %v538 = vsel %vm349, %v535, 0.0
        %539 = vadd.xlane.f32.xlu0 %v538
        %v540 = vpop.xlane.xlu0 %539
        %v541 = vsel %vm349, %v537, 0.0
        %542 = vadd.xlane.f32.xlu0 %v541
        %v543 = vpop.xlane.xlu0 %542
        %v544 = vrcp.pop %v540
        %v545 = vrcp.pop %v543
        %v546 = vmul.f32 %v535, %v544
        %v547 = vmul.f32 %v537, %v545
        %548 = vrot.lane.b32.xlu0 %v313, 120
        %v549 = vpop.permute.xlu0 %548
        %v552 = vsel %vm349, %v546, 0
        %v555 = vsel %vm349, %v547, 0
        %557 = vmatpush.msra.mxu0 0.0
        %558 = vmatpush.msra.mxu0 0.0
        %559 = vmatpush.msra.mxu0 0.0
        %560 = vmatpush.msra.mxu0 0.0
        %561 = vmatpush.msra.mxu0 0.0
        %562 = vmatpush.msra.mxu0 0.0
        %563 = vmatpush.msra.mxu0 0.0
        %564 = vmatpush.msra.mxu0 0.0
        %565 = vmatpush.msra.mxu0 0.0
        %566 = vmatpush.msra.mxu0 0.0
        %567 = vmatpush.msra.mxu0 0.0
        %568 = vmatpush.msra.mxu0 0.0
        %569 = vmatpush.msra.mxu0 0.0
        %570 = vmatpush.msra.mxu0 0.0
        %571 = vmatpush.msra.mxu0 0.0
        %572 = vmatpush.msra.mxu0 %v549
        %573 = vmatmul.f32.gmra.mxu0 %v552
        %v574 = vpop.f32.mrf.mxu0
        %v575 = vadd.f32 0.0, %v574
        %576 = vmatmul.f32.gmra.mxu0 %v555
        %v577 = vpop.f32.mrf.mxu0
        %v578 = vadd.f32 0.0, %v577
        %579 = vdwg.mxu0
        %580 = vrot.lane.b32.xlu0 %v314, 116
        %v581 = vpop.permute.xlu0 %580
        %582 = vrot.lane.b32.xlu0 %v315, 116
        %v583 = vpop.permute.xlu0 %582
        %584 = vrot.lane.b32.xlu0 %v312, 116
        %v585 = vpop.permute.xlu0 %584
        %v586 = vsel %vm316, %v581, 0
        %v588 = vsel %vm316, %v583, 0
        %v590 = vsel %vm316, %v585, 0
        %592 = vmatpush.xpose.msra.mxu0 0.0
        %593 = vmatpush.xpose.msra.mxu0 0.0
        %594 = vmatpush.xpose.msra.mxu0 0.0
        %595 = vmatpush.xpose.msra.mxu0 0.0
        %596 = vmatpush.xpose.msra.mxu0 0.0
        %597 = vmatpush.xpose.msra.mxu0 0.0
        %598 = vmatpush.xpose.msra.mxu0 0.0
        %599 = vmatpush.xpose.msra.mxu0 0.0
        %600 = vmatpush.xpose.msra.mxu0 0.0
        %601 = vmatpush.xpose.msra.mxu0 0.0
        %602 = vmatpush.xpose.msra.mxu0 0.0
        %603 = vmatpush.xpose.msra.mxu0 0.0
        %604 = vmatpush.xpose.msra.mxu0 0.0
        %605 = vmatpush.xpose.msra.mxu0 0.0
        %606 = vmatpush.xpose.msra.mxu0 0.0
        %607 = vmatpush.xpose.msra.mxu0 %v590
        %608 = vmatmul.f32.gmra.mxu0 %v586
        %v609 = vpop.f32.mrf.mxu0
        %v610 = vadd.f32 0.0, %v609
        %611 = vmatmul.f32.gmra.mxu0 %v588
        %v612 = vpop.f32.mrf.mxu0
        %v613 = vadd.f32 0.0, %v612
        %614 = vdwg.mxu0
        %v615 = vsel %vm349, %v610, -inf
        %616 = vmax.xlane.f32.xlu0 %v615
        %v617 = vpop.xlane.xlu0 %616
        %v618 = vsel %vm349, %v613, -inf
        %619 = vmax.xlane.f32.xlu0 %v618
        %v620 = vpop.xlane.xlu0 %619
        %v621 = vsub.f32 %v610, %v617
        %v622 = vsub.f32 %v613, %v620
        %v623 = vmul.f32 %v621, 1.442695
        %v624 = vpow.pop %v623
        %v625 = vmul.f32 %v622, 1.442695
        %v626 = vpow.pop %v625
        %v627 = vsel %vm349, %v624, 0.0
        %628 = vadd.xlane.f32.xlu0 %v627
        %v629 = vpop.xlane.xlu0 %628
        %v630 = vsel %vm349, %v626, 0.0
        %631 = vadd.xlane.f32.xlu0 %v630
        %v632 = vpop.xlane.xlu0 %631
        %v633 = vrcp.pop %v629
        %v634 = vrcp.pop %v632
        %v635 = vmul.f32 %v624, %v633
        %v636 = vmul.f32 %v626, %v634
        %637 = vrot.lane.b32.xlu0 %v313, 116
        %v638 = vpop.permute.xlu0 %637
        %v641 = vsel %vm349, %v635, 0
        %v644 = vsel %vm349, %v636, 0
        %646 = vmatpush.msra.mxu0 0.0
        %647 = vmatpush.msra.mxu0 0.0
        %648 = vmatpush.msra.mxu0 0.0
        %649 = vmatpush.msra.mxu0 0.0
        %650 = vmatpush.msra.mxu0 0.0
        %651 = vmatpush.msra.mxu0 0.0
        %652 = vmatpush.msra.mxu0 0.0
        %653 = vmatpush.msra.mxu0 0.0
        %654 = vmatpush.msra.mxu0 0.0
        %655 = vmatpush.msra.mxu0 0.0
        %656 = vmatpush.msra.mxu0 0.0
        %657 = vmatpush.msra.mxu0 0.0
        %658 = vmatpush.msra.mxu0 0.0
        %659 = vmatpush.msra.mxu0 0.0
        %660 = vmatpush.msra.mxu0 0.0
        %661 = vmatpush.msra.mxu0 %v638
        %662 = vmatmul.f32.gmra.mxu0 %v641
        %v663 = vpop.f32.mrf.mxu0
        %v664 = vadd.f32 0.0, %v663
        %665 = vmatmul.f32.gmra.mxu0 %v644
        %v666 = vpop.f32.mrf.mxu0
        %v667 = vadd.f32 0.0, %v666
        %668 = vdwg.mxu0
        %669 = vrot.lane.b32.xlu0 %v314, 112
        %v670 = vpop.permute.xlu0 %669
        %671 = vrot.lane.b32.xlu0 %v315, 112
        %v672 = vpop.permute.xlu0 %671
        %673 = vrot.lane.b32.xlu0 %v312, 112
        %v674 = vpop.permute.xlu0 %673
        %v675 = vsel %vm316, %v670, 0
        %v677 = vsel %vm316, %v672, 0
        %v679 = vsel %vm316, %v674, 0
        %681 = vmatpush.xpose.msra.mxu0 0.0
        %682 = vmatpush.xpose.msra.mxu0 0.0
        %683 = vmatpush.xpose.msra.mxu0 0.0
        %684 = vmatpush.xpose.msra.mxu0 0.0
        %685 = vmatpush.xpose.msra.mxu0 0.0
        %686 = vmatpush.xpose.msra.mxu0 0.0
        %687 = vmatpush.xpose.msra.mxu0 0.0
        %688 = vmatpush.xpose.msra.mxu0 0.0
        %689 = vmatpush.xpose.msra.mxu0 0.0
        %690 = vmatpush.xpose.msra.mxu0 0.0
        %691 = vmatpush.xpose.msra.mxu0 0.0
        %692 = vmatpush.xpose.msra.mxu0 0.0
        %693 = vmatpush.xpose.msra.mxu0 0.0
        %694 = vmatpush.xpose.msra.mxu0 0.0
        %695 = vmatpush.xpose.msra.mxu0 0.0
        %696 = vmatpush.xpose.msra.mxu0 %v679
        %697 = vmatmul.f32.gmra.mxu0 %v675
        %v698 = vpop.f32.mrf.mxu0
        %v699 = vadd.f32 0.0, %v698
        %700 = vmatmul.f32.gmra.mxu0 %v677
        %v701 = vpop.f32.mrf.mxu0
        %v702 = vadd.f32 0.0, %v701
        %703 = vdwg.mxu0
        %v704 = vsel %vm349, %v699, -inf
        %705 = vmax.xlane.f32.xlu0 %v704
        %v706 = vpop.xlane.xlu0 %705
        %v707 = vsel %vm349, %v702, -inf
        %708 = vmax.xlane.f32.xlu0 %v707
        %v709 = vpop.xlane.xlu0 %708
        %v710 = vsub.f32 %v699, %v706
        %v711 = vsub.f32 %v702, %v709
        %v712 = vmul.f32 %v710, 1.442695
        %v713 = vpow.pop %v712
        %v714 = vmul.f32 %v711, 1.442695
        %v715 = vpow.pop %v714
        %v716 = vsel %vm349, %v713, 0.0
        %717 = vadd.xlane.f32.xlu0 %v716
        %v718 = vpop.xlane.xlu0 %717
        %v719 = vsel %vm349, %v715, 0.0
        %720 = vadd.xlane.f32.xlu0 %v719
        %v721 = vpop.xlane.xlu0 %720
        %v722 = vrcp.pop %v718
        %v723 = vrcp.pop %v721
        %v724 = vmul.f32 %v713, %v722
        %v725 = vmul.f32 %v715, %v723
        %726 = vrot.lane.b32.xlu0 %v313, 112
        %v727 = vpop.permute.xlu0 %726
        %v730 = vsel %vm349, %v724, 0
        %v733 = vsel %vm349, %v725, 0
        %735 = vmatpush.msra.mxu0 0.0
        %736 = vmatpush.msra.mxu0 0.0
        %737 = vmatpush.msra.mxu0 0.0
        %738 = vmatpush.msra.mxu0 0.0
        %739 = vmatpush.msra.mxu0 0.0
        %740 = vmatpush.msra.mxu0 0.0
        %741 = vmatpush.msra.mxu0 0.0
        %742 = vmatpush.msra.mxu0 0.0
        %743 = vmatpush.msra.mxu0 0.0
        %744 = vmatpush.msra.mxu0 0.0
        %745 = vmatpush.msra.mxu0 0.0
        %746 = vmatpush.msra.mxu0 0.0
        %747 = vmatpush.msra.mxu0 0.0
        %748 = vmatpush.msra.mxu0 0.0
        %749 = vmatpush.msra.mxu0 0.0
        %750 = vmatpush.msra.mxu0 %v727
        %751 = vmatmul.f32.gmra.mxu0 %v730
        %v752 = vpop.f32.mrf.mxu0
        %v753 = vadd.f32 0.0, %v752
        %754 = vmatmul.f32.gmra.mxu0 %v733
        %v755 = vpop.f32.mrf.mxu0
        %v756 = vadd.f32 0.0, %v755
        %757 = vdwg.mxu0
        %758 = vrot.lane.b32.xlu0 %v314, 108
        %v759 = vpop.permute.xlu0 %758
        %760 = vrot.lane.b32.xlu0 %v315, 108
        %v761 = vpop.permute.xlu0 %760
        %762 = vrot.lane.b32.xlu0 %v312, 108
        %v763 = vpop.permute.xlu0 %762
        %v764 = vsel %vm316, %v759, 0
        %v766 = vsel %vm316, %v761, 0
        %v768 = vsel %vm316, %v763, 0
        %770 = vmatpush.xpose.msra.mxu0 0.0
        %771 = vmatpush.xpose.msra.mxu0 0.0
        %772 = vmatpush.xpose.msra.mxu0 0.0
        %773 = vmatpush.xpose.msra.mxu0 0.0
        %774 = vmatpush.xpose.msra.mxu0 0.0
        %775 = vmatpush.xpose.msra.mxu0 0.0
        %776 = vmatpush.xpose.msra.mxu0 0.0
        %777 = vmatpush.xpose.msra.mxu0 0.0
        %778 = vmatpush.xpose.msra.mxu0 0.0
        %779 = vmatpush.xpose.msra.mxu0 0.0
        %780 = vmatpush.xpose.msra.mxu0 0.0
        %781 = vmatpush.xpose.msra.mxu0 0.0
        %782 = vmatpush.xpose.msra.mxu0 0.0
        %783 = vmatpush.xpose.msra.mxu0 0.0
        %784 = vmatpush.xpose.msra.mxu0 0.0
        %785 = vmatpush.xpose.msra.mxu0 %v768
        %786 = vmatmul.f32.gmra.mxu0 %v764
        %v787 = vpop.f32.mrf.mxu0
        %v788 = vadd.f32 0.0, %v787
        %789 = vmatmul.f32.gmra.mxu0 %v766
        %v790 = vpop.f32.mrf.mxu0
        %v791 = vadd.f32 0.0, %v790
        %792 = vdwg.mxu0
        %v793 = vsel %vm349, %v788, -inf
        %794 = vmax.xlane.f32.xlu0 %v793
        %v795 = vpop.xlane.xlu0 %794
        %v796 = vsel %vm349, %v791, -inf
        %797 = vmax.xlane.f32.xlu0 %v796
        %v798 = vpop.xlane.xlu0 %797
        %v799 = vsub.f32 %v788, %v795
        %v800 = vsub.f32 %v791, %v798
        %v801 = vmul.f32 %v799, 1.442695
        %v802 = vpow.pop %v801
        %v803 = vmul.f32 %v800, 1.442695
        %v804 = vpow.pop %v803
        %v805 = vsel %vm349, %v802, 0.0
        %806 = vadd.xlane.f32.xlu0 %v805
        %v807 = vpop.xlane.xlu0 %806
        %v808 = vsel %vm349, %v804, 0.0
        %809 = vadd.xlane.f32.xlu0 %v808
        %v810 = vpop.xlane.xlu0 %809
        %v811 = vrcp.pop %v807
        %v812 = vrcp.pop %v810
        %v813 = vmul.f32 %v802, %v811
        %v814 = vmul.f32 %v804, %v812
        %815 = vrot.lane.b32.xlu0 %v313, 108
        %v816 = vpop.permute.xlu0 %815
        %v819 = vsel %vm349, %v813, 0
        %v822 = vsel %vm349, %v814, 0
        %824 = vmatpush.msra.mxu0 0.0
        %825 = vmatpush.msra.mxu0 0.0
        %826 = vmatpush.msra.mxu0 0.0
        %827 = vmatpush.msra.mxu0 0.0
        %828 = vmatpush.msra.mxu0 0.0
        %829 = vmatpush.msra.mxu0 0.0
        %830 = vmatpush.msra.mxu0 0.0
        %831 = vmatpush.msra.mxu0 0.0
        %832 = vmatpush.msra.mxu0 0.0
        %833 = vmatpush.msra.mxu0 0.0
        %834 = vmatpush.msra.mxu0 0.0
        %835 = vmatpush.msra.mxu0 0.0
        %836 = vmatpush.msra.mxu0 0.0
        %837 = vmatpush.msra.mxu0 0.0
        %838 = vmatpush.msra.mxu0 0.0
        %839 = vmatpush.msra.mxu0 %v816
        %840 = vmatmul.f32.gmra.mxu0 %v819
        %v841 = vpop.f32.mrf.mxu0
        %v842 = vadd.f32 0.0, %v841
        %843 = vmatmul.f32.gmra.mxu0 %v822
        %v844 = vpop.f32.mrf.mxu0
        %v845 = vadd.f32 0.0, %v844
        %846 = vdwg.mxu0
        %847 = vrot.lane.b32.xlu0 %v314, 104
        %v848 = vpop.permute.xlu0 %847
        %849 = vrot.lane.b32.xlu0 %v315, 104
        %v850 = vpop.permute.xlu0 %849
        %851 = vrot.lane.b32.xlu0 %v312, 104
        %v852 = vpop.permute.xlu0 %851
        %v853 = vsel %vm316, %v848, 0
        %v855 = vsel %vm316, %v850, 0
        %v857 = vsel %vm316, %v852, 0
        %859 = vmatpush.xpose.msra.mxu0 0.0
        %860 = vmatpush.xpose.msra.mxu0 0.0
        %861 = vmatpush.xpose.msra.mxu0 0.0
        %862 = vmatpush.xpose.msra.mxu0 0.0
        %863 = vmatpush.xpose.msra.mxu0 0.0
        %864 = vmatpush.xpose.msra.mxu0 0.0
        %865 = vmatpush.xpose.msra.mxu0 0.0
        %866 = vmatpush.xpose.msra.mxu0 0.0
        %867 = vmatpush.xpose.msra.mxu0 0.0
        %868 = vmatpush.xpose.msra.mxu0 0.0
        %869 = vmatpush.xpose.msra.mxu0 0.0
        %870 = vmatpush.xpose.msra.mxu0 0.0
        %871 = vmatpush.xpose.msra.mxu0 0.0
        %872 = vmatpush.xpose.msra.mxu0 0.0
        %873 = vmatpush.xpose.msra.mxu0 0.0
        %874 = vmatpush.xpose.msra.mxu0 %v857
        %875 = vmatmul.f32.gmra.mxu0 %v853
        %v876 = vpop.f32.mrf.mxu0
        %v877 = vadd.f32 0.0, %v876
        %878 = vmatmul.f32.gmra.mxu0 %v855
        %v879 = vpop.f32.mrf.mxu0
        %v880 = vadd.f32 0.0, %v879
        %881 = vdwg.mxu0
        %v882 = vsel %vm349, %v877, -inf
        %883 = vmax.xlane.f32.xlu0 %v882
        %v884 = vpop.xlane.xlu0 %883
        %v885 = vsel %vm349, %v880, -inf
        %886 = vmax.xlane.f32.xlu0 %v885
        %v887 = vpop.xlane.xlu0 %886
        %v888 = vsub.f32 %v877, %v884
        %v889 = vsub.f32 %v880, %v887
        %v890 = vmul.f32 %v888, 1.442695
        %v891 = vpow.pop %v890
        %v892 = vmul.f32 %v889, 1.442695
        %v893 = vpow.pop %v892
        %v894 = vsel %vm349, %v891, 0.0
        %895 = vadd.xlane.f32.xlu0 %v894
        %v896 = vpop.xlane.xlu0 %895
        %v897 = vsel %vm349, %v893, 0.0
        %898 = vadd.xlane.f32.xlu0 %v897
        %v899 = vpop.xlane.xlu0 %898
        %v900 = vrcp.pop %v896
        %v901 = vrcp.pop %v899
        %v902 = vmul.f32 %v891, %v900
        %v903 = vmul.f32 %v893, %v901
        %904 = vrot.lane.b32.xlu0 %v313, 104
        %v905 = vpop.permute.xlu0 %904
        %v908 = vsel %vm349, %v902, 0
        %v911 = vsel %vm349, %v903, 0
        %913 = vmatpush.msra.mxu0 0.0
        %914 = vmatpush.msra.mxu0 0.0
        %915 = vmatpush.msra.mxu0 0.0
        %916 = vmatpush.msra.mxu0 0.0
        %917 = vmatpush.msra.mxu0 0.0
        %918 = vmatpush.msra.mxu0 0.0
        %919 = vmatpush.msra.mxu0 0.0
        %920 = vmatpush.msra.mxu0 0.0
        %921 = vmatpush.msra.mxu0 0.0
        %922 = vmatpush.msra.mxu0 0.0
        %923 = vmatpush.msra.mxu0 0.0
        %924 = vmatpush.msra.mxu0 0.0
        %925 = vmatpush.msra.mxu0 0.0
        %926 = vmatpush.msra.mxu0 0.0
        %927 = vmatpush.msra.mxu0 0.0
        %928 = vmatpush.msra.mxu0 %v905
        %929 = vmatmul.f32.gmra.mxu0 %v908
        %v930 = vpop.f32.mrf.mxu0
        %v931 = vadd.f32 0.0, %v930
        %932 = vmatmul.f32.gmra.mxu0 %v911
        %v933 = vpop.f32.mrf.mxu0
        %v934 = vadd.f32 0.0, %v933
        %935 = vdwg.mxu0
        %936 = vrot.lane.b32.xlu0 %v314, 100
        %v937 = vpop.permute.xlu0 %936
        %938 = vrot.lane.b32.xlu0 %v315, 100
        %v939 = vpop.permute.xlu0 %938
        %940 = vrot.lane.b32.xlu0 %v312, 100
        %v941 = vpop.permute.xlu0 %940
        %v942 = vsel %vm316, %v937, 0
        %v944 = vsel %vm316, %v939, 0
        %v946 = vsel %vm316, %v941, 0
        %948 = vmatpush.xpose.msra.mxu0 0.0
        %949 = vmatpush.xpose.msra.mxu0 0.0
        %950 = vmatpush.xpose.msra.mxu0 0.0
        %951 = vmatpush.xpose.msra.mxu0 0.0
        %952 = vmatpush.xpose.msra.mxu0 0.0
        %953 = vmatpush.xpose.msra.mxu0 0.0
        %954 = vmatpush.xpose.msra.mxu0 0.0
        %955 = vmatpush.xpose.msra.mxu0 0.0
        %956 = vmatpush.xpose.msra.mxu0 0.0
        %957 = vmatpush.xpose.msra.mxu0 0.0
        %958 = vmatpush.xpose.msra.mxu0 0.0
        %959 = vmatpush.xpose.msra.mxu0 0.0
        %960 = vmatpush.xpose.msra.mxu0 0.0
        %961 = vmatpush.xpose.msra.mxu0 0.0
        %962 = vmatpush.xpose.msra.mxu0 0.0
        %963 = vmatpush.xpose.msra.mxu0 %v946
        %964 = vmatmul.f32.gmra.mxu0 %v942
        %v965 = vpop.f32.mrf.mxu0
        %v966 = vadd.f32 0.0, %v965
        %967 = vmatmul.f32.gmra.mxu0 %v944
        %v968 = vpop.f32.mrf.mxu0
        %v969 = vadd.f32 0.0, %v968
        %970 = vdwg.mxu0
        %v971 = vsel %vm349, %v966, -inf
        %972 = vmax.xlane.f32.xlu0 %v971
        %v973 = vpop.xlane.xlu0 %972
        %v974 = vsel %vm349, %v969, -inf
        %975 = vmax.xlane.f32.xlu0 %v974
        %v976 = vpop.xlane.xlu0 %975
        %v977 = vsub.f32 %v966, %v973
        %v978 = vsub.f32 %v969, %v976
        %v979 = vmul.f32 %v977, 1.442695
        %v980 = vpow.pop %v979
        %v981 = vmul.f32 %v978, 1.442695
        %v982 = vpow.pop %v981
        %v983 = vsel %vm349, %v980, 0.0
        %984 = vadd.xlane.f32.xlu0 %v983
        %v985 = vpop.xlane.xlu0 %984
        %v986 = vsel %vm349, %v982, 0.0
        %987 = vadd.xlane.f32.xlu0 %v986
        %v988 = vpop.xlane.xlu0 %987
        %v989 = vrcp.pop %v985
        %v990 = vrcp.pop %v988
        %v991 = vmul.f32 %v980, %v989
        %v992 = vmul.f32 %v982, %v990
        %993 = vrot.lane.b32.xlu0 %v313, 100
        %v994 = vpop.permute.xlu0 %993
        %v997 = vsel %vm349, %v991, 0
        %v1000 = vsel %vm349, %v992, 0
        %1002 = vmatpush.msra.mxu0 0.0
        %1003 = vmatpush.msra.mxu0 0.0
        %1004 = vmatpush.msra.mxu0 0.0
        %1005 = vmatpush.msra.mxu0 0.0
        %1006 = vmatpush.msra.mxu0 0.0
        %1007 = vmatpush.msra.mxu0 0.0
        %1008 = vmatpush.msra.mxu0 0.0
        %1009 = vmatpush.msra.mxu0 0.0
        %1010 = vmatpush.msra.mxu0 0.0
        %1011 = vmatpush.msra.mxu0 0.0
        %1012 = vmatpush.msra.mxu0 0.0
        %1013 = vmatpush.msra.mxu0 0.0
        %1014 = vmatpush.msra.mxu0 0.0
        %1015 = vmatpush.msra.mxu0 0.0
        %1016 = vmatpush.msra.mxu0 0.0
        %1017 = vmatpush.msra.mxu0 %v994
        %1018 = vmatmul.f32.gmra.mxu0 %v997
        %v1019 = vpop.f32.mrf.mxu0
        %v1020 = vadd.f32 0.0, %v1019
        %1021 = vmatmul.f32.gmra.mxu0 %v1000
        %v1022 = vpop.f32.mrf.mxu0
        %v1023 = vadd.f32 0.0, %v1022
        %1024 = vdwg.mxu0
        %1027 = vrot.lane.b32.xlu0 %v486, 4
        %v1028 = vpop.permute.xlu0 %1027
        %1029 = vrot.lane.b32.xlu0 %v489, 4
        %v1030 = vpop.permute.xlu0 %1029
        %1035 = vrot.lane.b32.xlu0 %v575, 8
        %v1036 = vpop.permute.xlu0 %1035
        %1037 = vrot.lane.b32.xlu0 %v578, 8
        %v1038 = vpop.permute.xlu0 %1037
        %1043 = vrot.lane.b32.xlu0 %v664, 12
        %v1044 = vpop.permute.xlu0 %1043
        %1045 = vrot.lane.b32.xlu0 %v667, 12
        %v1046 = vpop.permute.xlu0 %1045
        %1051 = vrot.lane.b32.xlu0 %v753, 16
        %v1052 = vpop.permute.xlu0 %1051
        %1053 = vrot.lane.b32.xlu0 %v756, 16
        %v1054 = vpop.permute.xlu0 %1053
        %1059 = vrot.lane.b32.xlu0 %v842, 20
        %v1060 = vpop.permute.xlu0 %1059
        %1061 = vrot.lane.b32.xlu0 %v845, 20
        %v1062 = vpop.permute.xlu0 %1061
        %1067 = vrot.lane.b32.xlu0 %v931, 24
        %v1068 = vpop.permute.xlu0 %1067
        %1069 = vrot.lane.b32.xlu0 %v934, 24
        %v1070 = vpop.permute.xlu0 %1069
        %1075 = vrot.lane.b32.xlu0 %v1020, 28
        %v1076 = vpop.permute.xlu0 %1075
        %1077 = vrot.lane.b32.xlu0 %v1023, 28
        %v1078 = vpop.permute.xlu0 %1077
        %v1081 = vsel %vm316, %v396, %v1028
        %v1082 = vsel %vm316, %v399, %v1030
        %v1083 = vsel %vm349, %v1081, %v1036
        %v1084 = vsel %vm349, %v1082, %v1038
        %vm1085 = vcmask 97280
        %v1086 = vsel %vm1085, %v1083, %v1044
        %v1087 = vsel %vm1085, %v1084, %v1046
        %vm1088 = vcmask 130048
        %v1089 = vsel %vm1088, %v1086, %v1052
        %v1090 = vsel %vm1088, %v1087, %v1054
        %vm1091 = vcmask 162816
        %v1092 = vsel %vm1091, %v1089, %v1060
        %v1093 = vsel %vm1091, %v1090, %v1062
        %vm1094 = vcmask 195584
        %v1095 = vsel %vm1094, %v1092, %v1068
        %v1096 = vsel %vm1094, %v1093, %v1070
        %vm1097 = vcmask 228352
        %v1098 = vsel %vm1097, %v1095, %v1076
        %v1099 = vsel %vm1097, %v1096, %v1078
        %v1100 = vld [vmem:[#allocation2] sm:$0xff]
        %v1101 = vld [vmem:[#allocation2 + $0x8] sm:$0xff]
        %s1102 = sld [smem:[#allocation3 + %s21]]
        %v1103 = vstv %s1102
        %v1104 = vmul.f32 %v1103, %v1098
        %v1105 = vmul.f32 %v1103, %v1099
        %v1106 = vadd.f32 %v1100, %v1104
        %v1107 = vadd.f32 %v1101, %v1105
        %vm1108 = vcmask 261120
        %1109 = vst.msk [vmem:[#allocation2] sm:$0xff] %vm1108, %v1106
        %1110 = vst.msk [vmem:[#allocation2 + $0x8] sm:$0xff] %vm1108, %v1107
        %p1111 = scmp.eq.s32.totalorder %s21, 2
        // Predicated region
        $region45: #{cross_attention_forward.5} parent=35 // pred_check
          %p1112 = pneg %p1111
        $region46: #{cross_attention_forward.5} parent=35 // pred_check_branch
          %1114 = sbr.rel (%p1112) target = $region48
        $region47: #{cross_attention_forward.5} parent=35 // pred_region
          %v1115 = vld [vmem:[#allocation2] sm:$0xff]
          %v1116 = vld [vmem:[#allocation2 + $0x8] sm:$0xff]
          %1117 = vst.msk [vmem:[%s301] sm:$0xff] %vm1108, %v1115
          %1118 = vst.msk [vmem:[%s301 + $0x8] sm:$0xff] %vm1108, %v1116
        $region48: #{cross_attention_forward.5} parent=35 // pred_fallthru
          _
        %s1119 = smul.u32 2, %s20
        %p1120 = scmp.lt.s32.totalorder %s1119, 3
        %s1121 = scalar_select %p1120, %s1119, 3
        %s1122 = smul.addr %s1121, 8
        %s1123 = scalar_lea.vmem %s4, %s1122
        // Predicated region
        $region49: #{cross_attention_forward.5} parent=35 // pred_check
          %p1124 = pneg %p151
        $region50: #{cross_attention_forward.5} parent=35 // pred_check_branch
          %1126 = sbr.rel (%p1124) target = $region52
        $region51: #{cross_attention_forward.5} parent=35 // pred_region
          %s1127 = smul.u32 2, %s20
        $region52: #{cross_attention_forward.5} parent=35 // pred_fallthru
          _
      $region36: #{cross_attention_forward.5} parent=5 // pred_fallthru
        _
      %p1128 = scmp.le.s32.totalorder 2, %s11
      // Predicated region
      $region53: #{cross_attention_forward.5} parent=5 // pred_check
        %p1129 = pneg %p1128
      $region54: #{cross_attention_forward.5} parent=5 // pred_check_branch
        %1131 = sbr.rel (%p1129) target = $region56
      $region55: #{cross_attention_forward.5} parent=5 // pred_region
        %s1132 = ssub.s32 %s11, 2
        // Predicated region
        $region57: #{cross_attention_forward.5} parent=55 // pred_check
          %p1133 = pneg %p157
        $region58: #{cross_attention_forward.5} parent=55 // pred_check_branch
          %1135 = sbr.rel (%p1133) target = $region60
        $region59: #{cross_attention_forward.5} parent=55 // pred_region
          %s1136 = smul.u32 2, %s22
          %p1137 = scmp.lt.s32.totalorder %s1136, 3
          %s1138 = scalar_select %p1137, %s1136, 3
          %s1139 = smul.addr %s1138, 8
          %s1140 = scalar_lea.vmem %s4, %s1139
        $region60: #{cross_attention_forward.5} parent=55 // pred_fallthru
          _
      $region56: #{cross_attention_forward.5} parent=5 // pred_fallthru
        _
    $region6: #{cross_attention_forward.5} parent=1 // loop_footer
      %s15 = sadd.s32 1, %s11
    $region7: #{cross_attention_forward.5} parent=1 // loop_footer_branch
      %10 = sbr.rel target = $region3
    $region8: #{cross_attention_forward.5} parent=1 // loop_exit
      _
    %1141 = vsyncpa [#allocation4], 1
    %s1142 = scalar_lea.sflag [#allocation4], 1
    %1143 = vsyncpa %s1142, 1

</llo_original>
